<compile_context>
chip_gen: v5e
topology: v5e:2x2
jax: 0.10.0
libtpu: 0.0.40
codegen_flags: <defaults>
</compile_context>

<pallas_src>
import functools
from dataclasses import dataclass
from types import SimpleNamespace

import numpy as np
import jax
import jax.numpy as jnp
from jax import lax
from jax.experimental import pallas as pl
from jax.experimental.pallas import tpu as pltpu


# ----------------------------------------------------------------------------
# Config / derived static dimensions
# ----------------------------------------------------------------------------
@dataclass(frozen=True)
class Cfg:
    chunk_size: int = 64
    num_electrodes: int = 8
    F1: tuple = (4, 8)
    F2: tuple = (8, 4)
    D: int = 2
    num_classes: int = 2
    kernel_1: int = 16
    kernel_2: int = 8


def same_pad(K, dil):
    tot = dil * (K - 1)
    return tot // 2, tot - tot // 2            # PyTorch 'same': extra pad on the right


def derive_dims(cfg):
    E, T = cfg.num_electrodes, cfg.chunk_size
    F1a, F1b = cfg.F1
    F2a, F2b = cfg.F2
    Cdw = F1b * cfg.D
    K1, K2 = cfg.kernel_1, cfg.kernel_2

    padL1, _ = same_pad(K1, 1)
    Tp1 = T + (K1 - 1)                         # per-electrode padded segment width
    G1 = E * Tp1                               # flattened lane width for block1 convs
    Wb1 = G1 + (K1 - 1)                        # + global pad so tap slices stay in bounds

    H1 = (E - 1) // 4 + 1                      # AvgPool((1,4), stride=4) height (kernel 1)
    T4 = (T - 4) // 4 + 1                      # AvgPool((1,4), stride=4) width
    H2 = (H1 - 1) // 8 + 1                     # AvgPool((1,4), stride=8) height (kernel 1)
    W2 = (T4 - 4) // 8 + 1                     # AvgPool((1,4), stride=8) width

    dil3, dil4 = 2, 4
    padL3, _ = same_pad(K2, dil3)
    Tp3 = T4 + dil3 * (K2 - 1)
    G3 = H2 * Tp3
    Wb3 = G3 + dil3 * (K2 - 1)

    padL4, _ = same_pad(K2, dil4)
    Tp4 = T4 + dil4 * (K2 - 1)
    G4 = H2 * Tp4
    Wb4 = G4 + dil4 * (K2 - 1)

    return SimpleNamespace(
        E=E, T=T, F1a=F1a, F1b=F1b, F2a=F2a, F2b=F2b, Cdw=Cdw, D=cfg.D,
        K1=K1, K2=K2, NC=cfg.num_classes,
        padL1=padL1, Tp1=Tp1, G1=G1, Wb1=Wb1,
        H1=H1, T4=T4, H2=H2, W2=W2,
        dil3=dil3, padL3=padL3, Tp3=Tp3, G3=G3, Wb3=Wb3,
        dil4=dil4, padL4=padL4, Tp4=Tp4, G4=G4, Wb4=Wb4,
        feat=F2b * H2 * W2)


# ----------------------------------------------------------------------------
# Fused Pallas kernel
# ----------------------------------------------------------------------------
def _elu(x):
    # exp(min(x,0)) - 1 == expm1(x) for x <= 0 up to 1 ulp of 1.0 (~1e-7 abs).
    return jnp.where(x > 0, x, jnp.exp(jnp.minimum(x, 0.0)) - 1.0)


def _eegnex_kernel(x_ref, w1_ref, sh1_ref, mask1_ref, w2_ref,
                   mband_ref, sh3_ref, pool1_ref,
                   w3_ref, sh4_ref, w4_ref, sh5_ref, wlin_ref,
                   o_ref, s1, s3, s4, *, d):
    E, T, T4 = d.E, d.T, d.T4
    F1a, F1b, Cdw, F2a, F2b = d.F1a, d.F1b, d.Cdw, d.F2a, d.F2b

    # ---------------- stage 0: (E, T) input -> electrode-segment lane layout ----------
    s1[...] = jnp.zeros_like(s1)
    xb = x_ref[0]                                                # (E, T)
    for e in range(E):
        c0 = d.padL1 + e * d.Tp1 + d.padL1
        s1[0:1, c0:c0 + T] = xb[e:e + 1, :]

    # ---------------- block1 / conv1 (1 -> F1a, (1,K1), 'same') + BN1 + ELU -----------
    acc = jnp.zeros((F1a, d.G1), jnp.float32)
    for k in range(d.K1):                                        # C_in == 1 -> pure VPU
        acc = acc + w1_ref[:, k:k + 1] * s1[0:1, k:k + d.G1]
    y1 = _elu(acc + sh1_ref[...]) * mask1_ref[...]               # re-zero the pad gaps
    s1[0:F1a, d.padL1:d.padL1 + d.G1] = y1

    # ---------------- block1 / conv2 (F1a -> F1b) + BN2 (shift folded downstream) -----
    acc = jnp.zeros((F1b, d.G1), jnp.float32)
    for k in range(d.K1):
        acc = acc + jnp.dot(w2_ref[:, k * F1a:(k + 1) * F1a],
                            s1[0:F1a, k:k + d.G1],
                            preferred_element_type=jnp.float32)

    # ---------------- depthwise electrode conv + BN3 + ELU (pool1 row-select folded) --
    y2r = jnp.concatenate(
        [acc[:, e * d.Tp1 + d.padL1: e * d.Tp1 + d.padL1 + T] for e in range(E)],
        axis=0)                                                  # (E*F1b, T)
    z = jnp.dot(mband_ref[...], y2r, preferred_element_type=jnp.float32)
    z = _elu(z + sh3_ref[...])                                   # (Cdw*H1, T)

    # ---------------- pool1 width: AvgPool (1,4) stride 4 ------------------------------
    p1 = jnp.dot(z, pool1_ref[...], preferred_element_type=jnp.float32)   # (Cdw*H1, T4)

    # ---------------- block2 input: only the H rows surviving pool2, segment layout ----
    s3[...] = jnp.zeros_like(s3)
    for c in range(Cdw):
        for h in range(d.H2):
            src = c * d.H1 + 8 * h
            dst = d.padL3 + h * d.Tp3 + d.padL3
            s3[c:c + 1, dst:dst + T4] = p1[src:src + 1, :]

    # ---------------- block2 / conv3 (Cdw -> F2a, (1,K2), dil 2) + BN4 -----------------
    acc = jnp.zeros((F2a, d.G3), jnp.float32)
    for k in range(d.K2):
        acc = acc + jnp.dot(w3_ref[:, k * Cdw:(k + 1) * Cdw],
                            s3[0:Cdw, k * d.dil3:k * d.dil3 + d.G3],
                            preferred_element_type=jnp.float32)
    y3 = acc + sh4_ref[...]

    # ---------------- block2 / conv4 (F2a -> F2b, (1,K2), dil 4) + BN5 + ELU -----------
    s4[...] = jnp.zeros_like(s4)
    for h in range(d.H2):
        src = h * d.Tp3 + d.padL3
        dst = d.padL4 + h * d.Tp4 + d.padL4
        s4[0:F2a, dst:dst + T4] = y3[:, src:src + T4]
    acc = jnp.zeros((F2b, d.G4), jnp.float32)
    for k in range(d.K2):
        acc = acc + jnp.dot(w4_ref[:, k * F2a:(k + 1) * F2a],
                            s4[0:F2a, k * d.dil4:k * d.dil4 + d.G4],
                            preferred_element_type=jnp.float32)
    y4 = _elu(acc + sh5_ref[...])                                # (F2b, G4)

    # ---------------- pool2 (1,4)/8 + Flatten + Linear, folded into one matmul ---------
    feat_row = jnp.concatenate(
        [y4[c:c + 1, h * d.Tp4 + d.padL4: h * d.Tp4 + d.padL4 + T4]
         for c in range(F2b) for h in range(d.H2)], axis=1)      # (1, F2b*H2*T4)
    o_ref[0, 0:1, :] = jnp.dot(feat_row, wlin_ref[...],
                               preferred_element_type=jnp.float32)
    # TODO(synk): Dropout layers are inference-mode identity; BatchNorm uses running
    # statistics (eval semantics), not train-mode batch statistics.


def eegnex_forward_pallas(x, params, cfg):
    """x: (B, 1, num_electrodes, chunk_size) (PyTorch NCHW) -> (B, num_classes)."""
    d = derive_dims(cfg)
    kp = params['kp']
    B = x.shape[0]
    x3 = x.reshape(B, d.E, d.T)                                  # free (metadata) reshape

    kern = functools.partial(_eegnex_kernel, d=d)
    out = pl.pallas_call(
        kern,
        out_shape=jax.ShapeDtypeStruct((B, 1, d.NC), jnp.float32),
        grid=(B,),
        in_specs=[
            pl.BlockSpec((1, d.E, d.T), lambda b: (b, 0, 0)),
            pl.BlockSpec(kp['w1'].shape, lambda b: (0, 0)),
            pl.BlockSpec(kp['sh1'].shape, lambda b: (0, 0)),
            pl.BlockSpec(kp['mask1'].shape, lambda b: (0, 0)),
            pl.BlockSpec(kp['w2'].shape, lambda b: (0, 0)),
            pl.BlockSpec(kp['mband'].shape, lambda b: (0, 0)),
            pl.BlockSpec(kp['sh3'].shape, lambda b: (0, 0)),
            pl.BlockSpec(kp['pool1'].shape, lambda b: (0, 0)),
            pl.BlockSpec(kp['w3'].shape, lambda b: (0, 0)),
            pl.BlockSpec(kp['sh4'].shape, lambda b: (0, 0)),
            pl.BlockSpec(kp['w4'].shape, lambda b: (0, 0)),
            pl.BlockSpec(kp['sh5'].shape, lambda b: (0, 0)),
            pl.BlockSpec(kp['wlin'].shape, lambda b: (0, 0)),
        ],
        out_specs=pl.BlockSpec((1, 1, d.NC), lambda b: (b, 0, 0)),
        scratch_shapes=[
            pltpu.VMEM((max(1, d.F1a), d.Wb1), jnp.float32),     # block1 padded acts
            pltpu.VMEM((d.Cdw, d.Wb3), jnp.float32),             # conv3 padded input
            pltpu.VMEM((d.F2a, d.Wb4), jnp.float32),             # conv4 padded input
        ],
        compiler_params=pltpu.CompilerParams(
            dimension_semantics=("parallel",)),                  # batch across cores (v7x)
    )(x3, kp['w1'], kp['sh1'], kp['mask1'], kp['w2'], kp['mband'], kp['sh3'],
      kp['pool1'], kp['w3'], kp['sh4'], kp['w4'], kp['sh5'], kp['wlin'])
    return out.reshape(B, d.NC)


# ----------------------------------------------------------------------------
# Host-side parameter setup / folding
# ----------------------------------------------------------------------------
def _fold_kernel_params(p, cfg):
    d = derive_dims(cfg)
    E, T, T4 = d.E, d.T, d.T4
    F1a, F1b, Cdw, F2a, F2b, D = d.F1a, d.F1b, d.Cdw, d.F2a, d.F2b, d.D
    K1, K2 = d.K1, d.K2

    def nf(a):
        return np.asarray(a, np.float32)

    sc1, b1 = nf(p['bn1'][0]).ravel(), nf(p['bn1'][1]).ravel()
    sc2, b2 = nf(p['bn2'][0]).ravel(), nf(p['bn2'][1]).ravel()
    sc3, b3 = nf(p['bn3'][0]).ravel(), nf(p['bn3'][1]).ravel()
    sc4, b4 = nf(p['bn4'][0]).ravel(), nf(p['bn4'][1]).ravel()
    sc5, b5 = nf(p['bn5'][0]).ravel(), nf(p['bn5'][1]).ravel()

    # Conv weights in (C_out, K*C_in) layout with BN scale folded in.
    W1f = nf(p['w1'])[:, 0, :] * sc1[:, None]                                # (F1a, K1)
    W2f = np.transpose(nf(p['w2']), (0, 2, 1)).reshape(F1b, K1 * F1a) * sc2[:, None]
    W3f = np.transpose(nf(p['w3']), (0, 2, 1)).reshape(F2a, K2 * Cdw) * sc4[:, None]
    W4f = np.transpose(nf(p['w4']), (0, 2, 1)).reshape(F2b, K2 * F2a) * sc5[:, None]

    # Depthwise electrode conv ('same' over electrodes) + BN3 scale + pool1's stride-4
    # row selection folded into one banded matrix; BN2 shift folded into the shift.
    wdw = nf(p['wdw'])                                                       # (Cdw, E)
    pad_top = (E - 1) // 2
    M = np.zeros((Cdw * d.H1, E * F1b), np.float32)
    for c in range(Cdw):
        g = c // D
        for h1 in range(d.H1):
            e_out = 4 * h1
            r = c * d.H1 + h1
            for e_in in range(E):
                ke = e_in - e_out + pad_top
                if 0 <= ke < E:
                    M[r, e_in * F1b + g] = wdw[c, ke] * sc3[c]
    sh3r = np.repeat(b3, d.H1) + M @ np.tile(b2, E)                          # (Cdw*H1,)

    # AvgPool((1,4), stride=4) over time as a dense (T, T4) matrix.
    P1 = np.zeros((T, T4), np.float32)
    for u in range(T4):
        P1[4 * u:4 * u + 4, u] = 0.25

    # Valid-column mask for block1's per-segment padded layout.
    mask1 = np.zeros((1, d.G1), np.float32)
    for e in range(E):
        mask1[0, e * d.Tp1 + d.padL1: e * d.Tp1 + d.padL1 + T] = 1.0

    # AvgPool((1,4), stride=8) width-pool + Flatten + Linear folded into one matrix.
    wlin = nf(p['wlin'])                                                     # (NC, feat)
    Wl = np.zeros((F2b * d.H2 * T4, d.NC), np.float32)
    for c in range(F2b):
        for h in range(d.H2):
            for w in range(d.W2):
                col = c * d.H2 * d.W2 + h * d.W2 + w
                for dt in range(4):
                    t = 8 * w + dt
                    Wl[c * d.H2 * T4 + h * T4 + t, :] += 0.25 * wlin[:, col]

    jf = lambda a: jnp.asarray(a, jnp.float32)
    return dict(
        w1=jf(W1f), sh1=jf(b1[:, None]), mask1=jf(mask1),
        w2=jf(W2f),
        mband=jf(M), sh3=jf(sh3r[:, None]), pool1=jf(P1),
        w3=jf(W3f), sh4=jf(b4[:, None]),
        w4=jf(W4f), sh5=jf(b5[:, None]),
        wlin=jf(Wl))


def init_params(key, cfg):
    d = derive_dims(cfg)
    E = d.E
    K1, K2, D = cfg.kernel_1, cfg.kernel_2, cfg.D
    F1a, F1b = cfg.F1
    F2a, F2b = cfg.F2
    Cdw = F1b * D

    ks = jax.random.split(key, 12)

    def bn_fold(k, C):
        kg, kb, km, kv = jax.random.split(k, 4)
        gamma = 1.0 + 0.1 * jax.random.normal(kg, (C,), jnp.float32)
        beta = 0.1 * jax.random.normal(kb, (C,), jnp.float32)
        mean = 0.1 * jax.random.normal(km, (C,), jnp.float32)
        var = 0.5 + jax.random.uniform(kv, (C,), jnp.float32)
        scale = gamma / jnp.sqrt(var + 1e-3)               # BatchNorm eps = 0.001
        shift = beta - mean * scale
        return scale.reshape(C, 1), shift.reshape(C, 1)

    w1 = 0.3 * jax.random.normal(ks[0], (F1a, 1, K1), jnp.float32)
    w2 = 0.2 * jax.random.normal(ks[1], (F1b, F1a, K1), jnp.float32)
    wdw = 0.5 * jax.random.normal(ks[2], (Cdw, E), jnp.float32)   # depthwise (E,1) kernel
    # Conv2dWithConstraint: torch.renorm(weight, p=2, dim=0, maxnorm=1)
    nrm = jnp.sqrt(jnp.sum(wdw * wdw, axis=1, keepdims=True))
    wdw = wdw * jnp.where(nrm > 1.0, 1.0 / (nrm + 1e-7), 1.0)
    w3 = 0.2 * jax.random.normal(ks[3], (F2a, Cdw, K2), jnp.float32)
    w4 = 0.2 * jax.random.normal(ks[4], (F2b, F2a, K2), jnp.float32)
    wlin = 0.2 * jax.random.normal(ks[10], (cfg.num_classes, d.feat), jnp.float32)

    raw = dict(
        w1=w1, w2=w2, wdw=wdw, w3=w3, w4=w4, wlin=wlin,
        bn1=bn_fold(ks[5], F1a), bn2=bn_fold(ks[6], F1b), bn3=bn_fold(ks[7], Cdw),
        bn4=bn_fold(ks[8], F2a), bn5=bn_fold(ks[9], F2b))
    raw['kp'] = _fold_kernel_params(raw, cfg)
    return raw


# ----------------------------------------------------------------------------
# Pure-JAX reference (numerical sanity check)
# ----------------------------------------------------------------------------
def eegnex_forward_reference(x, p, cfg):
    F1b = cfg.F1[1]
    HP = lax.Precision.HIGHEST

    def conv_t(a, w, dil):
        K = w.shape[-1]
        lo, hi = same_pad(K, dil)
        return lax.conv_general_dilated(
            a, w[:, :, None, :], (1, 1), ((0, 0), (lo, hi)),
            rhs_dilation=(1, dil),
            dimension_numbers=('NCHW', 'OIHW', 'NCHW'), precision=HP)

    def conv_dw(a, w):
        Ek = w.shape[-1]
        lo, hi = same_pad(Ek, 1)
        return lax.conv_general_dilated(
            a, w[:, None, :, None], (1, 1), ((lo, hi), (0, 0)),
            dimension_numbers=('NCHW', 'OIHW', 'NCHW'),
            feature_group_count=F1b, precision=HP)

    def bn(a, sh):
        s, h = sh
        return a * s.reshape(1, -1, 1, 1) + h.reshape(1, -1, 1, 1)

    def elu(a):
        return jnp.where(a > 0, a, jnp.expm1(a))

    def avg_pool(a, k, s):
        tot = lax.reduce_window(a, 0.0, lax.add, (1, 1, k[0], k[1]),
                                (1, 1, s[0], s[1]), 'VALID')
        return tot / (k[0] * k[1])

    h = elu(bn(conv_t(x, p['w1'], 1), p['bn1']))
    h = bn(conv_t(h, p['w2'], 1), p['bn2'])
    h = avg_pool(elu(bn(conv_dw(h, p['wdw']), p['bn3'])), (1, 4), (4, 4))
    h = bn(conv_t(h, p['w3'], 2), p['bn4'])
    h = elu(bn(conv_t(h, p['w4'], 4), p['bn5']))
    h = avg_pool(h, (1, 4), (8, 8))
    flat = h.reshape(h.shape[0], -1)
    return jnp.dot(flat, p['wlin'].T, precision=HP)


# ----------------------------------------------------------------------------
if __name__ == "__main__":
    cfg = Cfg()                      # small EEGNeX: E=8, T=64, F1=(4,8), F2=(8,4), D=2
    key = jax.random.PRNGKey(0)
    kx, kparam = jax.random.split(key)
    x = jax.random.normal(kx, (2, 1, cfg.num_electrodes, cfg.chunk_size), jnp.float32)
    params = init_params(kparam, cfg)

    out = jax.block_until_ready(eegnex_forward_pallas(x, params, cfg))
    ref = jax.block_until_ready(eegnex_forward_reference(x, params, cfg))

    assert out.shape == (2, cfg.num_classes)
    assert bool(jnp.all(jnp.isfinite(out)))
    err = float(jnp.max(jnp.abs(out - ref)))
    assert err < 2e-2, f"Pallas/reference mismatch: {err}"
    print("KERNEL_OK")
</pallas_src>

<mosaic_0001>
module attributes {stable_mosaic.version = 11 : i64} {
  func.func @_eegnex_kernel(%arg0: i32, %arg1: memref<1x8x64xf32, #tpu.memory_space<vmem>>, %arg2: memref<4x16xf32, #tpu.memory_space<vmem>>, %arg3: memref<4x1xf32, #tpu.memory_space<vmem>>, %arg4: memref<1x632xf32, #tpu.memory_space<vmem>>, %arg5: memref<8x64xf32, #tpu.memory_space<vmem>>, %arg6: memref<32x64xf32, #tpu.memory_space<vmem>>, %arg7: memref<32x1xf32, #tpu.memory_space<vmem>>, %arg8: memref<64x16xf32, #tpu.memory_space<vmem>>, %arg9: memref<8x128xf32, #tpu.memory_space<vmem>>, %arg10: memref<8x1xf32, #tpu.memory_space<vmem>>, %arg11: memref<4x64xf32, #tpu.memory_space<vmem>>, %arg12: memref<4x1xf32, #tpu.memory_space<vmem>>, %arg13: memref<64x2xf32, #tpu.memory_space<vmem>>, %arg14: memref<1x1x2xf32, #tpu.memory_space<vmem>>, %arg15: memref<4x647xf32, #tpu.memory_space<vmem>>, %arg16: memref<16x44xf32, #tpu.memory_space<vmem>>, %arg17: memref<8x72xf32, #tpu.memory_space<vmem>>) attributes {dimension_semantics = [#tpu.dimension_semantics<parallel>], iteration_bounds = array<i64: 2>, scalar_prefetch = 0 : i64, scratch_operands = 3 : i64, tpu.core_type = #tpu.core_type<tc>, window_params = [{transform_indices = @transform_0, window_bounds = array<i64: 1, 8, 64>}, {pipeline_mode = #tpu.pipeline_mode<synchronous>, transform_indices = @transform_1, window_bounds = array<i64: 4, 16>}, {pipeline_mode = #tpu.pipeline_mode<synchronous>, transform_indices = @transform_2, window_bounds = array<i64: 4, 1>}, {pipeline_mode = #tpu.pipeline_mode<synchronous>, transform_indices = @transform_3, window_bounds = array<i64: 1, 632>}, {pipeline_mode = #tpu.pipeline_mode<synchronous>, transform_indices = @transform_4, window_bounds = array<i64: 8, 64>}, {pipeline_mode = #tpu.pipeline_mode<synchronous>, transform_indices = @transform_5, window_bounds = array<i64: 32, 64>}, {pipeline_mode = #tpu.pipeline_mode<synchronous>, transform_indices = @transform_6, window_bounds = array<i64: 32, 1>}, {pipeline_mode = #tpu.pipeline_mode<synchronous>, transform_indices = @transform_7, window_bounds = array<i64: 64, 16>}, {pipeline_mode = #tpu.pipeline_mode<synchronous>, transform_indices = @transform_8, window_bounds = array<i64: 8, 128>}, {pipeline_mode = #tpu.pipeline_mode<synchronous>, transform_indices = @transform_9, window_bounds = array<i64: 8, 1>}, {pipeline_mode = #tpu.pipeline_mode<synchronous>, transform_indices = @transform_10, window_bounds = array<i64: 4, 64>}, {pipeline_mode = #tpu.pipeline_mode<synchronous>, transform_indices = @transform_11, window_bounds = array<i64: 4, 1>}, {pipeline_mode = #tpu.pipeline_mode<synchronous>, transform_indices = @transform_12, window_bounds = array<i64: 64, 2>}, {transform_indices = @transform_13, window_bounds = array<i64: 1, 1, 2>}]} {
    %cst = arith.constant 0.000000e+00 : f32
    %0 = vector.broadcast %cst : f32 to vector<4x647xf32>
    %c0 = arith.constant 0 : index
    %c0_0 = arith.constant 0 : index
    %1 = vector.load %arg15[%c0, %c0_0] : memref<4x647xf32, #tpu.memory_space<vmem>>, vector<4x647xf32>
    tpu.vector_store %arg15[%c0, %c0_0], %0 {strides = array<i32>} : memref<4x647xf32, #tpu.memory_space<vmem>>, vector<4x647xf32>,
    %c0_1 = arith.constant 0 : index
    %c0_2 = arith.constant 0 : index
    %c0_3 = arith.constant 0 : index
    %2 = vector.load %arg1[%c0_1, %c0_2, %c0_3] : memref<1x8x64xf32, #tpu.memory_space<vmem>>, vector<1x8x64xf32>
    %3 = vector.shape_cast %2 : vector<1x8x64xf32> to vector<8x64xf32>
    %4 = vector.extract_strided_slice %3 {offsets = [0, 0], sizes = [1, 64], strides = [1, 1]} : vector<8x64xf32> to vector<1x64xf32>
    %c0_4 = arith.constant 0 : index
    %c14 = arith.constant 14 : index
    %5 = vector.load %arg15[%c0_4, %c14] : memref<4x647xf32, #tpu.memory_space<vmem>>, vector<1x64xf32>
    tpu.vector_store %arg15[%c0_4, %c14], %4 {strides = array<i32>} : memref<4x647xf32, #tpu.memory_space<vmem>>, vector<1x64xf32>,
    %6 = vector.extract_strided_slice %3 {offsets = [1, 0], sizes = [1, 64], strides = [1, 1]} : vector<8x64xf32> to vector<1x64xf32>
    %c0_5 = arith.constant 0 : index
    %c93 = arith.constant 93 : index
    %7 = vector.load %arg15[%c0_5, %c93] : memref<4x647xf32, #tpu.memory_space<vmem>>, vector<1x64xf32>
    tpu.vector_store %arg15[%c0_5, %c93], %6 {strides = array<i32>} : memref<4x647xf32, #tpu.memory_space<vmem>>, vector<1x64xf32>,
    %8 = vector.extract_strided_slice %3 {offsets = [2, 0], sizes = [1, 64], strides = [1, 1]} : vector<8x64xf32> to vector<1x64xf32>
    %c0_6 = arith.constant 0 : index
    %c172 = arith.constant 172 : index
    %9 = vector.load %arg15[%c0_6, %c172] : memref<4x647xf32, #tpu.memory_space<vmem>>, vector<1x64xf32>
    tpu.vector_store %arg15[%c0_6, %c172], %8 {strides = array<i32>} : memref<4x647xf32, #tpu.memory_space<vmem>>, vector<1x64xf32>,
    %10 = vector.extract_strided_slice %3 {offsets = [3, 0], sizes = [1, 64], strides = [1, 1]} : vector<8x64xf32> to vector<1x64xf32>
    %c0_7 = arith.constant 0 : index
    %c251 = arith.constant 251 : index
    %11 = vector.load %arg15[%c0_7, %c251] : memref<4x647xf32, #tpu.memory_space<vmem>>, vector<1x64xf32>
    tpu.vector_store %arg15[%c0_7, %c251], %10 {strides = array<i32>} : memref<4x647xf32, #tpu.memory_space<vmem>>, vector<1x64xf32>,
    %12 = vector.extract_strided_slice %3 {offsets = [4, 0], sizes = [1, 64], strides = [1, 1]} : vector<8x64xf32> to vector<1x64xf32>
    %c0_8 = arith.constant 0 : index
    %c330 = arith.constant 330 : index
    %13 = vector.load %arg15[%c0_8, %c330] : memref<4x647xf32, #tpu.memory_space<vmem>>, vector<1x64xf32>
    tpu.vector_store %arg15[%c0_8, %c330], %12 {strides = array<i32>} : memref<4x647xf32, #tpu.memory_space<vmem>>, vector<1x64xf32>,
    %14 = vector.extract_strided_slice %3 {offsets = [5, 0], sizes = [1, 64], strides = [1, 1]} : vector<8x64xf32> to vector<1x64xf32>
    %c0_9 = arith.constant 0 : index
    %c409 = arith.constant 409 : index
    %15 = vector.load %arg15[%c0_9, %c409] : memref<4x647xf32, #tpu.memory_space<vmem>>, vector<1x64xf32>
    tpu.vector_store %arg15[%c0_9, %c409], %14 {strides = array<i32>} : memref<4x647xf32, #tpu.memory_space<vmem>>, vector<1x64xf32>,
    %16 = vector.extract_strided_slice %3 {offsets = [6, 0], sizes = [1, 64], strides = [1, 1]} : vector<8x64xf32> to vector<1x64xf32>
    %c0_10 = arith.constant 0 : index
    %c488 = arith.constant 488 : index
    %17 = vector.load %arg15[%c0_10, %c488] : memref<4x647xf32, #tpu.memory_space<vmem>>, vector<1x64xf32>
    tpu.vector_store %arg15[%c0_10, %c488], %16 {strides = array<i32>} : memref<4x647xf32, #tpu.memory_space<vmem>>, vector<1x64xf32>,
    %18 = vector.extract_strided_slice %3 {offsets = [7, 0], sizes = [1, 64], strides = [1, 1]} : vector<8x64xf32> to vector<1x64xf32>
    %c0_11 = arith.constant 0 : index
    %c567 = arith.constant 567 : index
    %19 = vector.load %arg15[%c0_11, %c567] : memref<4x647xf32, #tpu.memory_space<vmem>>, vector<1x64xf32>
    tpu.vector_store %arg15[%c0_11, %c567], %18 {strides = array<i32>} : memref<4x647xf32, #tpu.memory_space<vmem>>, vector<1x64xf32>,
    %cst_12 = arith.constant 0.000000e+00 : f32
    %20 = vector.broadcast %cst_12 : f32 to vector<4x632xf32>
    %c0_13 = arith.constant 0 : index
    %c0_14 = arith.constant 0 : index
    %21 = vector.load %arg2[%c0_13, %c0_14] : memref<4x16xf32, #tpu.memory_space<vmem>>, vector<4x1xf32>
    %c0_15 = arith.constant 0 : index
    %c0_16 = arith.constant 0 : index
    %22 = vector.load %arg15[%c0_15, %c0_16] : memref<4x647xf32, #tpu.memory_space<vmem>>, vector<1x632xf32>
    %23 = vector.broadcast %21 : vector<4x1xf32> to vector<4x632xf32>
    %24 = vector.broadcast %22 : vector<1x632xf32> to vector<4x632xf32>
    %25 = arith.mulf %23, %24 : vector<4x632xf32>
    %26 = arith.addf %20, %25 : vector<4x632xf32>
    %c0_17 = arith.constant 0 : index
    %c1 = arith.constant 1 : index
    %27 = vector.load %arg2[%c0_17, %c1] : memref<4x16xf32, #tpu.memory_space<vmem>>, vector<4x1xf32>
    %c0_18 = arith.constant 0 : index
    %c1_19 = arith.constant 1 : index
    %28 = vector.load %arg15[%c0_18, %c1_19] : memref<4x647xf32, #tpu.memory_space<vmem>>, vector<1x632xf32>
    %29 = vector.broadcast %27 : vector<4x1xf32> to vector<4x632xf32>
    %30 = vector.broadcast %28 : vector<1x632xf32> to vector<4x632xf32>
    %31 = arith.mulf %29, %30 : vector<4x632xf32>
    %32 = arith.addf %26, %31 : vector<4x632xf32>
    %c0_20 = arith.constant 0 : index
    %c2 = arith.constant 2 : index
    %33 = vector.load %arg2[%c0_20, %c2] : memref<4x16xf32, #tpu.memory_space<vmem>>, vector<4x1xf32>
    %c0_21 = arith.constant 0 : index
    %c2_22 = arith.constant 2 : index
    %34 = vector.load %arg15[%c0_21, %c2_22] : memref<4x647xf32, #tpu.memory_space<vmem>>, vector<1x632xf32>
    %35 = vector.broadcast %33 : vector<4x1xf32> to vector<4x632xf32>
    %36 = vector.broadcast %34 : vector<1x632xf32> to vector<4x632xf32>
    %37 = arith.mulf %35, %36 : vector<4x632xf32>
    %38 = arith.addf %32, %37 : vector<4x632xf32>
    %c0_23 = arith.constant 0 : index
    %c3 = arith.constant 3 : index
    %39 = vector.load %arg2[%c0_23, %c3] : memref<4x16xf32, #tpu.memory_space<vmem>>, vector<4x1xf32>
    %c0_24 = arith.constant 0 : index
    %c3_25 = arith.constant 3 : index
    %40 = vector.load %arg15[%c0_24, %c3_25] : memref<4x647xf32, #tpu.memory_space<vmem>>, vector<1x632xf32>
    %41 = vector.broadcast %39 : vector<4x1xf32> to vector<4x632xf32>
    %42 = vector.broadcast %40 : vector<1x632xf32> to vector<4x632xf32>
    %43 = arith.mulf %41, %42 : vector<4x632xf32>
    %44 = arith.addf %38, %43 : vector<4x632xf32>
    %c0_26 = arith.constant 0 : index
    %c4 = arith.constant 4 : index
    %45 = vector.load %arg2[%c0_26, %c4] : memref<4x16xf32, #tpu.memory_space<vmem>>, vector<4x1xf32>
    %c0_27 = arith.constant 0 : index
    %c4_28 = arith.constant 4 : index
    %46 = vector.load %arg15[%c0_27, %c4_28] : memref<4x647xf32, #tpu.memory_space<vmem>>, vector<1x632xf32>
    %47 = vector.broadcast %45 : vector<4x1xf32> to vector<4x632xf32>
    %48 = vector.broadcast %46 : vector<1x632xf32> to vector<4x632xf32>
    %49 = arith.mulf %47, %48 : vector<4x632xf32>
    %50 = arith.addf %44, %49 : vector<4x632xf32>
    %c0_29 = arith.constant 0 : index
    %c5 = arith.constant 5 : index
    %51 = vector.load %arg2[%c0_29, %c5] : memref<4x16xf32, #tpu.memory_space<vmem>>, vector<4x1xf32>
    %c0_30 = arith.constant 0 : index
    %c5_31 = arith.constant 5 : index
    %52 = vector.load %arg15[%c0_30, %c5_31] : memref<4x647xf32, #tpu.memory_space<vmem>>, vector<1x632xf32>
    %53 = vector.broadcast %51 : vector<4x1xf32> to vector<4x632xf32>
    %54 = vector.broadcast %52 : vector<1x632xf32> to vector<4x632xf32>
    %55 = arith.mulf %53, %54 : vector<4x632xf32>
    %56 = arith.addf %50, %55 : vector<4x632xf32>
    %c0_32 = arith.constant 0 : index
    %c6 = arith.constant 6 : index
    %57 = vector.load %arg2[%c0_32, %c6] : memref<4x16xf32, #tpu.memory_space<vmem>>, vector<4x1xf32>
    %c0_33 = arith.constant 0 : index
    %c6_34 = arith.constant 6 : index
    %58 = vector.load %arg15[%c0_33, %c6_34] : memref<4x647xf32, #tpu.memory_space<vmem>>, vector<1x632xf32>
    %59 = vector.broadcast %57 : vector<4x1xf32> to vector<4x632xf32>
    %60 = vector.broadcast %58 : vector<1x632xf32> to vector<4x632xf32>
    %61 = arith.mulf %59, %60 : vector<4x632xf32>
    %62 = arith.addf %56, %61 : vector<4x632xf32>
    %c0_35 = arith.constant 0 : index
    %c7 = arith.constant 7 : index
    %63 = vector.load %arg2[%c0_35, %c7] : memref<4x16xf32, #tpu.memory_space<vmem>>, vector<4x1xf32>
    %c0_36 = arith.constant 0 : index
    %c7_37 = arith.constant 7 : index
    %64 = vector.load %arg15[%c0_36, %c7_37] : memref<4x647xf32, #tpu.memory_space<vmem>>, vector<1x632xf32>
    %65 = vector.broadcast %63 : vector<4x1xf32> to vector<4x632xf32>
    %66 = vector.broadcast %64 : vector<1x632xf32> to vector<4x632xf32>
    %67 = arith.mulf %65, %66 : vector<4x632xf32>
    %68 = arith.addf %62, %67 : vector<4x632xf32>
    %c0_38 = arith.constant 0 : index
    %c8 = arith.constant 8 : index
    %69 = vector.load %arg2[%c0_38, %c8] : memref<4x16xf32, #tpu.memory_space<vmem>>, vector<4x1xf32>
    %c0_39 = arith.constant 0 : index
    %c8_40 = arith.constant 8 : index
    %70 = vector.load %arg15[%c0_39, %c8_40] : memref<4x647xf32, #tpu.memory_space<vmem>>, vector<1x632xf32>
    %71 = vector.broadcast %69 : vector<4x1xf32> to vector<4x632xf32>
    %72 = vector.broadcast %70 : vector<1x632xf32> to vector<4x632xf32>
    %73 = arith.mulf %71, %72 : vector<4x632xf32>
    %74 = arith.addf %68, %73 : vector<4x632xf32>
    %c0_41 = arith.constant 0 : index
    %c9 = arith.constant 9 : index
    %75 = vector.load %arg2[%c0_41, %c9] : memref<4x16xf32, #tpu.memory_space<vmem>>, vector<4x1xf32>
    %c0_42 = arith.constant 0 : index
    %c9_43 = arith.constant 9 : index
    %76 = vector.load %arg15[%c0_42, %c9_43] : memref<4x647xf32, #tpu.memory_space<vmem>>, vector<1x632xf32>
    %77 = vector.broadcast %75 : vector<4x1xf32> to vector<4x632xf32>
    %78 = vector.broadcast %76 : vector<1x632xf32> to vector<4x632xf32>
    %79 = arith.mulf %77, %78 : vector<4x632xf32>
    %80 = arith.addf %74, %79 : vector<4x632xf32>
    %c0_44 = arith.constant 0 : index
    %c10 = arith.constant 10 : index
    %81 = vector.load %arg2[%c0_44, %c10] : memref<4x16xf32, #tpu.memory_space<vmem>>, vector<4x1xf32>
    %c0_45 = arith.constant 0 : index
    %c10_46 = arith.constant 10 : index
    %82 = vector.load %arg15[%c0_45, %c10_46] : memref<4x647xf32, #tpu.memory_space<vmem>>, vector<1x632xf32>
    %83 = vector.broadcast %81 : vector<4x1xf32> to vector<4x632xf32>
    %84 = vector.broadcast %82 : vector<1x632xf32> to vector<4x632xf32>
    %85 = arith.mulf %83, %84 : vector<4x632xf32>
    %86 = arith.addf %80, %85 : vector<4x632xf32>
    %c0_47 = arith.constant 0 : index
    %c11 = arith.constant 11 : index
    %87 = vector.load %arg2[%c0_47, %c11] : memref<4x16xf32, #tpu.memory_space<vmem>>, vector<4x1xf32>
    %c0_48 = arith.constant 0 : index
    %c11_49 = arith.constant 11 : index
    %88 = vector.load %arg15[%c0_48, %c11_49] : memref<4x647xf32, #tpu.memory_space<vmem>>, vector<1x632xf32>
    %89 = vector.broadcast %87 : vector<4x1xf32> to vector<4x632xf32>
    %90 = vector.broadcast %88 : vector<1x632xf32> to vector<4x632xf32>
    %91 = arith.mulf %89, %90 : vector<4x632xf32>
    %92 = arith.addf %86, %91 : vector<4x632xf32>
    %c0_50 = arith.constant 0 : index
    %c12 = arith.constant 12 : index
    %93 = vector.load %arg2[%c0_50, %c12] : memref<4x16xf32, #tpu.memory_space<vmem>>, vector<4x1xf32>
    %c0_51 = arith.constant 0 : index
    %c12_52 = arith.constant 12 : index
    %94 = vector.load %arg15[%c0_51, %c12_52] : memref<4x647xf32, #tpu.memory_space<vmem>>, vector<1x632xf32>
    %95 = vector.broadcast %93 : vector<4x1xf32> to vector<4x632xf32>
    %96 = vector.broadcast %94 : vector<1x632xf32> to vector<4x632xf32>
    %97 = arith.mulf %95, %96 : vector<4x632xf32>
    %98 = arith.addf %92, %97 : vector<4x632xf32>
    %c0_53 = arith.constant 0 : index
    %c13 = arith.constant 13 : index
    %99 = vector.load %arg2[%c0_53, %c13] : memref<4x16xf32, #tpu.memory_space<vmem>>, vector<4x1xf32>
    %c0_54 = arith.constant 0 : index
    %c13_55 = arith.constant 13 : index
    %100 = vector.load %arg15[%c0_54, %c13_55] : memref<4x647xf32, #tpu.memory_space<vmem>>, vector<1x632xf32>
    %101 = vector.broadcast %99 : vector<4x1xf32> to vector<4x632xf32>
    %102 = vector.broadcast %100 : vector<1x632xf32> to vector<4x632xf32>
    %103 = arith.mulf %101, %102 : vector<4x632xf32>
    %104 = arith.addf %98, %103 : vector<4x632xf32>
    %c0_56 = arith.constant 0 : index
    %c14_57 = arith.constant 14 : index
    %105 = vector.load %arg2[%c0_56, %c14_57] : memref<4x16xf32, #tpu.memory_space<vmem>>, vector<4x1xf32>
    %c0_58 = arith.constant 0 : index
    %c14_59 = arith.constant 14 : index
    %106 = vector.load %arg15[%c0_58, %c14_59] : memref<4x647xf32, #tpu.memory_space<vmem>>, vector<1x632xf32>
    %107 = vector.broadcast %105 : vector<4x1xf32> to vector<4x632xf32>
    %108 = vector.broadcast %106 : vector<1x632xf32> to vector<4x632xf32>
    %109 = arith.mulf %107, %108 : vector<4x632xf32>
    %110 = arith.addf %104, %109 : vector<4x632xf32>
    %c0_60 = arith.constant 0 : index
    %c15 = arith.constant 15 : index
    %111 = vector.load %arg2[%c0_60, %c15] : memref<4x16xf32, #tpu.memory_space<vmem>>, vector<4x1xf32>
    %c0_61 = arith.constant 0 : index
    %c15_62 = arith.constant 15 : index
    %112 = vector.load %arg15[%c0_61, %c15_62] : memref<4x647xf32, #tpu.memory_space<vmem>>, vector<1x632xf32>
    %113 = vector.broadcast %111 : vector<4x1xf32> to vector<4x632xf32>
    %114 = vector.broadcast %112 : vector<1x632xf32> to vector<4x632xf32>
    %115 = arith.mulf %113, %114 : vector<4x632xf32>
    %116 = arith.addf %110, %115 : vector<4x632xf32>
    %c0_63 = arith.constant 0 : index
    %c0_64 = arith.constant 0 : index
    %117 = vector.load %arg3[%c0_63, %c0_64] : memref<4x1xf32, #tpu.memory_space<vmem>>, vector<4x1xf32>
    %118 = vector.broadcast %117 : vector<4x1xf32> to vector<4x632xf32>
    %119 = arith.addf %116, %118 : vector<4x632xf32>
    %cst_65 = arith.constant 0.000000e+00 : f32
    %120 = vector.broadcast %cst_65 : f32 to vector<4x632xf32>
    %121 = arith.cmpf ogt, %119, %120 : vector<4x632xf32>
    %cst_66 = arith.constant 0.000000e+00 : f32
    %122 = vector.broadcast %cst_66 : f32 to vector<4x632xf32>
    %123 = arith.minimumf %119, %122 : vector<4x632xf32>
    %124 = math.exp %123 : vector<4x632xf32>
    %cst_67 = arith.constant 1.000000e+00 : f32
    %125 = vector.broadcast %cst_67 : f32 to vector<4x632xf32>
    %126 = arith.subf %124, %125 : vector<4x632xf32>
    %127 = arith.select %121, %119, %126 : vector<4x632xi1>, vector<4x632xf32>
    %c0_68 = arith.constant 0 : index
    %c0_69 = arith.constant 0 : index
    %128 = vector.load %arg4[%c0_68, %c0_69] : memref<1x632xf32, #tpu.memory_space<vmem>>, vector<1x632xf32>
    %129 = vector.broadcast %128 : vector<1x632xf32> to vector<4x632xf32>
    %130 = arith.mulf %127, %129 : vector<4x632xf32>
    %c0_70 = arith.constant 0 : index
    %c7_71 = arith.constant 7 : index
    %131 = vector.load %arg15[%c0_70, %c7_71] : memref<4x647xf32, #tpu.memory_space<vmem>>, vector<4x632xf32>
    tpu.vector_store %arg15[%c0_70, %c7_71], %130 {strides = array<i32>} : memref<4x647xf32, #tpu.memory_space<vmem>>, vector<4x632xf32>,
    %cst_72 = arith.constant 0.000000e+00 : f32
    %132 = vector.broadcast %cst_72 : f32 to vector<8x632xf32>
    %c0_73 = arith.constant 0 : index
    %c0_74 = arith.constant 0 : index
    %133 = vector.load %arg5[%c0_73, %c0_74] : memref<8x64xf32, #tpu.memory_space<vmem>>, vector<8x4xf32>
    %c0_75 = arith.constant 0 : index
    %c0_76 = arith.constant 0 : index
    %134 = vector.load %arg15[%c0_75, %c0_76] : memref<4x647xf32, #tpu.memory_space<vmem>>, vector<4x632xf32>
    %cst_77 = arith.constant dense<0.000000e+00> : vector<8x632xf32>
    %135 = tpu.matmul %133, %134, %cst_77 {dimension_numbers = #tpu.dot_dimension_numbers<[1], [0], [0], [1], [0, 0, 1, 1], [], []>} : vector<8x4xf32>, vector<4x632xf32>, vector<8x632xf32> -> vector<8x632xf32>
    %136 = arith.addf %132, %135 : vector<8x632xf32>
    %c0_78 = arith.constant 0 : index
    %c4_79 = arith.constant 4 : index
    %137 = vector.load %arg5[%c0_78, %c4_79] : memref<8x64xf32, #tpu.memory_space<vmem>>, vector<8x4xf32>
    %c0_80 = arith.constant 0 : index
    %c1_81 = arith.constant 1 : index
    %138 = vector.load %arg15[%c0_80, %c1_81] : memref<4x647xf32, #tpu.memory_space<vmem>>, vector<4x632xf32>
    %cst_82 = arith.constant dense<0.000000e+00> : vector<8x632xf32>
    %139 = tpu.matmul %137, %138, %cst_82 {dimension_numbers = #tpu.dot_dimension_numbers<[1], [0], [0], [1], [0, 0, 1, 1], [], []>} : vector<8x4xf32>, vector<4x632xf32>, vector<8x632xf32> -> vector<8x632xf32>
    %140 = arith.addf %136, %139 : vector<8x632xf32>
    %c0_83 = arith.constant 0 : index
    %c8_84 = arith.constant 8 : index
    %141 = vector.load %arg5[%c0_83, %c8_84] : memref<8x64xf32, #tpu.memory_space<vmem>>, vector<8x4xf32>
    %c0_85 = arith.constant 0 : index
    %c2_86 = arith.constant 2 : index
    %142 = vector.load %arg15[%c0_85, %c2_86] : memref<4x647xf32, #tpu.memory_space<vmem>>, vector<4x632xf32>
    %cst_87 = arith.constant dense<0.000000e+00> : vector<8x632xf32>
    %143 = tpu.matmul %141, %142, %cst_87 {dimension_numbers = #tpu.dot_dimension_numbers<[1], [0], [0], [1], [0, 0, 1, 1], [], []>} : vector<8x4xf32>, vector<4x632xf32>, vector<8x632xf32> -> vector<8x632xf32>
    %144 = arith.addf %140, %143 : vector<8x632xf32>
    %c0_88 = arith.constant 0 : index
    %c12_89 = arith.constant 12 : index
    %145 = vector.load %arg5[%c0_88, %c12_89] : memref<8x64xf32, #tpu.memory_space<vmem>>, vector<8x4xf32>
    %c0_90 = arith.constant 0 : index
    %c3_91 = arith.constant 3 : index
    %146 = vector.load %arg15[%c0_90, %c3_91] : memref<4x647xf32, #tpu.memory_space<vmem>>, vector<4x632xf32>
    %cst_92 = arith.constant dense<0.000000e+00> : vector<8x632xf32>
    %147 = tpu.matmul %145, %146, %cst_92 {dimension_numbers = #tpu.dot_dimension_numbers<[1], [0], [0], [1], [0, 0, 1, 1], [], []>} : vector<8x4xf32>, vector<4x632xf32>, vector<8x632xf32> -> vector<8x632xf32>
    %148 = arith.addf %144, %147 : vector<8x632xf32>
    %c0_93 = arith.constant 0 : index
    %c16 = arith.constant 16 : index
    %149 = vector.load %arg5[%c0_93, %c16] : memref<8x64xf32, #tpu.memory_space<vmem>>, vector<8x4xf32>
    %c0_94 = arith.constant 0 : index
    %c4_95 = arith.constant 4 : index
    %150 = vector.load %arg15[%c0_94, %c4_95] : memref<4x647xf32, #tpu.memory_space<vmem>>, vector<4x632xf32>
    %cst_96 = arith.constant dense<0.000000e+00> : vector<8x632xf32>
    %151 = tpu.matmul %149, %150, %cst_96 {dimension_numbers = #tpu.dot_dimension_numbers<[1], [0], [0], [1], [0, 0, 1, 1], [], []>} : vector<8x4xf32>, vector<4x632xf32>, vector<8x632xf32> -> vector<8x632xf32>
    %152 = arith.addf %148, %151 : vector<8x632xf32>
    %c0_97 = arith.constant 0 : index
    %c20 = arith.constant 20 : index
    %153 = vector.load %arg5[%c0_97, %c20] : memref<8x64xf32, #tpu.memory_space<vmem>>, vector<8x4xf32>
    %c0_98 = arith.constant 0 : index
    %c5_99 = arith.constant 5 : index
    %154 = vector.load %arg15[%c0_98, %c5_99] : memref<4x647xf32, #tpu.memory_space<vmem>>, vector<4x632xf32>
    %cst_100 = arith.constant dense<0.000000e+00> : vector<8x632xf32>
    %155 = tpu.matmul %153, %154, %cst_100 {dimension_numbers = #tpu.dot_dimension_numbers<[1], [0], [0], [1], [0, 0, 1, 1], [], []>} : vector<8x4xf32>, vector<4x632xf32>, vector<8x632xf32> -> vector<8x632xf32>
    %156 = arith.addf %152, %155 : vector<8x632xf32>
    %c0_101 = arith.constant 0 : index
    %c24 = arith.constant 24 : index
    %157 = vector.load %arg5[%c0_101, %c24] : memref<8x64xf32, #tpu.memory_space<vmem>>, vector<8x4xf32>
    %c0_102 = arith.constant 0 : index
    %c6_103 = arith.constant 6 : index
    %158 = vector.load %arg15[%c0_102, %c6_103] : memref<4x647xf32, #tpu.memory_space<vmem>>, vector<4x632xf32>
    %cst_104 = arith.constant dense<0.000000e+00> : vector<8x632xf32>
    %159 = tpu.matmul %157, %158, %cst_104 {dimension_numbers = #tpu.dot_dimension_numbers<[1], [0], [0], [1], [0, 0, 1, 1], [], []>} : vector<8x4xf32>, vector<4x632xf32>, vector<8x632xf32> -> vector<8x632xf32>
    %160 = arith.addf %156, %159 : vector<8x632xf32>
    %c0_105 = arith.constant 0 : index
    %c28 = arith.constant 28 : index
    %161 = vector.load %arg5[%c0_105, %c28] : memref<8x64xf32, #tpu.memory_space<vmem>>, vector<8x4xf32>
    %c0_106 = arith.constant 0 : index
    %c7_107 = arith.constant 7 : index
    %162 = vector.load %arg15[%c0_106, %c7_107] : memref<4x647xf32, #tpu.memory_space<vmem>>, vector<4x632xf32>
    %cst_108 = arith.constant dense<0.000000e+00> : vector<8x632xf32>
    %163 = tpu.matmul %161, %162, %cst_108 {dimension_numbers = #tpu.dot_dimension_numbers<[1], [0], [0], [1], [0, 0, 1, 1], [], []>} : vector<8x4xf32>, vector<4x632xf32>, vector<8x632xf32> -> vector<8x632xf32>
    %164 = arith.addf %160, %163 : vector<8x632xf32>
    %c0_109 = arith.constant 0 : index
    %c32 = arith.constant 32 : index
    %165 = vector.load %arg5[%c0_109, %c32] : memref<8x64xf32, #tpu.memory_space<vmem>>, vector<8x4xf32>
    %c0_110 = arith.constant 0 : index
    %c8_111 = arith.constant 8 : index
    %166 = vector.load %arg15[%c0_110, %c8_111] : memref<4x647xf32, #tpu.memory_space<vmem>>, vector<4x632xf32>
    %cst_112 = arith.constant dense<0.000000e+00> : vector<8x632xf32>
    %167 = tpu.matmul %165, %166, %cst_112 {dimension_numbers = #tpu.dot_dimension_numbers<[1], [0], [0], [1], [0, 0, 1, 1], [], []>} : vector<8x4xf32>, vector<4x632xf32>, vector<8x632xf32> -> vector<8x632xf32>
    %168 = arith.addf %164, %167 : vector<8x632xf32>
    %c0_113 = arith.constant 0 : index
    %c36 = arith.constant 36 : index
    %169 = vector.load %arg5[%c0_113, %c36] : memref<8x64xf32, #tpu.memory_space<vmem>>, vector<8x4xf32>
    %c0_114 = arith.constant 0 : index
    %c9_115 = arith.constant 9 : index
    %170 = vector.load %arg15[%c0_114, %c9_115] : memref<4x647xf32, #tpu.memory_space<vmem>>, vector<4x632xf32>
    %cst_116 = arith.constant dense<0.000000e+00> : vector<8x632xf32>
    %171 = tpu.matmul %169, %170, %cst_116 {dimension_numbers = #tpu.dot_dimension_numbers<[1], [0], [0], [1], [0, 0, 1, 1], [], []>} : vector<8x4xf32>, vector<4x632xf32>, vector<8x632xf32> -> vector<8x632xf32>
    %172 = arith.addf %168, %171 : vector<8x632xf32>
    %c0_117 = arith.constant 0 : index
    %c40 = arith.constant 40 : index
    %173 = vector.load %arg5[%c0_117, %c40] : memref<8x64xf32, #tpu.memory_space<vmem>>, vector<8x4xf32>
    %c0_118 = arith.constant 0 : index
    %c10_119 = arith.constant 10 : index
    %174 = vector.load %arg15[%c0_118, %c10_119] : memref<4x647xf32, #tpu.memory_space<vmem>>, vector<4x632xf32>
    %cst_120 = arith.constant dense<0.000000e+00> : vector<8x632xf32>
    %175 = tpu.matmul %173, %174, %cst_120 {dimension_numbers = #tpu.dot_dimension_numbers<[1], [0], [0], [1], [0, 0, 1, 1], [], []>} : vector<8x4xf32>, vector<4x632xf32>, vector<8x632xf32> -> vector<8x632xf32>
    %176 = arith.addf %172, %175 : vector<8x632xf32>
    %c0_121 = arith.constant 0 : index
    %c44 = arith.constant 44 : index
    %177 = vector.load %arg5[%c0_121, %c44] : memref<8x64xf32, #tpu.memory_space<vmem>>, vector<8x4xf32>
    %c0_122 = arith.constant 0 : index
    %c11_123 = arith.constant 11 : index
    %178 = vector.load %arg15[%c0_122, %c11_123] : memref<4x647xf32, #tpu.memory_space<vmem>>, vector<4x632xf32>
    %cst_124 = arith.constant dense<0.000000e+00> : vector<8x632xf32>
    %179 = tpu.matmul %177, %178, %cst_124 {dimension_numbers = #tpu.dot_dimension_numbers<[1], [0], [0], [1], [0, 0, 1, 1], [], []>} : vector<8x4xf32>, vector<4x632xf32>, vector<8x632xf32> -> vector<8x632xf32>
    %180 = arith.addf %176, %179 : vector<8x632xf32>
    %c0_125 = arith.constant 0 : index
    %c48 = arith.constant 48 : index
    %181 = vector.load %arg5[%c0_125, %c48] : memref<8x64xf32, #tpu.memory_space<vmem>>, vector<8x4xf32>
    %c0_126 = arith.constant 0 : index
    %c12_127 = arith.constant 12 : index
    %182 = vector.load %arg15[%c0_126, %c12_127] : memref<4x647xf32, #tpu.memory_space<vmem>>, vector<4x632xf32>
    %cst_128 = arith.constant dense<0.000000e+00> : vector<8x632xf32>
    %183 = tpu.matmul %181, %182, %cst_128 {dimension_numbers = #tpu.dot_dimension_numbers<[1], [0], [0], [1], [0, 0, 1, 1], [], []>} : vector<8x4xf32>, vector<4x632xf32>, vector<8x632xf32> -> vector<8x632xf32>
    %184 = arith.addf %180, %183 : vector<8x632xf32>
    %c0_129 = arith.constant 0 : index
    %c52 = arith.constant 52 : index
    %185 = vector.load %arg5[%c0_129, %c52] : memref<8x64xf32, #tpu.memory_space<vmem>>, vector<8x4xf32>
    %c0_130 = arith.constant 0 : index
    %c13_131 = arith.constant 13 : index
    %186 = vector.load %arg15[%c0_130, %c13_131] : memref<4x647xf32, #tpu.memory_space<vmem>>, vector<4x632xf32>
    %cst_132 = arith.constant dense<0.000000e+00> : vector<8x632xf32>
    %187 = tpu.matmul %185, %186, %cst_132 {dimension_numbers = #tpu.dot_dimension_numbers<[1], [0], [0], [1], [0, 0, 1, 1], [], []>} : vector<8x4xf32>, vector<4x632xf32>, vector<8x632xf32> -> vector<8x632xf32>
    %188 = arith.addf %184, %187 : vector<8x632xf32>
    %c0_133 = arith.constant 0 : index
    %c56 = arith.constant 56 : index
    %189 = vector.load %arg5[%c0_133, %c56] : memref<8x64xf32, #tpu.memory_space<vmem>>, vector<8x4xf32>
    %c0_134 = arith.constant 0 : index
    %c14_135 = arith.constant 14 : index
    %190 = vector.load %arg15[%c0_134, %c14_135] : memref<4x647xf32, #tpu.memory_space<vmem>>, vector<4x632xf32>
    %cst_136 = arith.constant dense<0.000000e+00> : vector<8x632xf32>
    %191 = tpu.matmul %189, %190, %cst_136 {dimension_numbers = #tpu.dot_dimension_numbers<[1], [0], [0], [1], [0, 0, 1, 1], [], []>} : vector<8x4xf32>, vector<4x632xf32>, vector<8x632xf32> -> vector<8x632xf32>
    %192 = arith.addf %188, %191 : vector<8x632xf32>
    %c0_137 = arith.constant 0 : index
    %c60 = arith.constant 60 : index
    %193 = vector.load %arg5[%c0_137, %c60] : memref<8x64xf32, #tpu.memory_space<vmem>>, vector<8x4xf32>
    %c0_138 = arith.constant 0 : index
    %c15_139 = arith.constant 15 : index
    %194 = vector.load %arg15[%c0_138, %c15_139] : memref<4x647xf32, #tpu.memory_space<vmem>>, vector<4x632xf32>
    %cst_140 = arith.constant dense<0.000000e+00> : vector<8x632xf32>
    %195 = tpu.matmul %193, %194, %cst_140 {dimension_numbers = #tpu.dot_dimension_numbers<[1], [0], [0], [1], [0, 0, 1, 1], [], []>} : vector<8x4xf32>, vector<4x632xf32>, vector<8x632xf32> -> vector<8x632xf32>
    %196 = arith.addf %192, %195 : vector<8x632xf32>
    %197 = vector.extract_strided_slice %196 {offsets = [0, 7], sizes = [8, 64], strides = [1, 1]} : vector<8x632xf32> to vector<8x64xf32>
    %198 = vector.extract_strided_slice %196 {offsets = [0, 86], sizes = [8, 64], strides = [1, 1]} : vector<8x632xf32> to vector<8x64xf32>
    %199 = vector.extract_strided_slice %196 {offsets = [0, 165], sizes = [8, 64], strides = [1, 1]} : vector<8x632xf32> to vector<8x64xf32>
    %200 = vector.extract_strided_slice %196 {offsets = [0, 244], sizes = [8, 64], strides = [1, 1]} : vector<8x632xf32> to vector<8x64xf32>
    %201 = vector.extract_strided_slice %196 {offsets = [0, 323], sizes = [8, 64], strides = [1, 1]} : vector<8x632xf32> to vector<8x64xf32>
    %202 = vector.extract_strided_slice %196 {offsets = [0, 402], sizes = [8, 64], strides = [1, 1]} : vector<8x632xf32> to vector<8x64xf32>
    %203 = vector.extract_strided_slice %196 {offsets = [0, 481], sizes = [8, 64], strides = [1, 1]} : vector<8x632xf32> to vector<8x64xf32>
    %204 = vector.extract_strided_slice %196 {offsets = [0, 560], sizes = [8, 64], strides = [1, 1]} : vector<8x632xf32> to vector<8x64xf32>
    %205 = tpu.concatenate %197, %198, %199, %200, %201, %202, %203, %204 in 0 : vector<8x64xf32>, vector<8x64xf32>, vector<8x64xf32>, vector<8x64xf32>, vector<8x64xf32>, vector<8x64xf32>, vector<8x64xf32>, vector<8x64xf32> -> vector<64x64xf32>
    %c0_141 = arith.constant 0 : index
    %c0_142 = arith.constant 0 : index
    %206 = vector.load %arg6[%c0_141, %c0_142] : memref<32x64xf32, #tpu.memory_space<vmem>>, vector<32x64xf32>
    %cst_143 = arith.constant dense<0.000000e+00> : vector<32x64xf32>
    %207 = tpu.matmul %206, %205, %cst_143 {dimension_numbers = #tpu.dot_dimension_numbers<[1], [0], [0], [1], [0, 0, 1, 1], [], []>} : vector<32x64xf32>, vector<64x64xf32>, vector<32x64xf32> -> vector<32x64xf32>
    %c0_144 = arith.constant 0 : index
    %c0_145 = arith.constant 0 : index
    %208 = vector.load %arg7[%c0_144, %c0_145] : memref<32x1xf32, #tpu.memory_space<vmem>>, vector<32x1xf32>
    %209 = vector.broadcast %208 : vector<32x1xf32> to vector<32x64xf32>
    %210 = arith.addf %207, %209 : vector<32x64xf32>
    %cst_146 = arith.constant 0.000000e+00 : f32
    %211 = vector.broadcast %cst_146 : f32 to vector<32x64xf32>
    %212 = arith.cmpf ogt, %210, %211 : vector<32x64xf32>
    %cst_147 = arith.constant 0.000000e+00 : f32
    %213 = vector.broadcast %cst_147 : f32 to vector<32x64xf32>
    %214 = arith.minimumf %210, %213 : vector<32x64xf32>
    %215 = math.exp %214 : vector<32x64xf32>
    %cst_148 = arith.constant 1.000000e+00 : f32
    %216 = vector.broadcast %cst_148 : f32 to vector<32x64xf32>
    %217 = arith.subf %215, %216 : vector<32x64xf32>
    %218 = arith.select %212, %210, %217 : vector<32x64xi1>, vector<32x64xf32>
    %c0_149 = arith.constant 0 : index
    %c0_150 = arith.constant 0 : index
    %219 = vector.load %arg8[%c0_149, %c0_150] : memref<64x16xf32, #tpu.memory_space<vmem>>, vector<64x16xf32>
    %cst_151 = arith.constant dense<0.000000e+00> : vector<32x16xf32>
    %220 = tpu.matmul %218, %219, %cst_151 {dimension_numbers = #tpu.dot_dimension_numbers<[1], [0], [0], [1], [0, 0, 1, 1], [], []>} : vector<32x64xf32>, vector<64x16xf32>, vector<32x16xf32> -> vector<32x16xf32>
    %cst_152 = arith.constant 0.000000e+00 : f32
    %221 = vector.broadcast %cst_152 : f32 to vector<16x44xf32>
    %c0_153 = arith.constant 0 : index
    %c0_154 = arith.constant 0 : index
    %222 = vector.load %arg16[%c0_153, %c0_154] : memref<16x44xf32, #tpu.memory_space<vmem>>, vector<16x44xf32>
    tpu.vector_store %arg16[%c0_153, %c0_154], %221 {strides = array<i32>} : memref<16x44xf32, #tpu.memory_space<vmem>>, vector<16x44xf32>,
    %223 = vector.extract_strided_slice %220 {offsets = [0, 0], sizes = [1, 16], strides = [1, 1]} : vector<32x16xf32> to vector<1x16xf32>
    %c0_155 = arith.constant 0 : index
    %c14_156 = arith.constant 14 : index
    %224 = vector.load %arg16[%c0_155, %c14_156] : memref<16x44xf32, #tpu.memory_space<vmem>>, vector<1x16xf32>
    tpu.vector_store %arg16[%c0_155, %c14_156], %223 {strides = array<i32>} : memref<16x44xf32, #tpu.memory_space<vmem>>, vector<1x16xf32>,
    %225 = vector.extract_strided_slice %220 {offsets = [2, 0], sizes = [1, 16], strides = [1, 1]} : vector<32x16xf32> to vector<1x16xf32>
    %c1_157 = arith.constant 1 : index
    %c14_158 = arith.constant 14 : index
    %226 = vector.load %arg16[%c1_157, %c14_158] : memref<16x44xf32, #tpu.memory_space<vmem>>, vector<1x16xf32>
    tpu.vector_store %arg16[%c1_157, %c14_158], %225 {strides = array<i32>} : memref<16x44xf32, #tpu.memory_space<vmem>>, vector<1x16xf32>,
    %227 = vector.extract_strided_slice %220 {offsets = [4, 0], sizes = [1, 16], strides = [1, 1]} : vector<32x16xf32> to vector<1x16xf32>
    %c2_159 = arith.constant 2 : index
    %c14_160 = arith.constant 14 : index
    %228 = vector.load %arg16[%c2_159, %c14_160] : memref<16x44xf32, #tpu.memory_space<vmem>>, vector<1x16xf32>
    tpu.vector_store %arg16[%c2_159, %c14_160], %227 {strides = array<i32>} : memref<16x44xf32, #tpu.memory_space<vmem>>, vector<1x16xf32>,
    %229 = vector.extract_strided_slice %220 {offsets = [6, 0], sizes = [1, 16], strides = [1, 1]} : vector<32x16xf32> to vector<1x16xf32>
    %c3_161 = arith.constant 3 : index
    %c14_162 = arith.constant 14 : index
    %230 = vector.load %arg16[%c3_161, %c14_162] : memref<16x44xf32, #tpu.memory_space<vmem>>, vector<1x16xf32>
    tpu.vector_store %arg16[%c3_161, %c14_162], %229 {strides = array<i32>} : memref<16x44xf32, #tpu.memory_space<vmem>>, vector<1x16xf32>,
    %231 = vector.extract_strided_slice %220 {offsets = [8, 0], sizes = [1, 16], strides = [1, 1]} : vector<32x16xf32> to vector<1x16xf32>
    %c4_163 = arith.constant 4 : index
    %c14_164 = arith.constant 14 : index
    %232 = vector.load %arg16[%c4_163, %c14_164] : memref<16x44xf32, #tpu.memory_space<vmem>>, vector<1x16xf32>
    tpu.vector_store %arg16[%c4_163, %c14_164], %231 {strides = array<i32>} : memref<16x44xf32, #tpu.memory_space<vmem>>, vector<1x16xf32>,
    %233 = vector.extract_strided_slice %220 {offsets = [10, 0], sizes = [1, 16], strides = [1, 1]} : vector<32x16xf32> to vector<1x16xf32>
    %c5_165 = arith.constant 5 : index
    %c14_166 = arith.constant 14 : index
    %234 = vector.load %arg16[%c5_165, %c14_166] : memref<16x44xf32, #tpu.memory_space<vmem>>, vector<1x16xf32>
    tpu.vector_store %arg16[%c5_165, %c14_166], %233 {strides = array<i32>} : memref<16x44xf32, #tpu.memory_space<vmem>>, vector<1x16xf32>,
    %235 = vector.extract_strided_slice %220 {offsets = [12, 0], sizes = [1, 16], strides = [1, 1]} : vector<32x16xf32> to vector<1x16xf32>
    %c6_167 = arith.constant 6 : index
    %c14_168 = arith.constant 14 : index
    %236 = vector.load %arg16[%c6_167, %c14_168] : memref<16x44xf32, #tpu.memory_space<vmem>>, vector<1x16xf32>
    tpu.vector_store %arg16[%c6_167, %c14_168], %235 {strides = array<i32>} : memref<16x44xf32, #tpu.memory_space<vmem>>, vector<1x16xf32>,
    %237 = vector.extract_strided_slice %220 {offsets = [14, 0], sizes = [1, 16], strides = [1, 1]} : vector<32x16xf32> to vector<1x16xf32>
    %c7_169 = arith.constant 7 : index
    %c14_170 = arith.constant 14 : index
    %238 = vector.load %arg16[%c7_169, %c14_170] : memref<16x44xf32, #tpu.memory_space<vmem>>, vector<1x16xf32>
    tpu.vector_store %arg16[%c7_169, %c14_170], %237 {strides = array<i32>} : memref<16x44xf32, #tpu.memory_space<vmem>>, vector<1x16xf32>,
    %239 = vector.extract_strided_slice %220 {offsets = [16, 0], sizes = [1, 16], strides = [1, 1]} : vector<32x16xf32> to vector<1x16xf32>
    %c8_171 = arith.constant 8 : index
    %c14_172 = arith.constant 14 : index
    %240 = vector.load %arg16[%c8_171, %c14_172] : memref<16x44xf32, #tpu.memory_space<vmem>>, vector<1x16xf32>
    tpu.vector_store %arg16[%c8_171, %c14_172], %239 {strides = array<i32>} : memref<16x44xf32, #tpu.memory_space<vmem>>, vector<1x16xf32>,
    %241 = vector.extract_strided_slice %220 {offsets = [18, 0], sizes = [1, 16], strides = [1, 1]} : vector<32x16xf32> to vector<1x16xf32>
    %c9_173 = arith.constant 9 : index
    %c14_174 = arith.constant 14 : index
    %242 = vector.load %arg16[%c9_173, %c14_174] : memref<16x44xf32, #tpu.memory_space<vmem>>, vector<1x16xf32>
    tpu.vector_store %arg16[%c9_173, %c14_174], %241 {strides = array<i32>} : memref<16x44xf32, #tpu.memory_space<vmem>>, vector<1x16xf32>,
    %243 = vector.extract_strided_slice %220 {offsets = [20, 0], sizes = [1, 16], strides = [1, 1]} : vector<32x16xf32> to vector<1x16xf32>
    %c10_175 = arith.constant 10 : index
    %c14_176 = arith.constant 14 : index
    %244 = vector.load %arg16[%c10_175, %c14_176] : memref<16x44xf32, #tpu.memory_space<vmem>>, vector<1x16xf32>
    tpu.vector_store %arg16[%c10_175, %c14_176], %243 {strides = array<i32>} : memref<16x44xf32, #tpu.memory_space<vmem>>, vector<1x16xf32>,
    %245 = vector.extract_strided_slice %220 {offsets = [22, 0], sizes = [1, 16], strides = [1, 1]} : vector<32x16xf32> to vector<1x16xf32>
    %c11_177 = arith.constant 11 : index
    %c14_178 = arith.constant 14 : index
    %246 = vector.load %arg16[%c11_177, %c14_178] : memref<16x44xf32, #tpu.memory_space<vmem>>, vector<1x16xf32>
    tpu.vector_store %arg16[%c11_177, %c14_178], %245 {strides = array<i32>} : memref<16x44xf32, #tpu.memory_space<vmem>>, vector<1x16xf32>,
    %247 = vector.extract_strided_slice %220 {offsets = [24, 0], sizes = [1, 16], strides = [1, 1]} : vector<32x16xf32> to vector<1x16xf32>
    %c12_179 = arith.constant 12 : index
    %c14_180 = arith.constant 14 : index
    %248 = vector.load %arg16[%c12_179, %c14_180] : memref<16x44xf32, #tpu.memory_space<vmem>>, vector<1x16xf32>
    tpu.vector_store %arg16[%c12_179, %c14_180], %247 {strides = array<i32>} : memref<16x44xf32, #tpu.memory_space<vmem>>, vector<1x16xf32>,
    %249 = vector.extract_strided_slice %220 {offsets = [26, 0], sizes = [1, 16], strides = [1, 1]} : vector<32x16xf32> to vector<1x16xf32>
    %c13_181 = arith.constant 13 : index
    %c14_182 = arith.constant 14 : index
    %250 = vector.load %arg16[%c13_181, %c14_182] : memref<16x44xf32, #tpu.memory_space<vmem>>, vector<1x16xf32>
    tpu.vector_store %arg16[%c13_181, %c14_182], %249 {strides = array<i32>} : memref<16x44xf32, #tpu.memory_space<vmem>>, vector<1x16xf32>,
    %251 = vector.extract_strided_slice %220 {offsets = [28, 0], sizes = [1, 16], strides = [1, 1]} : vector<32x16xf32> to vector<1x16xf32>
    %c14_183 = arith.constant 14 : index
    %c14_184 = arith.constant 14 : index
    %252 = vector.load %arg16[%c14_183, %c14_184] : memref<16x44xf32, #tpu.memory_space<vmem>>, vector<1x16xf32>
    tpu.vector_store %arg16[%c14_183, %c14_184], %251 {strides = array<i32>} : memref<16x44xf32, #tpu.memory_space<vmem>>, vector<1x16xf32>,
    %253 = vector.extract_strided_slice %220 {offsets = [30, 0], sizes = [1, 16], strides = [1, 1]} : vector<32x16xf32> to vector<1x16xf32>
    %c15_185 = arith.constant 15 : index
    %c14_186 = arith.constant 14 : index
    %254 = vector.load %arg16[%c15_185, %c14_186] : memref<16x44xf32, #tpu.memory_space<vmem>>, vector<1x16xf32>
    tpu.vector_store %arg16[%c15_185, %c14_186], %253 {strides = array<i32>} : memref<16x44xf32, #tpu.memory_space<vmem>>, vector<1x16xf32>,
    %cst_187 = arith.constant 0.000000e+00 : f32
    %255 = vector.broadcast %cst_187 : f32 to vector<8x30xf32>
    %c0_188 = arith.constant 0 : index
    %c0_189 = arith.constant 0 : index
    %256 = vector.load %arg9[%c0_188, %c0_189] : memref<8x128xf32, #tpu.memory_space<vmem>>, vector<8x16xf32>
    %c0_190 = arith.constant 0 : index
    %c0_191 = arith.constant 0 : index
    %257 = vector.load %arg16[%c0_190, %c0_191] : memref<16x44xf32, #tpu.memory_space<vmem>>, vector<16x30xf32>
    %cst_192 = arith.constant dense<0.000000e+00> : vector<8x30xf32>
    %258 = tpu.matmul %256, %257, %cst_192 {dimension_numbers = #tpu.dot_dimension_numbers<[1], [0], [0], [1], [0, 0, 1, 1], [], []>} : vector<8x16xf32>, vector<16x30xf32>, vector<8x30xf32> -> vector<8x30xf32>
    %259 = arith.addf %255, %258 : vector<8x30xf32>
    %c0_193 = arith.constant 0 : index
    %c16_194 = arith.constant 16 : index
    %260 = vector.load %arg9[%c0_193, %c16_194] : memref<8x128xf32, #tpu.memory_space<vmem>>, vector<8x16xf32>
    %c0_195 = arith.constant 0 : index
    %c2_196 = arith.constant 2 : index
    %261 = vector.load %arg16[%c0_195, %c2_196] : memref<16x44xf32, #tpu.memory_space<vmem>>, vector<16x30xf32>
    %cst_197 = arith.constant dense<0.000000e+00> : vector<8x30xf32>
    %262 = tpu.matmul %260, %261, %cst_197 {dimension_numbers = #tpu.dot_dimension_numbers<[1], [0], [0], [1], [0, 0, 1, 1], [], []>} : vector<8x16xf32>, vector<16x30xf32>, vector<8x30xf32> -> vector<8x30xf32>
    %263 = arith.addf %259, %262 : vector<8x30xf32>
    %c0_198 = arith.constant 0 : index
    %c32_199 = arith.constant 32 : index
    %264 = vector.load %arg9[%c0_198, %c32_199] : memref<8x128xf32, #tpu.memory_space<vmem>>, vector<8x16xf32>
    %c0_200 = arith.constant 0 : index
    %c4_201 = arith.constant 4 : index
    %265 = vector.load %arg16[%c0_200, %c4_201] : memref<16x44xf32, #tpu.memory_space<vmem>>, vector<16x30xf32>
    %cst_202 = arith.constant dense<0.000000e+00> : vector<8x30xf32>
    %266 = tpu.matmul %264, %265, %cst_202 {dimension_numbers = #tpu.dot_dimension_numbers<[1], [0], [0], [1], [0, 0, 1, 1], [], []>} : vector<8x16xf32>, vector<16x30xf32>, vector<8x30xf32> -> vector<8x30xf32>
    %267 = arith.addf %263, %266 : vector<8x30xf32>
    %c0_203 = arith.constant 0 : index
    %c48_204 = arith.constant 48 : index
    %268 = vector.load %arg9[%c0_203, %c48_204] : memref<8x128xf32, #tpu.memory_space<vmem>>, vector<8x16xf32>
    %c0_205 = arith.constant 0 : index
    %c6_206 = arith.constant 6 : index
    %269 = vector.load %arg16[%c0_205, %c6_206] : memref<16x44xf32, #tpu.memory_space<vmem>>, vector<16x30xf32>
    %cst_207 = arith.constant dense<0.000000e+00> : vector<8x30xf32>
    %270 = tpu.matmul %268, %269, %cst_207 {dimension_numbers = #tpu.dot_dimension_numbers<[1], [0], [0], [1], [0, 0, 1, 1], [], []>} : vector<8x16xf32>, vector<16x30xf32>, vector<8x30xf32> -> vector<8x30xf32>
    %271 = arith.addf %267, %270 : vector<8x30xf32>
    %c0_208 = arith.constant 0 : index
    %c64 = arith.constant 64 : index
    %272 = vector.load %arg9[%c0_208, %c64] : memref<8x128xf32, #tpu.memory_space<vmem>>, vector<8x16xf32>
    %c0_209 = arith.constant 0 : index
    %c8_210 = arith.constant 8 : index
    %273 = vector.load %arg16[%c0_209, %c8_210] : memref<16x44xf32, #tpu.memory_space<vmem>>, vector<16x30xf32>
    %cst_211 = arith.constant dense<0.000000e+00> : vector<8x30xf32>
    %274 = tpu.matmul %272, %273, %cst_211 {dimension_numbers = #tpu.dot_dimension_numbers<[1], [0], [0], [1], [0, 0, 1, 1], [], []>} : vector<8x16xf32>, vector<16x30xf32>, vector<8x30xf32> -> vector<8x30xf32>
    %275 = arith.addf %271, %274 : vector<8x30xf32>
    %c0_212 = arith.constant 0 : index
    %c80 = arith.constant 80 : index
    %276 = vector.load %arg9[%c0_212, %c80] : memref<8x128xf32, #tpu.memory_space<vmem>>, vector<8x16xf32>
    %c0_213 = arith.constant 0 : index
    %c10_214 = arith.constant 10 : index
    %277 = vector.load %arg16[%c0_213, %c10_214] : memref<16x44xf32, #tpu.memory_space<vmem>>, vector<16x30xf32>
    %cst_215 = arith.constant dense<0.000000e+00> : vector<8x30xf32>
    %278 = tpu.matmul %276, %277, %cst_215 {dimension_numbers = #tpu.dot_dimension_numbers<[1], [0], [0], [1], [0, 0, 1, 1], [], []>} : vector<8x16xf32>, vector<16x30xf32>, vector<8x30xf32> -> vector<8x30xf32>
    %279 = arith.addf %275, %278 : vector<8x30xf32>
    %c0_216 = arith.constant 0 : index
    %c96 = arith.constant 96 : index
    %280 = vector.load %arg9[%c0_216, %c96] : memref<8x128xf32, #tpu.memory_space<vmem>>, vector<8x16xf32>
    %c0_217 = arith.constant 0 : index
    %c12_218 = arith.constant 12 : index
    %281 = vector.load %arg16[%c0_217, %c12_218] : memref<16x44xf32, #tpu.memory_space<vmem>>, vector<16x30xf32>
    %cst_219 = arith.constant dense<0.000000e+00> : vector<8x30xf32>
    %282 = tpu.matmul %280, %281, %cst_219 {dimension_numbers = #tpu.dot_dimension_numbers<[1], [0], [0], [1], [0, 0, 1, 1], [], []>} : vector<8x16xf32>, vector<16x30xf32>, vector<8x30xf32> -> vector<8x30xf32>
    %283 = arith.addf %279, %282 : vector<8x30xf32>
    %c0_220 = arith.constant 0 : index
    %c112 = arith.constant 112 : index
    %284 = vector.load %arg9[%c0_220, %c112] : memref<8x128xf32, #tpu.memory_space<vmem>>, vector<8x16xf32>
    %c0_221 = arith.constant 0 : index
    %c14_222 = arith.constant 14 : index
    %285 = vector.load %arg16[%c0_221, %c14_222] : memref<16x44xf32, #tpu.memory_space<vmem>>, vector<16x30xf32>
    %cst_223 = arith.constant dense<0.000000e+00> : vector<8x30xf32>
    %286 = tpu.matmul %284, %285, %cst_223 {dimension_numbers = #tpu.dot_dimension_numbers<[1], [0], [0], [1], [0, 0, 1, 1], [], []>} : vector<8x16xf32>, vector<16x30xf32>, vector<8x30xf32> -> vector<8x30xf32>
    %287 = arith.addf %283, %286 : vector<8x30xf32>
    %c0_224 = arith.constant 0 : index
    %c0_225 = arith.constant 0 : index
    %288 = vector.load %arg10[%c0_224, %c0_225] : memref<8x1xf32, #tpu.memory_space<vmem>>, vector<8x1xf32>
    %289 = vector.broadcast %288 : vector<8x1xf32> to vector<8x30xf32>
    %290 = arith.addf %287, %289 : vector<8x30xf32>
    %cst_226 = arith.constant 0.000000e+00 : f32
    %291 = vector.broadcast %cst_226 : f32 to vector<8x72xf32>
    %c0_227 = arith.constant 0 : index
    %c0_228 = arith.constant 0 : index
    %292 = vector.load %arg17[%c0_227, %c0_228] : memref<8x72xf32, #tpu.memory_space<vmem>>, vector<8x72xf32>
    tpu.vector_store %arg17[%c0_227, %c0_228], %291 {strides = array<i32>} : memref<8x72xf32, #tpu.memory_space<vmem>>, vector<8x72xf32>,
    %293 = vector.extract_strided_slice %290 {offsets = [0, 7], sizes = [8, 16], strides = [1, 1]} : vector<8x30xf32> to vector<8x16xf32>
    %c0_229 = arith.constant 0 : index
    %c28_230 = arith.constant 28 : index
    %294 = vector.load %arg17[%c0_229, %c28_230] : memref<8x72xf32, #tpu.memory_space<vmem>>, vector<8x16xf32>
    tpu.vector_store %arg17[%c0_229, %c28_230], %293 {strides = array<i32>} : memref<8x72xf32, #tpu.memory_space<vmem>>, vector<8x16xf32>,
    %cst_231 = arith.constant 0.000000e+00 : f32
    %295 = vector.broadcast %cst_231 : f32 to vector<4x44xf32>
    %c0_232 = arith.constant 0 : index
    %c0_233 = arith.constant 0 : index
    %296 = vector.load %arg11[%c0_232, %c0_233] : memref<4x64xf32, #tpu.memory_space<vmem>>, vector<4x8xf32>
    %c0_234 = arith.constant 0 : index
    %c0_235 = arith.constant 0 : index
    %297 = vector.load %arg17[%c0_234, %c0_235] : memref<8x72xf32, #tpu.memory_space<vmem>>, vector<8x44xf32>
    %cst_236 = arith.constant dense<0.000000e+00> : vector<4x44xf32>
    %298 = tpu.matmul %296, %297, %cst_236 {dimension_numbers = #tpu.dot_dimension_numbers<[1], [0], [0], [1], [0, 0, 1, 1], [], []>} : vector<4x8xf32>, vector<8x44xf32>, vector<4x44xf32> -> vector<4x44xf32>
    %299 = arith.addf %295, %298 : vector<4x44xf32>
    %c0_237 = arith.constant 0 : index
    %c8_238 = arith.constant 8 : index
    %300 = vector.load %arg11[%c0_237, %c8_238] : memref<4x64xf32, #tpu.memory_space<vmem>>, vector<4x8xf32>
    %c0_239 = arith.constant 0 : index
    %c4_240 = arith.constant 4 : index
    %301 = vector.load %arg17[%c0_239, %c4_240] : memref<8x72xf32, #tpu.memory_space<vmem>>, vector<8x44xf32>
    %cst_241 = arith.constant dense<0.000000e+00> : vector<4x44xf32>
    %302 = tpu.matmul %300, %301, %cst_241 {dimension_numbers = #tpu.dot_dimension_numbers<[1], [0], [0], [1], [0, 0, 1, 1], [], []>} : vector<4x8xf32>, vector<8x44xf32>, vector<4x44xf32> -> vector<4x44xf32>
    %303 = arith.addf %299, %302 : vector<4x44xf32>
    %c0_242 = arith.constant 0 : index
    %c16_243 = arith.constant 16 : index
    %304 = vector.load %arg11[%c0_242, %c16_243] : memref<4x64xf32, #tpu.memory_space<vmem>>, vector<4x8xf32>
    %c0_244 = arith.constant 0 : index
    %c8_245 = arith.constant 8 : index
    %305 = vector.load %arg17[%c0_244, %c8_245] : memref<8x72xf32, #tpu.memory_space<vmem>>, vector<8x44xf32>
    %cst_246 = arith.constant dense<0.000000e+00> : vector<4x44xf32>
    %306 = tpu.matmul %304, %305, %cst_246 {dimension_numbers = #tpu.dot_dimension_numbers<[1], [0], [0], [1], [0, 0, 1, 1], [], []>} : vector<4x8xf32>, vector<8x44xf32>, vector<4x44xf32> -> vector<4x44xf32>
    %307 = arith.addf %303, %306 : vector<4x44xf32>
    %c0_247 = arith.constant 0 : index
    %c24_248 = arith.constant 24 : index
    %308 = vector.load %arg11[%c0_247, %c24_248] : memref<4x64xf32, #tpu.memory_space<vmem>>, vector<4x8xf32>
    %c0_249 = arith.constant 0 : index
    %c12_250 = arith.constant 12 : index
    %309 = vector.load %arg17[%c0_249, %c12_250] : memref<8x72xf32, #tpu.memory_space<vmem>>, vector<8x44xf32>
    %cst_251 = arith.constant dense<0.000000e+00> : vector<4x44xf32>
    %310 = tpu.matmul %308, %309, %cst_251 {dimension_numbers = #tpu.dot_dimension_numbers<[1], [0], [0], [1], [0, 0, 1, 1], [], []>} : vector<4x8xf32>, vector<8x44xf32>, vector<4x44xf32> -> vector<4x44xf32>
    %311 = arith.addf %307, %310 : vector<4x44xf32>
    %c0_252 = arith.constant 0 : index
    %c32_253 = arith.constant 32 : index
    %312 = vector.load %arg11[%c0_252, %c32_253] : memref<4x64xf32, #tpu.memory_space<vmem>>, vector<4x8xf32>
    %c0_254 = arith.constant 0 : index
    %c16_255 = arith.constant 16 : index
    %313 = vector.load %arg17[%c0_254, %c16_255] : memref<8x72xf32, #tpu.memory_space<vmem>>, vector<8x44xf32>
    %cst_256 = arith.constant dense<0.000000e+00> : vector<4x44xf32>
    %314 = tpu.matmul %312, %313, %cst_256 {dimension_numbers = #tpu.dot_dimension_numbers<[1], [0], [0], [1], [0, 0, 1, 1], [], []>} : vector<4x8xf32>, vector<8x44xf32>, vector<4x44xf32> -> vector<4x44xf32>
    %315 = arith.addf %311, %314 : vector<4x44xf32>
    %c0_257 = arith.constant 0 : index
    %c40_258 = arith.constant 40 : index
    %316 = vector.load %arg11[%c0_257, %c40_258] : memref<4x64xf32, #tpu.memory_space<vmem>>, vector<4x8xf32>
    %c0_259 = arith.constant 0 : index
    %c20_260 = arith.constant 20 : index
    %317 = vector.load %arg17[%c0_259, %c20_260] : memref<8x72xf32, #tpu.memory_space<vmem>>, vector<8x44xf32>
    %cst_261 = arith.constant dense<0.000000e+00> : vector<4x44xf32>
    %318 = tpu.matmul %316, %317, %cst_261 {dimension_numbers = #tpu.dot_dimension_numbers<[1], [0], [0], [1], [0, 0, 1, 1], [], []>} : vector<4x8xf32>, vector<8x44xf32>, vector<4x44xf32> -> vector<4x44xf32>
    %319 = arith.addf %315, %318 : vector<4x44xf32>
    %c0_262 = arith.constant 0 : index
    %c48_263 = arith.constant 48 : index
    %320 = vector.load %arg11[%c0_262, %c48_263] : memref<4x64xf32, #tpu.memory_space<vmem>>, vector<4x8xf32>
    %c0_264 = arith.constant 0 : index
    %c24_265 = arith.constant 24 : index
    %321 = vector.load %arg17[%c0_264, %c24_265] : memref<8x72xf32, #tpu.memory_space<vmem>>, vector<8x44xf32>
    %cst_266 = arith.constant dense<0.000000e+00> : vector<4x44xf32>
    %322 = tpu.matmul %320, %321, %cst_266 {dimension_numbers = #tpu.dot_dimension_numbers<[1], [0], [0], [1], [0, 0, 1, 1], [], []>} : vector<4x8xf32>, vector<8x44xf32>, vector<4x44xf32> -> vector<4x44xf32>
    %323 = arith.addf %319, %322 : vector<4x44xf32>
    %c0_267 = arith.constant 0 : index
    %c56_268 = arith.constant 56 : index
    %324 = vector.load %arg11[%c0_267, %c56_268] : memref<4x64xf32, #tpu.memory_space<vmem>>, vector<4x8xf32>
    %c0_269 = arith.constant 0 : index
    %c28_270 = arith.constant 28 : index
    %325 = vector.load %arg17[%c0_269, %c28_270] : memref<8x72xf32, #tpu.memory_space<vmem>>, vector<8x44xf32>
    %cst_271 = arith.constant dense<0.000000e+00> : vector<4x44xf32>
    %326 = tpu.matmul %324, %325, %cst_271 {dimension_numbers = #tpu.dot_dimension_numbers<[1], [0], [0], [1], [0, 0, 1, 1], [], []>} : vector<4x8xf32>, vector<8x44xf32>, vector<4x44xf32> -> vector<4x44xf32>
    %327 = arith.addf %323, %326 : vector<4x44xf32>
    %c0_272 = arith.constant 0 : index
    %c0_273 = arith.constant 0 : index
    %328 = vector.load %arg12[%c0_272, %c0_273] : memref<4x1xf32, #tpu.memory_space<vmem>>, vector<4x1xf32>
    %329 = vector.broadcast %328 : vector<4x1xf32> to vector<4x44xf32>
    %330 = arith.addf %327, %329 : vector<4x44xf32>
    %cst_274 = arith.constant 0.000000e+00 : f32
    %331 = vector.broadcast %cst_274 : f32 to vector<4x44xf32>
    %332 = arith.cmpf ogt, %330, %331 : vector<4x44xf32>
    %cst_275 = arith.constant 0.000000e+00 : f32
    %333 = vector.broadcast %cst_275 : f32 to vector<4x44xf32>
    %334 = arith.minimumf %330, %333 : vector<4x44xf32>
    %335 = math.exp %334 : vector<4x44xf32>
    %cst_276 = arith.constant 1.000000e+00 : f32
    %336 = vector.broadcast %cst_276 : f32 to vector<4x44xf32>
    %337 = arith.subf %335, %336 : vector<4x44xf32>
    %338 = arith.select %332, %330, %337 : vector<4x44xi1>, vector<4x44xf32>
    %339 = vector.extract_strided_slice %338 {offsets = [0, 14], sizes = [1, 16], strides = [1, 1]} : vector<4x44xf32> to vector<1x16xf32>
    %340 = vector.extract_strided_slice %338 {offsets = [1, 14], sizes = [1, 16], strides = [1, 1]} : vector<4x44xf32> to vector<1x16xf32>
    %341 = vector.extract_strided_slice %338 {offsets = [2, 14], sizes = [1, 16], strides = [1, 1]} : vector<4x44xf32> to vector<1x16xf32>
    %342 = vector.extract_strided_slice %338 {offsets = [3, 14], sizes = [1, 16], strides = [1, 1]} : vector<4x44xf32> to vector<1x16xf32>
    %343 = tpu.concatenate %339, %340, %341, %342 in 1 : vector<1x16xf32>, vector<1x16xf32>, vector<1x16xf32>, vector<1x16xf32> -> vector<1x64xf32>
    %c0_277 = arith.constant 0 : index
    %c0_278 = arith.constant 0 : index
    %344 = vector.load %arg13[%c0_277, %c0_278] : memref<64x2xf32, #tpu.memory_space<vmem>>, vector<64x2xf32>
    %cst_279 = arith.constant dense<0.000000e+00> : vector<1x2xf32>
    %345 = tpu.matmul %343, %344, %cst_279 {dimension_numbers = #tpu.dot_dimension_numbers<[1], [0], [0], [1], [0, 0, 1, 1], [], []>} : vector<1x64xf32>, vector<64x2xf32>, vector<1x2xf32> -> vector<1x2xf32>
    %c0_280 = arith.constant 0 : index
    %c0_281 = arith.constant 0 : index
    %c0_282 = arith.constant 0 : index
    %346 = vector.load %arg14[%c0_280, %c0_281, %c0_282] : memref<1x1x2xf32, #tpu.memory_space<vmem>>, vector<1x1x2xf32>
    %347 = vector.shape_cast %346 : vector<1x1x2xf32> to vector<1x2xf32>
    %348 = vector.shape_cast %345 : vector<1x2xf32> to vector<1x1x2xf32>
    tpu.vector_store %arg14[%c0_280, %c0_281, %c0_282], %348 {strides = array<i32>} : memref<1x1x2xf32, #tpu.memory_space<vmem>>, vector<1x1x2xf32>,
    return
  }
  func.func @transform_0(%arg0: i32) -> (i32, i32, i32) {
    %c0_i32 = arith.constant 0 : i32
    %c0_i32_0 = arith.constant 0 : i32
    %c0_i32_1 = arith.constant 0 : i32
    return %arg0, %c0_i32, %c0_i32_0 : i32, i32, i32
  }
  func.func @transform_1(%arg0: i32) -> (i32, i32) {
    %c0_i32 = arith.constant 0 : i32
    %c0_i32_0 = arith.constant 0 : i32
    %c0_i32_1 = arith.constant 0 : i32
    return %c0_i32, %c0_i32_0 : i32, i32
  }
  func.func @transform_2(%arg0: i32) -> (i32, i32) {
    %c0_i32 = arith.constant 0 : i32
    %c0_i32_0 = arith.constant 0 : i32
    %c0_i32_1 = arith.constant 0 : i32
    return %c0_i32, %c0_i32_0 : i32, i32
  }
  func.func @transform_3(%arg0: i32) -> (i32, i32) {
    %c0_i32 = arith.constant 0 : i32
    %c0_i32_0 = arith.constant 0 : i32
    %c0_i32_1 = arith.constant 0 : i32
    return %c0_i32, %c0_i32_0 : i32, i32
  }
  func.func @transform_4(%arg0: i32) -> (i32, i32) {
    %c0_i32 = arith.constant 0 : i32
    %c0_i32_0 = arith.constant 0 : i32
    %c0_i32_1 = arith.constant 0 : i32
    return %c0_i32, %c0_i32_0 : i32, i32
  }
  func.func @transform_5(%arg0: i32) -> (i32, i32) {
    %c0_i32 = arith.constant 0 : i32
    %c0_i32_0 = arith.constant 0 : i32
    %c0_i32_1 = arith.constant 0 : i32
    return %c0_i32, %c0_i32_0 : i32, i32
  }
  func.func @transform_6(%arg0: i32) -> (i32, i32) {
    %c0_i32 = arith.constant 0 : i32
    %c0_i32_0 = arith.constant 0 : i32
    %c0_i32_1 = arith.constant 0 : i32
    return %c0_i32, %c0_i32_0 : i32, i32
  }
  func.func @transform_7(%arg0: i32) -> (i32, i32) {
    %c0_i32 = arith.constant 0 : i32
    %c0_i32_0 = arith.constant 0 : i32
    %c0_i32_1 = arith.constant 0 : i32
    return %c0_i32, %c0_i32_0 : i32, i32
  }
  func.func @transform_8(%arg0: i32) -> (i32, i32) {
    %c0_i32 = arith.constant 0 : i32
    %c0_i32_0 = arith.constant 0 : i32
    %c0_i32_1 = arith.constant 0 : i32
    return %c0_i32, %c0_i32_0 : i32, i32
  }
  func.func @transform_9(%arg0: i32) -> (i32, i32) {
    %c0_i32 = arith.constant 0 : i32
    %c0_i32_0 = arith.constant 0 : i32
    %c0_i32_1 = arith.constant 0 : i32
    return %c0_i32, %c0_i32_0 : i32, i32
  }
  func.func @transform_10(%arg0: i32) -> (i32, i32) {
    %c0_i32 = arith.constant 0 : i32
    %c0_i32_0 = arith.constant 0 : i32
    %c0_i32_1 = arith.constant 0 : i32
    return %c0_i32, %c0_i32_0 : i32, i32
  }
  func.func @transform_11(%arg0: i32) -> (i32, i32) {
    %c0_i32 = arith.constant 0 : i32
    %c0_i32_0 = arith.constant 0 : i32
    %c0_i32_1 = arith.constant 0 : i32
    return %c0_i32, %c0_i32_0 : i32, i32
  }
  func.func @transform_12(%arg0: i32) -> (i32, i32) {
    %c0_i32 = arith.constant 0 : i32
    %c0_i32_0 = arith.constant 0 : i32
    %c0_i32_1 = arith.constant 0 : i32
    return %c0_i32, %c0_i32_0 : i32, i32
  }
  func.func @transform_13(%arg0: i32) -> (i32, i32, i32) {
    %c0_i32 = arith.constant 0 : i32
    %c0_i32_0 = arith.constant 0 : i32
    %c0_i32_1 = arith.constant 0 : i32
    return %arg0, %c0_i32, %c0_i32_0 : i32, i32, i32
  }
}

</mosaic_0001>

<llo_original>
// kernel: tpu_custom_call.1
$region0: #{tpu_custom_call.1}
  #allocation0 [shape = 'u32[]', space=smem, size = 0x4, offset = 0x4, fixed_abs, tag = 'smem constant byte address 0x4 - core index']
  #allocation1 [shape = 'u32[72,128]{1,0:T(1,128)}', space=vmem, size = 0x9000, scoped, tag = 'internal scratch']
  #allocation2 [shape = 'f32[4,647]{1,0:T(4,128)}', space=vmem, size = 0x3000, scoped, tag = 'scratch operand']
  #allocation3 [shape = 'f32[16,44]{1,0:T(8,128)}', space=vmem, size = 0x2000, scoped, tag = 'scratch operand']
  #allocation4 [shape = 'f32[8,72]{1,0:T(8,128)}', space=vmem, size = 0x1000, scoped, tag = 'scratch operand']
  %s0 = inlined_call_operand.vmem [shape: f32[2,8,64], index: 0, kind: input, shape index: {}]
  %s1 = inlined_call_operand.vmem [shape: f32[4,16], index: 1, kind: input, shape index: {}]
  %s2 = inlined_call_operand.vmem [shape: f32[4,1], index: 2, kind: input, shape index: {}]
  %s3 = inlined_call_operand.vmem [shape: f32[1,632], index: 3, kind: input, shape index: {}]
  %s4 = inlined_call_operand.vmem [shape: f32[8,64], index: 4, kind: input, shape index: {}]
  %s5 = inlined_call_operand.vmem [shape: f32[32,64], index: 5, kind: input, shape index: {}]
  %s6 = inlined_call_operand.vmem [shape: f32[32,1], index: 6, kind: input, shape index: {}]
  %s7 = inlined_call_operand.vmem [shape: f32[64,16], index: 7, kind: input, shape index: {}]
  %s8 = inlined_call_operand.vmem [shape: f32[8,128], index: 8, kind: input, shape index: {}]
  %s9 = inlined_call_operand.vmem [shape: f32[8,1], index: 9, kind: input, shape index: {}]
  %s10 = inlined_call_operand.vmem [shape: f32[4,64], index: 10, kind: input, shape index: {}]
  %s11 = inlined_call_operand.vmem [shape: f32[4,1], index: 11, kind: input, shape index: {}]
  %s12 = inlined_call_operand.vmem [shape: f32[64,2], index: 12, kind: input, shape index: {}]
  %s13 = inlined_call_operand.hbm [shape: f32[2,1,2], index: 13, kind: output, shape index: {}]
  %s14 = sld [smem:[#allocation0]]
  $region85: #{tpu_custom_call.1} parent=0
    _
  %s16 = ssub.s32 1, %s14
  %s17 = scalar_select 0, %s16, %s14
  $region1: #{tpu_custom_call.1} parent=0
    #allocation5 [shape = 'u8[1024]{0}', space=vmem, size = 0x400, scoped, tag = 'output window, operand 0']
    #allocation6 [shape = 's32[2]{0}', space=sflag, size = 0x8, scoped, tag = 'scoped memory for tpu_custom_call.1']
    %18 = vsyncpa [#allocation6], 0
    %s19 = scalar_lea.sflag [#allocation6], 1
    %20 = vsyncpa %s19, 0
    loop: start=0, step=1, limit=4
    $region2: #{tpu_custom_call.1} parent=1 // loop_pre_header
      _
    $region3: #{tpu_custom_call.1} parent=1 // loop_header
      %s22 = sphi 0, %s26
      %p23 = scmp.ge.s32.totalorder %s22, 4
      %s32 = sphi 0, %s34
      %s35 = sphi 0, %s32
      %s36 = sphi 0, %s35
      %s52 = sphi 0, %s36
      %s56 = sphi 0, %s56
      %s58 = sphi 0, %s56
      %s59 = sphi 0, %s58
      %s73 = sphi 0, %s59
      %s77 = sphi 0, %s77
      %s79 = sphi 0, %s77
      %s80 = sphi 0, %s79
      %s94 = sphi 0, %s80
      %s98 = sphi 0, %s98
      %s100 = sphi 0, %s98
      %s101 = sphi 0, %s100
      %s115 = sphi 0, %s101
      %s119 = sphi 0, %s119
      %s121 = sphi 0, %s119
      %s122 = sphi 0, %s121
      %s136 = sphi 0, %s122
      %s140 = sphi 0, %s140
      %s142 = sphi 0, %s140
      %s143 = sphi 0, %s142
      %s157 = sphi 0, %s143
      %s161 = sphi 0, %s161
      %s163 = sphi 0, %s161
      %s164 = sphi 0, %s163
      %s178 = sphi 0, %s164
      %s182 = sphi 0, %s182
      %s184 = sphi 0, %s182
      %s185 = sphi 0, %s184
      %s199 = sphi 0, %s185
      %s203 = sphi 0, %s203
      %s205 = sphi 0, %s203
      %s206 = sphi 0, %s205
      %s220 = sphi 0, %s206
      %s224 = sphi 0, %s224
      %s226 = sphi 0, %s224
      %s227 = sphi 0, %s226
      %s241 = sphi 0, %s227
      %s245 = sphi 0, %s245
      %s247 = sphi 0, %s245
      %s248 = sphi 0, %s247
      %s262 = sphi 0, %s248
      %s266 = sphi 0, %s266
      %s268 = sphi 0, %s266
      %s269 = sphi 0, %s268
      %s283 = sphi 0, %s269
      %s287 = sphi 0, %s287
      %s289 = sphi 0, %s287
      %s290 = sphi 0, %s289
      %s304 = sphi 0, %s290
      %s310 = sphi 0, %s312
      %s313 = sphi 0, %s310
      %s314 = sphi 0, %s313
      %s330 = sphi 0, %s314
    $region4: #{tpu_custom_call.1} parent=1 // loop_header_branch
      %25 = sbr.rel (%p23) target = $region8
    $region5: #{tpu_custom_call.1} parent=1 // loop_body
      %s27 = ssub.s32 %s22, 1
      %s28 = ssub.s32 %s22, 2
      %s29 = sadd.s32 %s22, 1
      %s30 = ssub.s32 %s22, %s29
      %p31 = scmp.eq.s32.totalorder %s30, 0
      %s33 = sadd.s32 %s32, 1
      %s34 = scalar_select %p31, %s32, %s33
      %p37 = pneg %p31
      %p38 = scmp.eq.s32.totalorder %s22, 1
      %p39 = por %p37, %p38
      %p40 = scmp.ne.s32.totalorder %s32, %s35
      %p41 = scmp.eq.s32.totalorder %s22, 0
      %p42 = por %p40, %p41
      %p43 = scmp.ne.s32.totalorder %s32, %s35
      %p44 = scmp.eq.s32.totalorder %s27, 1
      %p45 = por %p43, %p44
      %p46 = scmp.ne.s32.totalorder %s35, %s36
      %p47 = scmp.eq.s32.totalorder %s27, 0
      %p48 = por %p46, %p47
      %p49 = scmp.ne.s32.totalorder %s35, %s36
      %p50 = scmp.eq.s32.totalorder %s28, 1
      %p51 = por %p49, %p50
      %p53 = scmp.ne.s32.totalorder %s36, %s52
      %p54 = scmp.eq.s32.totalorder %s28, 0
      %p55 = por %p53, %p54
      %s57 = sadd.s32 %s56, 1
      %p60 = scmp.eq.s32.totalorder %s22, 1
      %p61 = scmp.ne.s32.totalorder %s56, %s58
      %p62 = scmp.eq.s32.totalorder %s22, 0
      %p63 = por %p61, %p62
      %p64 = scmp.ne.s32.totalorder %s56, %s58
      %p65 = scmp.eq.s32.totalorder %s27, 1
      %p66 = por %p64, %p65
      %p67 = scmp.ne.s32.totalorder %s58, %s59
      %p68 = scmp.eq.s32.totalorder %s27, 0
      %p69 = por %p67, %p68
      %p70 = scmp.ne.s32.totalorder %s58, %s59
      %p71 = scmp.eq.s32.totalorder %s28, 1
      %p72 = por %p70, %p71
      %p74 = scmp.ne.s32.totalorder %s59, %s73
      %p75 = scmp.eq.s32.totalorder %s28, 0
      %p76 = por %p74, %p75
      %s78 = sadd.s32 %s77, 1
      %p81 = scmp.eq.s32.totalorder %s22, 1
      %p82 = scmp.ne.s32.totalorder %s77, %s79
      %p83 = scmp.eq.s32.totalorder %s22, 0
      %p84 = por %p82, %p83
      %p85 = scmp.ne.s32.totalorder %s77, %s79
      %p86 = scmp.eq.s32.totalorder %s27, 1
      %p87 = por %p85, %p86
      %p88 = scmp.ne.s32.totalorder %s79, %s80
      %p89 = scmp.eq.s32.totalorder %s27, 0
      %p90 = por %p88, %p89
      %p91 = scmp.ne.s32.totalorder %s79, %s80
      %p92 = scmp.eq.s32.totalorder %s28, 1
      %p93 = por %p91, %p92
      %p95 = scmp.ne.s32.totalorder %s80, %s94
      %p96 = scmp.eq.s32.totalorder %s28, 0
      %p97 = por %p95, %p96
      %s99 = sadd.s32 %s98, 1
      %p102 = scmp.eq.s32.totalorder %s22, 1
      %p103 = scmp.ne.s32.totalorder %s98, %s100
      %p104 = scmp.eq.s32.totalorder %s22, 0
      %p105 = por %p103, %p104
      %p106 = scmp.ne.s32.totalorder %s98, %s100
      %p107 = scmp.eq.s32.totalorder %s27, 1
      %p108 = por %p106, %p107
      %p109 = scmp.ne.s32.totalorder %s100, %s101
      %p110 = scmp.eq.s32.totalorder %s27, 0
      %p111 = por %p109, %p110
      %p112 = scmp.ne.s32.totalorder %s100, %s101
      %p113 = scmp.eq.s32.totalorder %s28, 1
      %p114 = por %p112, %p113
      %p116 = scmp.ne.s32.totalorder %s101, %s115
      %p117 = scmp.eq.s32.totalorder %s28, 0
      %p118 = por %p116, %p117
      %s120 = sadd.s32 %s119, 1
      %p123 = scmp.eq.s32.totalorder %s22, 1
      %p124 = scmp.ne.s32.totalorder %s119, %s121
      %p125 = scmp.eq.s32.totalorder %s22, 0
      %p126 = por %p124, %p125
      %p127 = scmp.ne.s32.totalorder %s119, %s121
      %p128 = scmp.eq.s32.totalorder %s27, 1
      %p129 = por %p127, %p128
      %p130 = scmp.ne.s32.totalorder %s121, %s122
      %p131 = scmp.eq.s32.totalorder %s27, 0
      %p132 = por %p130, %p131
      %p133 = scmp.ne.s32.totalorder %s121, %s122
      %p134 = scmp.eq.s32.totalorder %s28, 1
      %p135 = por %p133, %p134
      %p137 = scmp.ne.s32.totalorder %s122, %s136
      %p138 = scmp.eq.s32.totalorder %s28, 0
      %p139 = por %p137, %p138
      %s141 = sadd.s32 %s140, 1
      %p144 = scmp.eq.s32.totalorder %s22, 1
      %p145 = scmp.ne.s32.totalorder %s140, %s142
      %p146 = scmp.eq.s32.totalorder %s22, 0
      %p147 = por %p145, %p146
      %p148 = scmp.ne.s32.totalorder %s140, %s142
      %p149 = scmp.eq.s32.totalorder %s27, 1
      %p150 = por %p148, %p149
      %p151 = scmp.ne.s32.totalorder %s142, %s143
      %p152 = scmp.eq.s32.totalorder %s27, 0
      %p153 = por %p151, %p152
      %p154 = scmp.ne.s32.totalorder %s142, %s143
      %p155 = scmp.eq.s32.totalorder %s28, 1
      %p156 = por %p154, %p155
      %p158 = scmp.ne.s32.totalorder %s143, %s157
      %p159 = scmp.eq.s32.totalorder %s28, 0
      %p160 = por %p158, %p159
      %s162 = sadd.s32 %s161, 1
      %p165 = scmp.eq.s32.totalorder %s22, 1
      %p166 = scmp.ne.s32.totalorder %s161, %s163
      %p167 = scmp.eq.s32.totalorder %s22, 0
      %p168 = por %p166, %p167
      %p169 = scmp.ne.s32.totalorder %s161, %s163
      %p170 = scmp.eq.s32.totalorder %s27, 1
      %p171 = por %p169, %p170
      %p172 = scmp.ne.s32.totalorder %s163, %s164
      %p173 = scmp.eq.s32.totalorder %s27, 0
      %p174 = por %p172, %p173
      %p175 = scmp.ne.s32.totalorder %s163, %s164
      %p176 = scmp.eq.s32.totalorder %s28, 1
      %p177 = por %p175, %p176
      %p179 = scmp.ne.s32.totalorder %s164, %s178
      %p180 = scmp.eq.s32.totalorder %s28, 0
      %p181 = por %p179, %p180
      %s183 = sadd.s32 %s182, 1
      %p186 = scmp.eq.s32.totalorder %s22, 1
      %p187 = scmp.ne.s32.totalorder %s182, %s184
      %p188 = scmp.eq.s32.totalorder %s22, 0
      %p189 = por %p187, %p188
      %p190 = scmp.ne.s32.totalorder %s182, %s184
      %p191 = scmp.eq.s32.totalorder %s27, 1
      %p192 = por %p190, %p191
      %p193 = scmp.ne.s32.totalorder %s184, %s185
      %p194 = scmp.eq.s32.totalorder %s27, 0
      %p195 = por %p193, %p194
      %p196 = scmp.ne.s32.totalorder %s184, %s185
      %p197 = scmp.eq.s32.totalorder %s28, 1
      %p198 = por %p196, %p197
      %p200 = scmp.ne.s32.totalorder %s185, %s199
      %p201 = scmp.eq.s32.totalorder %s28, 0
      %p202 = por %p200, %p201
      %s204 = sadd.s32 %s203, 1
      %p207 = scmp.eq.s32.totalorder %s22, 1
      %p208 = scmp.ne.s32.totalorder %s203, %s205
      %p209 = scmp.eq.s32.totalorder %s22, 0
      %p210 = por %p208, %p209
      %p211 = scmp.ne.s32.totalorder %s203, %s205
      %p212 = scmp.eq.s32.totalorder %s27, 1
      %p213 = por %p211, %p212
      %p214 = scmp.ne.s32.totalorder %s205, %s206
      %p215 = scmp.eq.s32.totalorder %s27, 0
      %p216 = por %p214, %p215
      %p217 = scmp.ne.s32.totalorder %s205, %s206
      %p218 = scmp.eq.s32.totalorder %s28, 1
      %p219 = por %p217, %p218
      %p221 = scmp.ne.s32.totalorder %s206, %s220
      %p222 = scmp.eq.s32.totalorder %s28, 0
      %p223 = por %p221, %p222
      %s225 = sadd.s32 %s224, 1
      %p228 = scmp.eq.s32.totalorder %s22, 1
      %p229 = scmp.ne.s32.totalorder %s224, %s226
      %p230 = scmp.eq.s32.totalorder %s22, 0
      %p231 = por %p229, %p230
      %p232 = scmp.ne.s32.totalorder %s224, %s226
      %p233 = scmp.eq.s32.totalorder %s27, 1
      %p234 = por %p232, %p233
      %p235 = scmp.ne.s32.totalorder %s226, %s227
      %p236 = scmp.eq.s32.totalorder %s27, 0
      %p237 = por %p235, %p236
      %p238 = scmp.ne.s32.totalorder %s226, %s227
      %p239 = scmp.eq.s32.totalorder %s28, 1
      %p240 = por %p238, %p239
      %p242 = scmp.ne.s32.totalorder %s227, %s241
      %p243 = scmp.eq.s32.totalorder %s28, 0
      %p244 = por %p242, %p243
      %s246 = sadd.s32 %s245, 1
      %p249 = scmp.eq.s32.totalorder %s22, 1
      %p250 = scmp.ne.s32.totalorder %s245, %s247
      %p251 = scmp.eq.s32.totalorder %s22, 0
      %p252 = por %p250, %p251
      %p253 = scmp.ne.s32.totalorder %s245, %s247
      %p254 = scmp.eq.s32.totalorder %s27, 1
      %p255 = por %p253, %p254
      %p256 = scmp.ne.s32.totalorder %s247, %s248
      %p257 = scmp.eq.s32.totalorder %s27, 0
      %p258 = por %p256, %p257
      %p259 = scmp.ne.s32.totalorder %s247, %s248
      %p260 = scmp.eq.s32.totalorder %s28, 1
      %p261 = por %p259, %p260
      %p263 = scmp.ne.s32.totalorder %s248, %s262
      %p264 = scmp.eq.s32.totalorder %s28, 0
      %p265 = por %p263, %p264
      %s267 = sadd.s32 %s266, 1
      %p270 = scmp.eq.s32.totalorder %s22, 1
      %p271 = scmp.ne.s32.totalorder %s266, %s268
      %p272 = scmp.eq.s32.totalorder %s22, 0
      %p273 = por %p271, %p272
      %p274 = scmp.ne.s32.totalorder %s266, %s268
      %p275 = scmp.eq.s32.totalorder %s27, 1
      %p276 = por %p274, %p275
      %p277 = scmp.ne.s32.totalorder %s268, %s269
      %p278 = scmp.eq.s32.totalorder %s27, 0
      %p279 = por %p277, %p278
      %p280 = scmp.ne.s32.totalorder %s268, %s269
      %p281 = scmp.eq.s32.totalorder %s28, 1
      %p282 = por %p280, %p281
      %p284 = scmp.ne.s32.totalorder %s269, %s283
      %p285 = scmp.eq.s32.totalorder %s28, 0
      %p286 = por %p284, %p285
      %s288 = sadd.s32 %s287, 1
      %p291 = scmp.eq.s32.totalorder %s22, 1
      %p292 = scmp.ne.s32.totalorder %s287, %s289
      %p293 = scmp.eq.s32.totalorder %s22, 0
      %p294 = por %p292, %p293
      %p295 = scmp.ne.s32.totalorder %s287, %s289
      %p296 = scmp.eq.s32.totalorder %s27, 1
      %p297 = por %p295, %p296
      %p298 = scmp.ne.s32.totalorder %s289, %s290
      %p299 = scmp.eq.s32.totalorder %s27, 0
      %p300 = por %p298, %p299
      %p301 = scmp.ne.s32.totalorder %s289, %s290
      %p302 = scmp.eq.s32.totalorder %s28, 1
      %p303 = por %p301, %p302
      %p305 = scmp.ne.s32.totalorder %s290, %s304
      %p306 = scmp.eq.s32.totalorder %s28, 0
      %p307 = por %p305, %p306
      %s308 = ssub.s32 %s22, %s29
      %p309 = scmp.eq.s32.totalorder %s308, 0
      %s311 = sadd.s32 %s310, 1
      %s312 = scalar_select %p309, %s310, %s311
      %p315 = pneg %p309
      %p316 = scmp.eq.s32.totalorder %s22, 1
      %p317 = por %p315, %p316
      %p318 = scmp.ne.s32.totalorder %s310, %s313
      %p319 = scmp.eq.s32.totalorder %s22, 0
      %p320 = por %p318, %p319
      %p321 = scmp.ne.s32.totalorder %s310, %s313
      %p322 = scmp.eq.s32.totalorder %s27, 1
      %p323 = por %p321, %p322
      %p324 = scmp.ne.s32.totalorder %s313, %s314
      %p325 = scmp.eq.s32.totalorder %s27, 0
      %p326 = por %p324, %p325
      %p327 = scmp.ne.s32.totalorder %s313, %s314
      %p328 = scmp.eq.s32.totalorder %s28, 1
      %p329 = por %p327, %p328
      %p331 = scmp.ne.s32.totalorder %s314, %s330
      %p332 = scmp.eq.s32.totalorder %s28, 0
      %p333 = por %p331, %p332
      %p334 = scmp.le.s32.totalorder 1, %s22
      %p335 = scmp.lt.s32.totalorder %s22, 3
      %p336 = pnand %p334, %p335
      %p337 = pneg %p336
      // Predicated region
      $region9: #{tpu_custom_call.1} parent=5 // pred_check
        _
      $region10: #{tpu_custom_call.1} parent=5 // pred_check_branch
        %339 = sbr.rel (%p336) target = $region12
      $region11: #{tpu_custom_call.1} parent=5 // pred_region
        %s340 = ssub.s32 %s22, 1
        // Predicated region
        $region13: #{tpu_custom_call.1} parent=11 // pred_check
          %p341 = pneg %p69
        $region14: #{tpu_custom_call.1} parent=11 // pred_check_branch
          %343 = sbr.rel (%p341) target = $region16
        $region15: #{tpu_custom_call.1} parent=11 // pred_region
          _
        $region16: #{tpu_custom_call.1} parent=11 // pred_fallthru
          _
        // Predicated region
        $region17: #{tpu_custom_call.1} parent=11 // pred_check
          %p344 = pneg %p90
        $region18: #{tpu_custom_call.1} parent=11 // pred_check_branch
          %346 = sbr.rel (%p344) target = $region20
        $region19: #{tpu_custom_call.1} parent=11 // pred_region
          _
        $region20: #{tpu_custom_call.1} parent=11 // pred_fallthru
          _
        // Predicated region
        $region21: #{tpu_custom_call.1} parent=11 // pred_check
          %p347 = pneg %p111
        $region22: #{tpu_custom_call.1} parent=11 // pred_check_branch
          %349 = sbr.rel (%p347) target = $region24
        $region23: #{tpu_custom_call.1} parent=11 // pred_region
          _
        $region24: #{tpu_custom_call.1} parent=11 // pred_fallthru
          _
        // Predicated region
        $region25: #{tpu_custom_call.1} parent=11 // pred_check
          %p350 = pneg %p132
        $region26: #{tpu_custom_call.1} parent=11 // pred_check_branch
          %352 = sbr.rel (%p350) target = $region28
        $region27: #{tpu_custom_call.1} parent=11 // pred_region
          _
        $region28: #{tpu_custom_call.1} parent=11 // pred_fallthru
          _
        // Predicated region
        $region29: #{tpu_custom_call.1} parent=11 // pred_check
          %p353 = pneg %p153
        $region30: #{tpu_custom_call.1} parent=11 // pred_check_branch
          %355 = sbr.rel (%p353) target = $region32
        $region31: #{tpu_custom_call.1} parent=11 // pred_region
          _
        $region32: #{tpu_custom_call.1} parent=11 // pred_fallthru
          _
        // Predicated region
        $region33: #{tpu_custom_call.1} parent=11 // pred_check
          %p356 = pneg %p174
        $region34: #{tpu_custom_call.1} parent=11 // pred_check_branch
          %358 = sbr.rel (%p356) target = $region36
        $region35: #{tpu_custom_call.1} parent=11 // pred_region
          _
        $region36: #{tpu_custom_call.1} parent=11 // pred_fallthru
          _
        // Predicated region
        $region37: #{tpu_custom_call.1} parent=11 // pred_check
          %p359 = pneg %p195
        $region38: #{tpu_custom_call.1} parent=11 // pred_check_branch
          %361 = sbr.rel (%p359) target = $region40
        $region39: #{tpu_custom_call.1} parent=11 // pred_region
          _
        $region40: #{tpu_custom_call.1} parent=11 // pred_fallthru
          _
        // Predicated region
        $region41: #{tpu_custom_call.1} parent=11 // pred_check
          %p362 = pneg %p216
        $region42: #{tpu_custom_call.1} parent=11 // pred_check_branch
          %364 = sbr.rel (%p362) target = $region44
        $region43: #{tpu_custom_call.1} parent=11 // pred_region
          _
        $region44: #{tpu_custom_call.1} parent=11 // pred_fallthru
          _
        // Predicated region
        $region45: #{tpu_custom_call.1} parent=11 // pred_check
          %p365 = pneg %p237
        $region46: #{tpu_custom_call.1} parent=11 // pred_check_branch
          %367 = sbr.rel (%p365) target = $region48
        $region47: #{tpu_custom_call.1} parent=11 // pred_region
          _
        $region48: #{tpu_custom_call.1} parent=11 // pred_fallthru
          _
        // Predicated region
        $region49: #{tpu_custom_call.1} parent=11 // pred_check
          %p368 = pneg %p258
        $region50: #{tpu_custom_call.1} parent=11 // pred_check_branch
          %370 = sbr.rel (%p368) target = $region52
        $region51: #{tpu_custom_call.1} parent=11 // pred_region
          _
        $region52: #{tpu_custom_call.1} parent=11 // pred_fallthru
          _
        // Predicated region
        $region53: #{tpu_custom_call.1} parent=11 // pred_check
          %p371 = pneg %p279
        $region54: #{tpu_custom_call.1} parent=11 // pred_check_branch
          %373 = sbr.rel (%p371) target = $region56
        $region55: #{tpu_custom_call.1} parent=11 // pred_region
          _
        $region56: #{tpu_custom_call.1} parent=11 // pred_fallthru
          _
        // Predicated region
        $region57: #{tpu_custom_call.1} parent=11 // pred_check
          %p374 = pneg %p300
        $region58: #{tpu_custom_call.1} parent=11 // pred_check_branch
          %376 = sbr.rel (%p374) target = $region60
        $region59: #{tpu_custom_call.1} parent=11 // pred_region
          _
        $region60: #{tpu_custom_call.1} parent=11 // pred_fallthru
          _
      $region12: #{tpu_custom_call.1} parent=5 // pred_fallthru
        _
      %p377 = scmp.lt.s32.totalorder %s22, 2
      // Predicated region
      $region61: #{tpu_custom_call.1} parent=5 // pred_check
        %p378 = pneg %p377
      $region62: #{tpu_custom_call.1} parent=5 // pred_check_branch
        %380 = sbr.rel (%p378) target = $region64
      $region63: #{tpu_custom_call.1} parent=5 // pred_region
        // Predicated region
        $region65: #{tpu_custom_call.1} parent=63 // pred_check
          %p381 = pneg %p42
        $region66: #{tpu_custom_call.1} parent=63 // pred_check_branch
          %383 = sbr.rel (%p381) target = $region68
        $region67: #{tpu_custom_call.1} parent=63 // pred_region
          %p384 = scmp.lt.s32.totalorder %s22, 1
          %s385 = scalar_select %p384, %s22, 1
          %s386 = smul.addr %s385, 8
          %s387 = scalar_lea.vmem %s0, %s386
        $region68: #{tpu_custom_call.1} parent=63 // pred_fallthru
          _
      $region64: #{tpu_custom_call.1} parent=5 // pred_fallthru
        _
      %p388 = scmp.le.s32.totalorder 1, %s22
      %p389 = scmp.lt.s32.totalorder %s22, 3
      %p390 = pnand %p388, %p389
      %p391 = pneg %p390
      // Predicated region
      $region69: #{tpu_custom_call.1} parent=5 // pred_check
        _
      $region70: #{tpu_custom_call.1} parent=5 // pred_check_branch
        %393 = sbr.rel (%p390) target = $region72
      $region71: #{tpu_custom_call.1} parent=5 // pred_region
        %s394 = ssub.s32 %s22, 1
        %p395 = scmp.lt.s32.totalorder %s27, 1
        %s396 = scalar_select %p395, %s27, 1
        %s397 = smul.addr %s396, 8
        %s398 = scalar_lea.vmem %s0, %s397
        %p399 = pneg %p48
        %p400 = pneg %p45
        %p401 = pneg %p69
        %p402 = pneg %p66
        %p403 = pneg %p90
        %p404 = pneg %p87
        %p405 = pneg %p111
        %p406 = pneg %p108
        %p407 = pneg %p132
        %p408 = pneg %p129
        %p409 = pneg %p153
        %p410 = pneg %p150
        %p411 = pneg %p174
        %p412 = pneg %p171
        %p413 = pneg %p195
        %p414 = pneg %p192
        %p415 = pneg %p216
        %p416 = pneg %p213
        %p417 = pneg %p237
        %p418 = pneg %p234
        %p419 = pneg %p258
        %p420 = pneg %p255
        %p421 = pneg %p279
        %p422 = pneg %p276
        %p423 = pneg %p300
        %p424 = pneg %p297
        %p425 = pneg %p326
        %p426 = pneg %p323
        %s427 = sand.u32 %s313, 1
        %s428 = scalar_lea.sflag [#allocation6], %s427
        %s429 = sand.u32 %s313, 1
        %s430 = scalar_lea.vmem [#allocation5], %s429
        %p431 = scmp.lt.s32.totalorder %s27, 1
        %s432 = scalar_select %p431, %s27, 1
        %s433 = smul.addr %s432, 8
        %s434 = scalar_lea.vmem %s0, %s433
        %435 = vst [vmem:[#allocation2] sm:$0xff] 0.0
        %436 = vst [vmem:[#allocation2 + $0x8] sm:$0xff] 0.0
        %vm437 = vcmask 1043456
        %vm438 = vcmask 56324
        %vm439 = vmor %vm438, %vm437
        %440 = vst.msk [vmem:[#allocation2 + $0x10] sm:$0xff] %vm439, 0.0
        %v441 = vld [vmem:[%s434] sm:$0xff]
        %443 = vrot.lane.b32.xlu0 %v441, 14
        %v444 = vpop.permute.xlu0 %443
        %vm446 = vcmask 630896
        %447 = vst.msk [vmem:[#allocation2] sm:$0x1] %vm446, %v444
        %v448 = vrot.slane %v441, 5
        %v449 = vrot.slane %v448, 4
        %450 = vrot.lane.b32.xlu0 %v449, 93
        %v451 = vpop.permute.xlu0 %450
        %v452 = vrot.slane %v451, 4
        %vm453 = vcmask 760832
        %v454 = vsel %vm453, %v452, %v451
        %vm456 = vcmask 1041128
        %vm457 = vcmask 233476
        %vm458 = vmor %vm457, %vm456
        %459 = vst.msk [vmem:[#allocation2] sm:$0x11] %vm458, %v454
        %v460 = vrot.slane %v441, 6
        %v461 = vrot.slane %v460, 4
        %462 = vrot.lane.b32.xlu0 %v461, 44
        %v463 = vpop.permute.xlu0 %462
        %vm465 = vcmask 876896
        %466 = vst.msk [vmem:[#allocation2 + $0x4] sm:$0x1] %vm465, %v463
        %v467 = vrot.slane %v441, 7
        %v468 = vrot.slane %v467, 4
        %469 = vrot.lane.b32.xlu0 %v468, 123
        %v470 = vpop.permute.xlu0 %469
        %v471 = vrot.slane %v470, 4
        %vm472 = vcmask 1006592
        %v473 = vsel %vm472, %v471, %v470
        %vm475 = vcmask 1041368
        %vm476 = vcmask 479236
        %vm477 = vmor %vm476, %vm475
        %478 = vst.msk [vmem:[#allocation2 + $0x4] sm:$0x11] %vm477, %v473
        %479 = vst.sshfl [vmem:[#allocation1] sm:$0xff pattern:$0x75316420] %v441
        %s480 = scalar_lea.vmem [#allocation1], 1
        %v481 = vld [vmem:[%s480] ss:$2 sm:$0xff]
        %482 = vrot.lane.b32.xlu0 %v481, 74
        %v483 = vpop.permute.xlu0 %482
        %v484 = vrot.slane %v483, 4
        %vm485 = vcmask 605184
        %v486 = vsel %vm485, %v484, %v483
        %vm488 = vcmask 1040976
        %vm489 = vcmask 77828
        %vm490 = vmor %vm489, %vm488
        %491 = vst.msk [vmem:[#allocation2 + $0x8] sm:$0x11] %vm490, %v486
        %492 = vst.sshfl [vmem:[#allocation1] sm:$0xff pattern:$0x75316420] %v441
        %s493 = scalar_lea.vmem [#allocation1], 1
        %v494 = vld [vmem:[%s493] ss:$2 sm:$0xff]
        %v495 = vrot.slane %v494, 5
        %v496 = vrot.slane %v495, 4
        %497 = vrot.lane.b32.xlu0 %v496, 25
        %v498 = vpop.permute.xlu0 %497
        %vm500 = vcmask 721096
        %501 = vst.msk [vmem:[#allocation2 + $0xc] sm:$0x1] %vm500, %v498
        %502 = vst.sshfl [vmem:[#allocation1] sm:$0xff pattern:$0x75316420] %v441
        %s503 = scalar_lea.vmem [#allocation1], 1
        %v504 = vld [vmem:[%s503] ss:$2 sm:$0xff]
        %v505 = vrot.slane %v504, 6
        %v506 = vrot.slane %v505, 4
        %507 = vrot.lane.b32.xlu0 %v506, 104
        %v508 = vpop.permute.xlu0 %507
        %v509 = vrot.slane %v508, 4
        %vm510 = vcmask 850944
        %v511 = vsel %vm510, %v509, %v508
        %vm513 = vcmask 1041216
        %vm514 = vcmask 323588
        %vm515 = vmor %vm514, %vm513
        %516 = vst.msk [vmem:[#allocation2 + $0xc] sm:$0x11] %vm515, %v511
        %517 = vst.sshfl [vmem:[#allocation1] sm:$0xff pattern:$0x75316420] %v441
        %s518 = scalar_lea.vmem [#allocation1], 1
        %v519 = vld [vmem:[%s518] ss:$2 sm:$0xff]
        %v520 = vrot.slane %v519, 7
        %v521 = vrot.slane %v520, 4
        %522 = vrot.lane.b32.xlu0 %v521, 55
        %v523 = vpop.permute.xlu0 %522
        %vm525 = vcmask 967096
        %526 = vst.msk [vmem:[#allocation2 + $0x10] sm:$0x1] %vm525, %v523
        %v527 = vld [vmem:[%s1] sm:$0xf]
        %v528 = vld [vmem:[#allocation2] ss:$4 sm:$0x1f]
        %530 = vset.pattern.permute.xlu0 0
        %531 = vperm.xlu0 %530, %v527
        %v532 = vpop.permute.xlu0 %531
        %v535 = vperm.slane %v528, 0
        %v536 = vperm.slane %v528, 1
        %v537 = vperm.slane %v528, 2
        %v538 = vperm.slane %v528, 3
        %v539 = vperm.slane %v528, 4
        %v545 = vmul.f32 %v532, %v535
        %v546 = vmul.f32 %v532, %v536
        %v547 = vmul.f32 %v532, %v537
        %v548 = vmul.f32 %v532, %v538
        %v549 = vmul.f32 %v532, %v539
        %v550 = vadd.f32 %v545, 0.0
        %v551 = vadd.f32 %v546, 0.0
        %v552 = vadd.f32 %v547, 0.0
        %v553 = vadd.f32 %v548, 0.0
        %v554 = vadd.f32 %v549, 0.0
        %555 = vset.pattern.permute.xlu0 1
        %556 = vperm.xlu0 %555, %v527
        %v557 = vpop.permute.xlu0 %556
        %v559 = vmul.f32 %v557, %v535
        %v560 = vmul.f32 %v557, %v536
        %v561 = vmul.f32 %v557, %v537
        %v562 = vmul.f32 %v557, %v538
        %v563 = vmul.f32 %v557, %v539
        %569 = vrot.lane.b32.xlu0 %v559, 127
        %v570 = vpop.permute.xlu0 %569
        %571 = vrot.lane.b32.xlu0 %v560, 127
        %v572 = vpop.permute.xlu0 %571
        %573 = vrot.lane.b32.xlu0 %v561, 127
        %v574 = vpop.permute.xlu0 %573
        %575 = vrot.lane.b32.xlu0 %v562, 127
        %v576 = vpop.permute.xlu0 %575
        %577 = vrot.lane.b32.xlu0 %v563, 127
        %v578 = vpop.permute.xlu0 %577
        %vm579 = vcmask 1039360
        %v580 = vsel %vm579, %v570, %v572
        %v581 = vsel %vm579, %v572, %v574
        %v582 = vsel %vm579, %v574, %v576
        %v583 = vsel %vm579, %v576, %v578
        %v589 = vadd.f32 %v550, %v580
        %v590 = vadd.f32 %v551, %v581
        %v591 = vadd.f32 %v552, %v582
        %v592 = vadd.f32 %v553, %v583
        %v593 = vadd.f32 %v554, %v578
        %594 = vset.pattern.permute.xlu0 2
        %595 = vperm.xlu0 %594, %v527
        %v596 = vpop.permute.xlu0 %595
        %v598 = vmul.f32 %v596, %v535
        %v599 = vmul.f32 %v596, %v536
        %v600 = vmul.f32 %v596, %v537
        %v601 = vmul.f32 %v596, %v538
        %v602 = vmul.f32 %v596, %v539
        %608 = vrot.lane.b32.xlu0 %v598, 126
        %v609 = vpop.permute.xlu0 %608
        %610 = vrot.lane.b32.xlu0 %v599, 126
        %v611 = vpop.permute.xlu0 %610
        %612 = vrot.lane.b32.xlu0 %v600, 126
        %v613 = vpop.permute.xlu0 %612
        %614 = vrot.lane.b32.xlu0 %v601, 126
        %v615 = vpop.permute.xlu0 %614
        %616 = vrot.lane.b32.xlu0 %v602, 126
        %v617 = vpop.permute.xlu0 %616
        %vm618 = vcmask 1031168
        %v619 = vsel %vm618, %v609, %v611
        %v620 = vsel %vm618, %v611, %v613
        %v621 = vsel %vm618, %v613, %v615
        %v622 = vsel %vm618, %v615, %v617
        %v628 = vadd.f32 %v589, %v619
        %v629 = vadd.f32 %v590, %v620
        %v630 = vadd.f32 %v591, %v621
        %v631 = vadd.f32 %v592, %v622
        %v632 = vadd.f32 %v593, %v617
        %633 = vset.pattern.permute.xlu0 3
        %634 = vperm.xlu0 %633, %v527
        %v635 = vpop.permute.xlu0 %634
        %v637 = vmul.f32 %v635, %v535
        %v638 = vmul.f32 %v635, %v536
        %v639 = vmul.f32 %v635, %v537
        %v640 = vmul.f32 %v635, %v538
        %v641 = vmul.f32 %v635, %v539
        %647 = vrot.lane.b32.xlu0 %v637, 125
        %v648 = vpop.permute.xlu0 %647
        %649 = vrot.lane.b32.xlu0 %v638, 125
        %v650 = vpop.permute.xlu0 %649
        %651 = vrot.lane.b32.xlu0 %v639, 125
        %v652 = vpop.permute.xlu0 %651
        %653 = vrot.lane.b32.xlu0 %v640, 125
        %v654 = vpop.permute.xlu0 %653
        %655 = vrot.lane.b32.xlu0 %v641, 125
        %v656 = vpop.permute.xlu0 %655
        %vm657 = vcmask 1022976
        %v658 = vsel %vm657, %v648, %v650
        %v659 = vsel %vm657, %v650, %v652
        %v660 = vsel %vm657, %v652, %v654
        %v661 = vsel %vm657, %v654, %v656
        %v667 = vadd.f32 %v628, %v658
        %v668 = vadd.f32 %v629, %v659
        %v669 = vadd.f32 %v630, %v660
        %v670 = vadd.f32 %v631, %v661
        %v671 = vadd.f32 %v632, %v656
        %672 = vset.pattern.permute.xlu0 4
        %673 = vperm.xlu0 %672, %v527
        %v674 = vpop.permute.xlu0 %673
        %v676 = vmul.f32 %v674, %v535
        %v677 = vmul.f32 %v674, %v536
        %v678 = vmul.f32 %v674, %v537
        %v679 = vmul.f32 %v674, %v538
        %v680 = vmul.f32 %v674, %v539
        %686 = vrot.lane.b32.xlu0 %v676, 124
        %v687 = vpop.permute.xlu0 %686
        %688 = vrot.lane.b32.xlu0 %v677, 124
        %v689 = vpop.permute.xlu0 %688
        %690 = vrot.lane.b32.xlu0 %v678, 124
        %v691 = vpop.permute.xlu0 %690
        %692 = vrot.lane.b32.xlu0 %v679, 124
        %v693 = vpop.permute.xlu0 %692
        %694 = vrot.lane.b32.xlu0 %v680, 124
        %v695 = vpop.permute.xlu0 %694
        %vm696 = vcmask 1014784
        %v697 = vsel %vm696, %v687, %v689
        %v698 = vsel %vm696, %v689, %v691
        %v699 = vsel %vm696, %v691, %v693
        %v700 = vsel %vm696, %v693, %v695
        %v706 = vadd.f32 %v667, %v697
        %v707 = vadd.f32 %v668, %v698
        %v708 = vadd.f32 %v669, %v699
        %v709 = vadd.f32 %v670, %v700
        %v710 = vadd.f32 %v671, %v695
        %711 = vset.pattern.permute.xlu0 5
        %712 = vperm.xlu0 %711, %v527
        %v713 = vpop.permute.xlu0 %712
        %v715 = vmul.f32 %v713, %v535
        %v716 = vmul.f32 %v713, %v536
        %v717 = vmul.f32 %v713, %v537
        %v718 = vmul.f32 %v713, %v538
        %v719 = vmul.f32 %v713, %v539
        %725 = vrot.lane.b32.xlu0 %v715, 123
        %v726 = vpop.permute.xlu0 %725
        %727 = vrot.lane.b32.xlu0 %v716, 123
        %v728 = vpop.permute.xlu0 %727
        %729 = vrot.lane.b32.xlu0 %v717, 123
        %v730 = vpop.permute.xlu0 %729
        %731 = vrot.lane.b32.xlu0 %v718, 123
        %v732 = vpop.permute.xlu0 %731
        %733 = vrot.lane.b32.xlu0 %v719, 123
        %v734 = vpop.permute.xlu0 %733
        %v735 = vsel %vm472, %v726, %v728
        %v736 = vsel %vm472, %v728, %v730
        %v737 = vsel %vm472, %v730, %v732
        %v738 = vsel %vm472, %v732, %v734
        %v744 = vadd.f32 %v706, %v735
        %v745 = vadd.f32 %v707, %v736
        %v746 = vadd.f32 %v708, %v737
        %v747 = vadd.f32 %v709, %v738
        %v748 = vadd.f32 %v710, %v734
        %749 = vset.pattern.permute.xlu0 6
        %750 = vperm.xlu0 %749, %v527
        %v751 = vpop.permute.xlu0 %750
        %v753 = vmul.f32 %v751, %v535
        %v754 = vmul.f32 %v751, %v536
        %v755 = vmul.f32 %v751, %v537
        %v756 = vmul.f32 %v751, %v538
        %v757 = vmul.f32 %v751, %v539
        %763 = vrot.lane.b32.xlu0 %v753, 122
        %v764 = vpop.permute.xlu0 %763
        %765 = vrot.lane.b32.xlu0 %v754, 122
        %v766 = vpop.permute.xlu0 %765
        %767 = vrot.lane.b32.xlu0 %v755, 122
        %v768 = vpop.permute.xlu0 %767
        %769 = vrot.lane.b32.xlu0 %v756, 122
        %v770 = vpop.permute.xlu0 %769
        %771 = vrot.lane.b32.xlu0 %v757, 122
        %v772 = vpop.permute.xlu0 %771
        %vm773 = vcmask 998400
        %v774 = vsel %vm773, %v764, %v766
        %v775 = vsel %vm773, %v766, %v768
        %v776 = vsel %vm773, %v768, %v770
        %v777 = vsel %vm773, %v770, %v772
        %v783 = vadd.f32 %v744, %v774
        %v784 = vadd.f32 %v745, %v775
        %v785 = vadd.f32 %v746, %v776
        %v786 = vadd.f32 %v747, %v777
        %v787 = vadd.f32 %v748, %v772
        %788 = vset.pattern.permute.xlu0 7
        %789 = vperm.xlu0 %788, %v527
        %v790 = vpop.permute.xlu0 %789
        %v792 = vmul.f32 %v790, %v535
        %v793 = vmul.f32 %v790, %v536
        %v794 = vmul.f32 %v790, %v537
        %v795 = vmul.f32 %v790, %v538
        %v796 = vmul.f32 %v790, %v539
        %802 = vrot.lane.b32.xlu0 %v792, 121
        %v803 = vpop.permute.xlu0 %802
        %804 = vrot.lane.b32.xlu0 %v793, 121
        %v805 = vpop.permute.xlu0 %804
        %806 = vrot.lane.b32.xlu0 %v794, 121
        %v807 = vpop.permute.xlu0 %806
        %808 = vrot.lane.b32.xlu0 %v795, 121
        %v809 = vpop.permute.xlu0 %808
        %810 = vrot.lane.b32.xlu0 %v796, 121
        %v811 = vpop.permute.xlu0 %810
        %vm812 = vcmask 990208
        %v813 = vsel %vm812, %v803, %v805
        %v814 = vsel %vm812, %v805, %v807
        %v815 = vsel %vm812, %v807, %v809
        %v816 = vsel %vm812, %v809, %v811
        %v822 = vadd.f32 %v783, %v813
        %v823 = vadd.f32 %v784, %v814
        %v824 = vadd.f32 %v785, %v815
        %v825 = vadd.f32 %v786, %v816
        %v826 = vadd.f32 %v787, %v811
        %827 = vset.pattern.permute.xlu0 8
        %828 = vperm.xlu0 %827, %v527
        %v829 = vpop.permute.xlu0 %828
        %v831 = vmul.f32 %v829, %v535
        %v832 = vmul.f32 %v829, %v536
        %v833 = vmul.f32 %v829, %v537
        %v834 = vmul.f32 %v829, %v538
        %v835 = vmul.f32 %v829, %v539
        %841 = vrot.lane.b32.xlu0 %v831, 120
        %v842 = vpop.permute.xlu0 %841
        %843 = vrot.lane.b32.xlu0 %v832, 120
        %v844 = vpop.permute.xlu0 %843
        %845 = vrot.lane.b32.xlu0 %v833, 120
        %v846 = vpop.permute.xlu0 %845
        %847 = vrot.lane.b32.xlu0 %v834, 120
        %v848 = vpop.permute.xlu0 %847
        %849 = vrot.lane.b32.xlu0 %v835, 120
        %v850 = vpop.permute.xlu0 %849
        %vm851 = vcmask 982016
        %v852 = vsel %vm851, %v842, %v844
        %v853 = vsel %vm851, %v844, %v846
        %v854 = vsel %vm851, %v846, %v848
        %v855 = vsel %vm851, %v848, %v850
        %v861 = vadd.f32 %v822, %v852
        %v862 = vadd.f32 %v823, %v853
        %v863 = vadd.f32 %v824, %v854
        %v864 = vadd.f32 %v825, %v855
        %v865 = vadd.f32 %v826, %v850
        %v866 = vld [vmem:[#allocation2] ss:$4 sm:$0x3f]
        %867 = vset.pattern.permute.xlu0 9
        %868 = vperm.xlu0 %867, %v527
        %v869 = vpop.permute.xlu0 %868
        %v872 = vperm.slane %v866, 0
        %v873 = vperm.slane %v866, 1
        %v874 = vperm.slane %v866, 2
        %v875 = vperm.slane %v866, 3
        %v876 = vperm.slane %v866, 4
        %v877 = vperm.slane %v866, 5
        %v884 = vmul.f32 %v869, %v872
        %v885 = vmul.f32 %v869, %v873
        %v886 = vmul.f32 %v869, %v874
        %v887 = vmul.f32 %v869, %v875
        %v888 = vmul.f32 %v869, %v876
        %v889 = vmul.f32 %v869, %v877
        %896 = vrot.lane.b32.xlu0 %v884, 119
        %v897 = vpop.permute.xlu0 %896
        %898 = vrot.lane.b32.xlu0 %v885, 119
        %v899 = vpop.permute.xlu0 %898
        %900 = vrot.lane.b32.xlu0 %v886, 119
        %v901 = vpop.permute.xlu0 %900
        %902 = vrot.lane.b32.xlu0 %v887, 119
        %v903 = vpop.permute.xlu0 %902
        %904 = vrot.lane.b32.xlu0 %v888, 119
        %v905 = vpop.permute.xlu0 %904
        %906 = vrot.lane.b32.xlu0 %v889, 119
        %v907 = vpop.permute.xlu0 %906
        %vm908 = vcmask 973824
        %v909 = vsel %vm908, %v897, %v899
        %v910 = vsel %vm908, %v899, %v901
        %v911 = vsel %vm908, %v901, %v903
        %v912 = vsel %vm908, %v903, %v905
        %v913 = vsel %vm908, %v905, %v907
        %v919 = vadd.f32 %v861, %v909
        %v920 = vadd.f32 %v862, %v910
        %v921 = vadd.f32 %v863, %v911
        %v922 = vadd.f32 %v864, %v912
        %v923 = vadd.f32 %v865, %v913
        %924 = vset.pattern.permute.xlu0 10
        %925 = vperm.xlu0 %924, %v527
        %v926 = vpop.permute.xlu0 %925
        %v928 = vmul.f32 %v926, %v872
        %v929 = vmul.f32 %v926, %v873
        %v930 = vmul.f32 %v926, %v874
        %v931 = vmul.f32 %v926, %v875
        %v932 = vmul.f32 %v926, %v876
        %v933 = vmul.f32 %v926, %v877
        %940 = vrot.lane.b32.xlu0 %v928, 118
        %v941 = vpop.permute.xlu0 %940
        %942 = vrot.lane.b32.xlu0 %v929, 118
        %v943 = vpop.permute.xlu0 %942
        %944 = vrot.lane.b32.xlu0 %v930, 118
        %v945 = vpop.permute.xlu0 %944
        %946 = vrot.lane.b32.xlu0 %v931, 118
        %v947 = vpop.permute.xlu0 %946
        %948 = vrot.lane.b32.xlu0 %v932, 118
        %v949 = vpop.permute.xlu0 %948
        %950 = vrot.lane.b32.xlu0 %v933, 118
        %v951 = vpop.permute.xlu0 %950
        %vm952 = vcmask 965632
        %v953 = vsel %vm952, %v941, %v943
        %v954 = vsel %vm952, %v943, %v945
        %v955 = vsel %vm952, %v945, %v947
        %v956 = vsel %vm952, %v947, %v949
        %v957 = vsel %vm952, %v949, %v951
        %v963 = vadd.f32 %v919, %v953
        %v964 = vadd.f32 %v920, %v954
        %v965 = vadd.f32 %v921, %v955
        %v966 = vadd.f32 %v922, %v956
        %v967 = vadd.f32 %v923, %v957
        %968 = vset.pattern.permute.xlu0 11
        %969 = vperm.xlu0 %968, %v527
        %v970 = vpop.permute.xlu0 %969
        %v972 = vmul.f32 %v970, %v872
        %v973 = vmul.f32 %v970, %v873
        %v974 = vmul.f32 %v970, %v874
        %v975 = vmul.f32 %v970, %v875
        %v976 = vmul.f32 %v970, %v876
        %v977 = vmul.f32 %v970, %v877
        %984 = vrot.lane.b32.xlu0 %v972, 117
        %v985 = vpop.permute.xlu0 %984
        %986 = vrot.lane.b32.xlu0 %v973, 117
        %v987 = vpop.permute.xlu0 %986
        %988 = vrot.lane.b32.xlu0 %v974, 117
        %v989 = vpop.permute.xlu0 %988
        %990 = vrot.lane.b32.xlu0 %v975, 117
        %v991 = vpop.permute.xlu0 %990
        %992 = vrot.lane.b32.xlu0 %v976, 117
        %v993 = vpop.permute.xlu0 %992
        %994 = vrot.lane.b32.xlu0 %v977, 117
        %v995 = vpop.permute.xlu0 %994
        %vm996 = vcmask 957440
        %v997 = vsel %vm996, %v985, %v987
        %v998 = vsel %vm996, %v987, %v989
        %v999 = vsel %vm996, %v989, %v991
        %v1000 = vsel %vm996, %v991, %v993
        %v1001 = vsel %vm996, %v993, %v995
        %v1007 = vadd.f32 %v963, %v997
        %v1008 = vadd.f32 %v964, %v998
        %v1009 = vadd.f32 %v965, %v999
        %v1010 = vadd.f32 %v966, %v1000
        %v1011 = vadd.f32 %v967, %v1001
        %1012 = vset.pattern.permute.xlu0 12
        %1013 = vperm.xlu0 %1012, %v527
        %v1014 = vpop.permute.xlu0 %1013
        %v1016 = vmul.f32 %v1014, %v872
        %v1017 = vmul.f32 %v1014, %v873
        %v1018 = vmul.f32 %v1014, %v874
        %v1019 = vmul.f32 %v1014, %v875
        %v1020 = vmul.f32 %v1014, %v876
        %v1021 = vmul.f32 %v1014, %v877
        %1028 = vrot.lane.b32.xlu0 %v1016, 116
        %v1029 = vpop.permute.xlu0 %1028
        %1030 = vrot.lane.b32.xlu0 %v1017, 116
        %v1031 = vpop.permute.xlu0 %1030
        %1032 = vrot.lane.b32.xlu0 %v1018, 116
        %v1033 = vpop.permute.xlu0 %1032
        %1034 = vrot.lane.b32.xlu0 %v1019, 116
        %v1035 = vpop.permute.xlu0 %1034
        %1036 = vrot.lane.b32.xlu0 %v1020, 116
        %v1037 = vpop.permute.xlu0 %1036
        %1038 = vrot.lane.b32.xlu0 %v1021, 116
        %v1039 = vpop.permute.xlu0 %1038
        %vm1040 = vcmask 949248
        %v1041 = vsel %vm1040, %v1029, %v1031
        %v1042 = vsel %vm1040, %v1031, %v1033
        %v1043 = vsel %vm1040, %v1033, %v1035
        %v1044 = vsel %vm1040, %v1035, %v1037
        %v1045 = vsel %vm1040, %v1037, %v1039
        %v1051 = vadd.f32 %v1007, %v1041
        %v1052 = vadd.f32 %v1008, %v1042
        %v1053 = vadd.f32 %v1009, %v1043
        %v1054 = vadd.f32 %v1010, %v1044
        %v1055 = vadd.f32 %v1011, %v1045
        %1056 = vset.pattern.permute.xlu0 13
        %1057 = vperm.xlu0 %1056, %v527
        %v1058 = vpop.permute.xlu0 %1057
        %v1060 = vmul.f32 %v1058, %v872
        %v1061 = vmul.f32 %v1058, %v873
        %v1062 = vmul.f32 %v1058, %v874
        %v1063 = vmul.f32 %v1058, %v875
        %v1064 = vmul.f32 %v1058, %v876
        %v1065 = vmul.f32 %v1058, %v877
        %1072 = vrot.lane.b32.xlu0 %v1060, 115
        %v1073 = vpop.permute.xlu0 %1072
        %1074 = vrot.lane.b32.xlu0 %v1061, 115
        %v1075 = vpop.permute.xlu0 %1074
        %1076 = vrot.lane.b32.xlu0 %v1062, 115
        %v1077 = vpop.permute.xlu0 %1076
        %1078 = vrot.lane.b32.xlu0 %v1063, 115
        %v1079 = vpop.permute.xlu0 %1078
        %1080 = vrot.lane.b32.xlu0 %v1064, 115
        %v1081 = vpop.permute.xlu0 %1080
        %1082 = vrot.lane.b32.xlu0 %v1065, 115
        %v1083 = vpop.permute.xlu0 %1082
        %vm1084 = vcmask 941056
        %v1085 = vsel %vm1084, %v1073, %v1075
        %v1086 = vsel %vm1084, %v1075, %v1077
        %v1087 = vsel %vm1084, %v1077, %v1079
        %v1088 = vsel %vm1084, %v1079, %v1081
        %v1089 = vsel %vm1084, %v1081, %v1083
        %v1095 = vadd.f32 %v1051, %v1085
        %v1096 = vadd.f32 %v1052, %v1086
        %v1097 = vadd.f32 %v1053, %v1087
        %v1098 = vadd.f32 %v1054, %v1088
        %v1099 = vadd.f32 %v1055, %v1089
        %1100 = vset.pattern.permute.xlu0 14
        %1101 = vperm.xlu0 %1100, %v527
        %v1102 = vpop.permute.xlu0 %1101
        %v1104 = vmul.f32 %v1102, %v872
        %v1105 = vmul.f32 %v1102, %v873
        %v1106 = vmul.f32 %v1102, %v874
        %v1107 = vmul.f32 %v1102, %v875
        %v1108 = vmul.f32 %v1102, %v876
        %v1109 = vmul.f32 %v1102, %v877
        %1116 = vrot.lane.b32.xlu0 %v1104, 114
        %v1117 = vpop.permute.xlu0 %1116
        %1118 = vrot.lane.b32.xlu0 %v1105, 114
        %v1119 = vpop.permute.xlu0 %1118
        %1120 = vrot.lane.b32.xlu0 %v1106, 114
        %v1121 = vpop.permute.xlu0 %1120
        %1122 = vrot.lane.b32.xlu0 %v1107, 114
        %v1123 = vpop.permute.xlu0 %1122
        %1124 = vrot.lane.b32.xlu0 %v1108, 114
        %v1125 = vpop.permute.xlu0 %1124
        %1126 = vrot.lane.b32.xlu0 %v1109, 114
        %v1127 = vpop.permute.xlu0 %1126
        %vm1128 = vcmask 932864
        %v1129 = vsel %vm1128, %v1117, %v1119
        %v1130 = vsel %vm1128, %v1119, %v1121
        %v1131 = vsel %vm1128, %v1121, %v1123
        %v1132 = vsel %vm1128, %v1123, %v1125
        %v1133 = vsel %vm1128, %v1125, %v1127
        %v1139 = vadd.f32 %v1095, %v1129
        %v1140 = vadd.f32 %v1096, %v1130
        %v1141 = vadd.f32 %v1097, %v1131
        %v1142 = vadd.f32 %v1098, %v1132
        %v1143 = vadd.f32 %v1099, %v1133
        %1144 = vset.pattern.permute.xlu0 15
        %1145 = vperm.xlu0 %1144, %v527
        %v1146 = vpop.permute.xlu0 %1145
        %v1148 = vmul.f32 %v1146, %v872
        %v1149 = vmul.f32 %v1146, %v873
        %v1150 = vmul.f32 %v1146, %v874
        %v1151 = vmul.f32 %v1146, %v875
        %v1152 = vmul.f32 %v1146, %v876
        %v1153 = vmul.f32 %v1146, %v877
        %1160 = vrot.lane.b32.xlu0 %v1148, 113
        %v1161 = vpop.permute.xlu0 %1160
        %1162 = vrot.lane.b32.xlu0 %v1149, 113
        %v1163 = vpop.permute.xlu0 %1162
        %1164 = vrot.lane.b32.xlu0 %v1150, 113
        %v1165 = vpop.permute.xlu0 %1164
        %1166 = vrot.lane.b32.xlu0 %v1151, 113
        %v1167 = vpop.permute.xlu0 %1166
        %1168 = vrot.lane.b32.xlu0 %v1152, 113
        %v1169 = vpop.permute.xlu0 %1168
        %1170 = vrot.lane.b32.xlu0 %v1153, 113
        %v1171 = vpop.permute.xlu0 %1170
        %vm1172 = vcmask 924672
        %v1173 = vsel %vm1172, %v1161, %v1163
        %v1174 = vsel %vm1172, %v1163, %v1165
        %v1175 = vsel %vm1172, %v1165, %v1167
        %v1176 = vsel %vm1172, %v1167, %v1169
        %v1177 = vsel %vm1172, %v1169, %v1171
        %v1183 = vadd.f32 %v1139, %v1173
        %v1184 = vadd.f32 %v1140, %v1174
        %v1185 = vadd.f32 %v1141, %v1175
        %v1186 = vadd.f32 %v1142, %v1176
        %v1187 = vadd.f32 %v1143, %v1177
        %v1188 = vld [vmem:[%s2] sm:$0xf]
        %1190 = vset.pattern.permute.xlu0 0
        %1191 = vperm.xlu0 %1190, %v1188
        %v1192 = vpop.permute.xlu0 %1191
        %v1194 = vadd.f32 %v1183, %v1192
        %v1195 = vadd.f32 %v1184, %v1192
        %v1196 = vadd.f32 %v1185, %v1192
        %v1197 = vadd.f32 %v1186, %v1192
        %v1198 = vadd.f32 %v1187, %v1192
        %vm1199 = vcmp.gt.f32.partialorder %v1194, 0.0
        %vm1200 = vcmp.gt.f32.partialorder %v1195, 0.0
        %vm1201 = vcmp.gt.f32.partialorder %v1196, 0.0
        %vm1202 = vcmp.gt.f32.partialorder %v1197, 0.0
        %vm1203 = vcmp.gt.f32.partialorder %v1198, 0.0
        %v1204 = vmin.f32 %v1194, 0.0
        %v1205 = vmin.f32 %v1195, 0.0
        %v1206 = vmin.f32 %v1196, 0.0
        %v1207 = vmin.f32 %v1197, 0.0
        %v1208 = vmin.f32 %v1198, 0.0
        %v1209 = vmul.f32 %v1204, 1.442695
        %v1210 = vpow.pop %v1209
        %v1211 = vmul.f32 %v1205, 1.442695
        %v1212 = vpow.pop %v1211
        %v1213 = vmul.f32 %v1206, 1.442695
        %v1214 = vpow.pop %v1213
        %v1215 = vmul.f32 %v1207, 1.442695
        %v1216 = vpow.pop %v1215
        %v1217 = vmul.f32 %v1208, 1.442695
        %v1218 = vpow.pop %v1217
        %v1219 = vsub.f32 %v1210, 1.0
        %v1220 = vsub.f32 %v1212, 1.0
        %v1221 = vsub.f32 %v1214, 1.0
        %v1222 = vsub.f32 %v1216, 1.0
        %v1223 = vsub.f32 %v1218, 1.0
        %v1224 = vsel %vm1199, %v1194, %v1219
        %v1225 = vsel %vm1200, %v1195, %v1220
        %v1226 = vsel %vm1201, %v1196, %v1221
        %v1227 = vsel %vm1202, %v1197, %v1222
        %v1228 = vsel %vm1203, %v1198, %v1223
        %v1229 = vld [vmem:[%s3] sm:$0x1f]
        %v1231 = vperm.slane %v1229, 0
        %v1232 = vperm.slane %v1229, 1
        %v1233 = vperm.slane %v1229, 2
        %v1234 = vperm.slane %v1229, 3
        %v1235 = vperm.slane %v1229, 4
        %v1241 = vmul.f32 %v1224, %v1231
        %v1242 = vmul.f32 %v1225, %v1232
        %v1243 = vmul.f32 %v1226, %v1233
        %v1244 = vmul.f32 %v1227, %v1234
        %v1245 = vmul.f32 %v1228, %v1235
        %v1251 = vrot.slane %v1242, 4
        %v1252 = vrot.slane %v1244, 4
        %v1253 = vsel %vm437, %v1241, %v1251
        %v1254 = vsel %vm437, %v1243, %v1252
        %1255 = vrot.lane.b32.xlu0 %v1253, 7
        %v1256 = vpop.permute.xlu0 %1255
        %1257 = vrot.lane.b32.xlu0 %v1254, 7
        %v1258 = vpop.permute.xlu0 %1257
        %1259 = vrot.lane.b32.xlu0 %v1245, 7
        %v1260 = vpop.permute.xlu0 %1259
        %v1261 = vrot.slane %v1256, 4
        %v1262 = vrot.slane %v1258, 4
        %vm1263 = vcmask 56320
        %v1264 = vsel %vm1263, %v1261, %v1256
        %v1265 = vsel %vm437, %v1261, %v1262
        %v1266 = vsel %vm1263, %v1265, %v1258
        %v1267 = vsel %vm1263, %v1262, %v1260
        %vm1271 = vcmask 1043512
        %vm1272 = vcmask 1047556
        %vm1273 = vmor %vm1272, %vm1271
        %1274 = vst.msk [vmem:[#allocation2] sm:$0xff] %vm1273, %v1264
        %1275 = vst [vmem:[#allocation2 + $0x8] sm:$0xff] %v1266
        %vm1276 = vcmask 1035264
        %1277 = vst.msk [vmem:[#allocation2 + $0x10] sm:$0xf] %vm1276, %v1267
        %v1278 = vld [vmem:[%s4] sm:$0xff]
        %v1279 = vld [vmem:[#allocation2] sm:$0xff]
        %v1280 = vld [vmem:[#allocation2 + $0x8] sm:$0xff]
        %v1281 = vld [vmem:[#allocation2 + $0x10] sm:$0xf]
        %1283 = vrot.lane.b32.xlu0 %v1278, 124
        %v1284 = vpop.permute.xlu0 %1283
        %1288 = vst [vmem:[#allocation1] ss:$2 sm:$0xff] %v1279
        %s1289 = scalar_lea.vmem [#allocation1], 16
        %1290 = vst [vmem:[%s1289] ss:$2 sm:$0xff] %v1280
        %s1291 = scalar_lea.vmem [#allocation1], 32
        %1292 = vst [vmem:[%s1291] ss:$2 sm:$0xff] %v1281
        %v1293 = vld.sshfl [vmem:[#allocation1] sm:$0xff pattern:$0x75316420]
        %v1294 = vld.sshfl [vmem:[#allocation1 + $0x8] sm:$0xff pattern:$0x75316420]
        %v1295 = vld.sshfl [vmem:[#allocation1 + $0x10] sm:$0xff pattern:$0x75316420]
        %v1296 = vld.sshfl [vmem:[#allocation1 + $0x18] sm:$0xff pattern:$0x75316420]
        %v1297 = vld.sshfl [vmem:[#allocation1 + $0x20] sm:$0xff pattern:$0x75316420]
        %1298 = vrot.lane.b32.xlu0 %v1293, 127
        %v1299 = vpop.permute.xlu0 %1298
        %1300 = vrot.lane.b32.xlu0 %v1294, 127
        %v1301 = vpop.permute.xlu0 %1300
        %1302 = vrot.lane.b32.xlu0 %v1295, 127
        %v1303 = vpop.permute.xlu0 %1302
        %1304 = vrot.lane.b32.xlu0 %v1296, 127
        %v1305 = vpop.permute.xlu0 %1304
        %1306 = vrot.lane.b32.xlu0 %v1297, 127
        %v1307 = vpop.permute.xlu0 %1306
        %v1308 = vsel %vm579, %v1299, %v1301
        %v1309 = vsel %vm579, %v1301, %v1303
        %v1310 = vsel %vm579, %v1303, %v1305
        %v1311 = vsel %vm579, %v1305, %v1307
        %vm1312 = vcmask 31744
        %v1313 = vsel %vm1312, %v1284, 0
        %v1315 = vsel %vm437, %v1308, 0
        %v1317 = vsel %vm437, %v1309, 0
        %v1319 = vsel %vm437, %v1310, 0
        %v1321 = vsel %vm437, %v1311, 0
        %v1323 = vsel %vm437, %v1307, 0
        %1325 = vmatpush.msra.mxu0 0.0
        %1326 = vmatpush.msra.mxu0 0.0
        %1327 = vmatpush.msra.mxu0 0.0
        %1328 = vmatpush.msra.mxu0 0.0
        %1329 = vmatpush.msra.mxu0 0.0
        %1330 = vmatpush.msra.mxu0 0.0
        %1331 = vmatpush.msra.mxu0 0.0
        %1332 = vmatpush.msra.mxu0 0.0
        %1333 = vmatpush.msra.mxu0 0.0
        %1334 = vmatpush.msra.mxu0 0.0
        %1335 = vmatpush.msra.mxu0 0.0
        %1336 = vmatpush.msra.mxu0 0.0
        %1337 = vmatpush.msra.mxu0 0.0
        %1338 = vmatpush.msra.mxu0 0.0
        %1339 = vmatpush.msra.mxu0 0.0
        %1340 = vmatpush.msra.mxu0 %v1315
        %1341 = vmatmul.f32.gmra.mxu0 %v1313
        %v1342 = vpop.f32.mrf.mxu0
        %v1343 = vadd.f32 0.0, %v1342
        %1344 = vdwg.mxu0
        %1345 = vmatpush.msra.mxu0 0.0
        %1346 = vmatpush.msra.mxu0 0.0
        %1347 = vmatpush.msra.mxu0 0.0
        %1348 = vmatpush.msra.mxu0 0.0
        %1349 = vmatpush.msra.mxu0 0.0
        %1350 = vmatpush.msra.mxu0 0.0
        %1351 = vmatpush.msra.mxu0 0.0
        %1352 = vmatpush.msra.mxu0 0.0
        %1353 = vmatpush.msra.mxu0 0.0
        %1354 = vmatpush.msra.mxu0 0.0
        %1355 = vmatpush.msra.mxu0 0.0
        %1356 = vmatpush.msra.mxu0 0.0
        %1357 = vmatpush.msra.mxu0 0.0
        %1358 = vmatpush.msra.mxu0 0.0
        %1359 = vmatpush.msra.mxu0 0.0
        %1360 = vmatpush.msra.mxu0 %v1317
        %1361 = vmatmul.f32.gmra.mxu0 %v1313
        %v1362 = vpop.f32.mrf.mxu0
        %v1363 = vadd.f32 0.0, %v1362
        %1364 = vdwg.mxu0
        %1365 = vmatpush.msra.mxu0 0.0
        %1366 = vmatpush.msra.mxu0 0.0
        %1367 = vmatpush.msra.mxu0 0.0
        %1368 = vmatpush.msra.mxu0 0.0
        %1369 = vmatpush.msra.mxu0 0.0
        %1370 = vmatpush.msra.mxu0 0.0
        %1371 = vmatpush.msra.mxu0 0.0
        %1372 = vmatpush.msra.mxu0 0.0
        %1373 = vmatpush.msra.mxu0 0.0
        %1374 = vmatpush.msra.mxu0 0.0
        %1375 = vmatpush.msra.mxu0 0.0
        %1376 = vmatpush.msra.mxu0 0.0
        %1377 = vmatpush.msra.mxu0 0.0
        %1378 = vmatpush.msra.mxu0 0.0
        %1379 = vmatpush.msra.mxu0 0.0
        %1380 = vmatpush.msra.mxu0 %v1319
        %1381 = vmatmul.f32.gmra.mxu0 %v1313
        %v1382 = vpop.f32.mrf.mxu0
        %v1383 = vadd.f32 0.0, %v1382
        %1384 = vdwg.mxu0
        %1385 = vmatpush.msra.mxu0 0.0
        %1386 = vmatpush.msra.mxu0 0.0
        %1387 = vmatpush.msra.mxu0 0.0
        %1388 = vmatpush.msra.mxu0 0.0
        %1389 = vmatpush.msra.mxu0 0.0
        %1390 = vmatpush.msra.mxu0 0.0
        %1391 = vmatpush.msra.mxu0 0.0
        %1392 = vmatpush.msra.mxu0 0.0
        %1393 = vmatpush.msra.mxu0 0.0
        %1394 = vmatpush.msra.mxu0 0.0
        %1395 = vmatpush.msra.mxu0 0.0
        %1396 = vmatpush.msra.mxu0 0.0
        %1397 = vmatpush.msra.mxu0 0.0
        %1398 = vmatpush.msra.mxu0 0.0
        %1399 = vmatpush.msra.mxu0 0.0
        %1400 = vmatpush.msra.mxu0 %v1321
        %1401 = vmatmul.f32.gmra.mxu0 %v1313
        %v1402 = vpop.f32.mrf.mxu0
        %v1403 = vadd.f32 0.0, %v1402
        %1404 = vdwg.mxu0
        %1405 = vmatpush.msra.mxu0 0.0
        %1406 = vmatpush.msra.mxu0 0.0
        %1407 = vmatpush.msra.mxu0 0.0
        %1408 = vmatpush.msra.mxu0 0.0
        %1409 = vmatpush.msra.mxu0 0.0
        %1410 = vmatpush.msra.mxu0 0.0
        %1411 = vmatpush.msra.mxu0 0.0
        %1412 = vmatpush.msra.mxu0 0.0
        %1413 = vmatpush.msra.mxu0 0.0
        %1414 = vmatpush.msra.mxu0 0.0
        %1415 = vmatpush.msra.mxu0 0.0
        %1416 = vmatpush.msra.mxu0 0.0
        %1417 = vmatpush.msra.mxu0 0.0
        %1418 = vmatpush.msra.mxu0 0.0
        %1419 = vmatpush.msra.mxu0 0.0
        %1420 = vmatpush.msra.mxu0 %v1323
        %1421 = vmatmul.f32.gmra.mxu0 %v1313
        %v1422 = vpop.f32.mrf.mxu0
        %v1423 = vadd.f32 0.0, %v1422
        %1424 = vdwg.mxu0
        %1425 = vst [vmem:[#allocation1] ss:$2 sm:$0xff] %v1279
        %s1426 = scalar_lea.vmem [#allocation1], 16
        %1427 = vst [vmem:[%s1426] ss:$2 sm:$0xff] %v1280
        %s1428 = scalar_lea.vmem [#allocation1], 32
        %1429 = vst [vmem:[%s1428] ss:$2 sm:$0xff] %v1281
        %v1430 = vld.sshfl [vmem:[#allocation1] sm:$0xff pattern:$0x75316420]
        %v1431 = vld.sshfl [vmem:[#allocation1 + $0x8] sm:$0xff pattern:$0x75316420]
        %v1432 = vld.sshfl [vmem:[#allocation1 + $0x10] sm:$0xff pattern:$0x75316420]
        %v1433 = vld.sshfl [vmem:[#allocation1 + $0x18] sm:$0xff pattern:$0x75316420]
        %v1434 = vld.sshfl [vmem:[#allocation1 + $0x20] sm:$0xff pattern:$0x75316420]
        %v1435 = vsel %vm1312, %v1278, 0
        %v1437 = vsel %vm437, %v1430, 0
        %v1439 = vsel %vm437, %v1431, 0
        %v1441 = vsel %vm437, %v1432, 0
        %v1443 = vsel %vm437, %v1433, 0
        %v1445 = vsel %vm437, %v1434, 0
        %1447 = vmatpush.msra.mxu0 0.0
        %1448 = vmatpush.msra.mxu0 0.0
        %1449 = vmatpush.msra.mxu0 0.0
        %1450 = vmatpush.msra.mxu0 0.0
        %1451 = vmatpush.msra.mxu0 0.0
        %1452 = vmatpush.msra.mxu0 0.0
        %1453 = vmatpush.msra.mxu0 0.0
        %1454 = vmatpush.msra.mxu0 0.0
        %1455 = vmatpush.msra.mxu0 0.0
        %1456 = vmatpush.msra.mxu0 0.0
        %1457 = vmatpush.msra.mxu0 0.0
        %1458 = vmatpush.msra.mxu0 0.0
        %1459 = vmatpush.msra.mxu0 0.0
        %1460 = vmatpush.msra.mxu0 0.0
        %1461 = vmatpush.msra.mxu0 0.0
        %1462 = vmatpush.msra.mxu0 %v1437
        %1463 = vmatmul.f32.gmra.mxu0 %v1435
        %v1464 = vpop.f32.mrf.mxu0
        %v1465 = vadd.f32 %v1343, %v1464
        %1466 = vdwg.mxu0
        %1467 = vmatpush.msra.mxu0 0.0
        %1468 = vmatpush.msra.mxu0 0.0
        %1469 = vmatpush.msra.mxu0 0.0
        %1470 = vmatpush.msra.mxu0 0.0
        %1471 = vmatpush.msra.mxu0 0.0
        %1472 = vmatpush.msra.mxu0 0.0
        %1473 = vmatpush.msra.mxu0 0.0
        %1474 = vmatpush.msra.mxu0 0.0
        %1475 = vmatpush.msra.mxu0 0.0
        %1476 = vmatpush.msra.mxu0 0.0
        %1477 = vmatpush.msra.mxu0 0.0
        %1478 = vmatpush.msra.mxu0 0.0
        %1479 = vmatpush.msra.mxu0 0.0
        %1480 = vmatpush.msra.mxu0 0.0
        %1481 = vmatpush.msra.mxu0 0.0
        %1482 = vmatpush.msra.mxu0 %v1439
        %1483 = vmatmul.f32.gmra.mxu0 %v1435
        %v1484 = vpop.f32.mrf.mxu0
        %v1485 = vadd.f32 %v1363, %v1484
        %1486 = vdwg.mxu0
        %1487 = vmatpush.msra.mxu0 0.0
        %1488 = vmatpush.msra.mxu0 0.0
        %1489 = vmatpush.msra.mxu0 0.0
        %1490 = vmatpush.msra.mxu0 0.0
        %1491 = vmatpush.msra.mxu0 0.0
        %1492 = vmatpush.msra.mxu0 0.0
        %1493 = vmatpush.msra.mxu0 0.0
        %1494 = vmatpush.msra.mxu0 0.0
        %1495 = vmatpush.msra.mxu0 0.0
        %1496 = vmatpush.msra.mxu0 0.0
        %1497 = vmatpush.msra.mxu0 0.0
        %1498 = vmatpush.msra.mxu0 0.0
        %1499 = vmatpush.msra.mxu0 0.0
        %1500 = vmatpush.msra.mxu0 0.0
        %1501 = vmatpush.msra.mxu0 0.0
        %1502 = vmatpush.msra.mxu0 %v1441
        %1503 = vmatmul.f32.gmra.mxu0 %v1435
        %v1504 = vpop.f32.mrf.mxu0
        %v1505 = vadd.f32 %v1383, %v1504
        %1506 = vdwg.mxu0
        %1507 = vmatpush.msra.mxu0 0.0
        %1508 = vmatpush.msra.mxu0 0.0
        %1509 = vmatpush.msra.mxu0 0.0
        %1510 = vmatpush.msra.mxu0 0.0
        %1511 = vmatpush.msra.mxu0 0.0
        %1512 = vmatpush.msra.mxu0 0.0
        %1513 = vmatpush.msra.mxu0 0.0
        %1514 = vmatpush.msra.mxu0 0.0
        %1515 = vmatpush.msra.mxu0 0.0
        %1516 = vmatpush.msra.mxu0 0.0
        %1517 = vmatpush.msra.mxu0 0.0
        %1518 = vmatpush.msra.mxu0 0.0
        %1519 = vmatpush.msra.mxu0 0.0
        %1520 = vmatpush.msra.mxu0 0.0
        %1521 = vmatpush.msra.mxu0 0.0
        %1522 = vmatpush.msra.mxu0 %v1443
        %1523 = vmatmul.f32.gmra.mxu0 %v1435
        %v1524 = vpop.f32.mrf.mxu0
        %v1525 = vadd.f32 %v1403, %v1524
        %1526 = vdwg.mxu0
        %1527 = vmatpush.msra.mxu0 0.0
        %1528 = vmatpush.msra.mxu0 0.0
        %1529 = vmatpush.msra.mxu0 0.0
        %1530 = vmatpush.msra.mxu0 0.0
        %1531 = vmatpush.msra.mxu0 0.0
        %1532 = vmatpush.msra.mxu0 0.0
        %1533 = vmatpush.msra.mxu0 0.0
        %1534 = vmatpush.msra.mxu0 0.0
        %1535 = vmatpush.msra.mxu0 0.0
        %1536 = vmatpush.msra.mxu0 0.0
        %1537 = vmatpush.msra.mxu0 0.0
        %1538 = vmatpush.msra.mxu0 0.0
        %1539 = vmatpush.msra.mxu0 0.0
        %1540 = vmatpush.msra.mxu0 0.0
        %1541 = vmatpush.msra.mxu0 0.0
        %1542 = vmatpush.msra.mxu0 %v1445
        %1543 = vmatmul.f32.gmra.mxu0 %v1435
        %v1544 = vpop.f32.mrf.mxu0
        %v1545 = vadd.f32 %v1423, %v1544
        %1546 = vdwg.mxu0
        %v1547 = vld [vmem:[%s4] sm:$0xff]
        %v1548 = vld [vmem:[#allocation2] sm:$0xff]
        %v1549 = vld [vmem:[#allocation2 + $0x8] sm:$0xff]
        %v1550 = vld [vmem:[#allocation2 + $0x10] sm:$0xf]
        %1552 = vrot.lane.b32.xlu0 %v1547, 120
        %v1553 = vpop.permute.xlu0 %1552
        %1557 = vst [vmem:[#allocation1] ss:$2 sm:$0xff] %v1548
        %s1558 = scalar_lea.vmem [#allocation1], 16
        %1559 = vst [vmem:[%s1558] ss:$2 sm:$0xff] %v1549
        %s1560 = scalar_lea.vmem [#allocation1], 32
        %1561 = vst [vmem:[%s1560] ss:$2 sm:$0xff] %v1550
        %v1562 = vld.sshfl [vmem:[#allocation1] sm:$0xff pattern:$0x75316420]
        %v1563 = vld.sshfl [vmem:[#allocation1 + $0x8] sm:$0xff pattern:$0x75316420]
        %v1564 = vld.sshfl [vmem:[#allocation1 + $0x10] sm:$0xff pattern:$0x75316420]
        %v1565 = vld.sshfl [vmem:[#allocation1 + $0x18] sm:$0xff pattern:$0x75316420]
        %v1566 = vld.sshfl [vmem:[#allocation1 + $0x20] sm:$0xff pattern:$0x75316420]
        %1567 = vrot.lane.b32.xlu0 %v1562, 126
        %v1568 = vpop.permute.xlu0 %1567
        %1569 = vrot.lane.b32.xlu0 %v1563, 126
        %v1570 = vpop.permute.xlu0 %1569
        %1571 = vrot.lane.b32.xlu0 %v1564, 126
        %v1572 = vpop.permute.xlu0 %1571
        %1573 = vrot.lane.b32.xlu0 %v1565, 126
        %v1574 = vpop.permute.xlu0 %1573
        %1575 = vrot.lane.b32.xlu0 %v1566, 126
        %v1576 = vpop.permute.xlu0 %1575
        %v1577 = vsel %vm618, %v1568, %v1570
        %v1578 = vsel %vm618, %v1570, %v1572
        %v1579 = vsel %vm618, %v1572, %v1574
        %v1580 = vsel %vm618, %v1574, %v1576
        %v1581 = vsel %vm1312, %v1553, 0
        %v1583 = vsel %vm437, %v1577, 0
        %v1585 = vsel %vm437, %v1578, 0
        %v1587 = vsel %vm437, %v1579, 0
        %v1589 = vsel %vm437, %v1580, 0
        %v1591 = vsel %vm437, %v1576, 0
        %1593 = vmatpush.msra.mxu0 0.0
        %1594 = vmatpush.msra.mxu0 0.0
        %1595 = vmatpush.msra.mxu0 0.0
        %1596 = vmatpush.msra.mxu0 0.0
        %1597 = vmatpush.msra.mxu0 0.0
        %1598 = vmatpush.msra.mxu0 0.0
        %1599 = vmatpush.msra.mxu0 0.0
        %1600 = vmatpush.msra.mxu0 0.0
        %1601 = vmatpush.msra.mxu0 0.0
        %1602 = vmatpush.msra.mxu0 0.0
        %1603 = vmatpush.msra.mxu0 0.0
        %1604 = vmatpush.msra.mxu0 0.0
        %1605 = vmatpush.msra.mxu0 0.0
        %1606 = vmatpush.msra.mxu0 0.0
        %1607 = vmatpush.msra.mxu0 0.0
        %1608 = vmatpush.msra.mxu0 %v1583
        %1609 = vmatmul.f32.gmra.mxu0 %v1581
        %v1610 = vpop.f32.mrf.mxu0
        %v1611 = vadd.f32 0.0, %v1610
        %1612 = vdwg.mxu0
        %1613 = vmatpush.msra.mxu0 0.0
        %1614 = vmatpush.msra.mxu0 0.0
        %1615 = vmatpush.msra.mxu0 0.0
        %1616 = vmatpush.msra.mxu0 0.0
        %1617 = vmatpush.msra.mxu0 0.0
        %1618 = vmatpush.msra.mxu0 0.0
        %1619 = vmatpush.msra.mxu0 0.0
        %1620 = vmatpush.msra.mxu0 0.0
        %1621 = vmatpush.msra.mxu0 0.0
        %1622 = vmatpush.msra.mxu0 0.0
        %1623 = vmatpush.msra.mxu0 0.0
        %1624 = vmatpush.msra.mxu0 0.0
        %1625 = vmatpush.msra.mxu0 0.0
        %1626 = vmatpush.msra.mxu0 0.0
        %1627 = vmatpush.msra.mxu0 0.0
        %1628 = vmatpush.msra.mxu0 %v1585
        %1629 = vmatmul.f32.gmra.mxu0 %v1581
        %v1630 = vpop.f32.mrf.mxu0
        %v1631 = vadd.f32 0.0, %v1630
        %1632 = vdwg.mxu0
        %1633 = vmatpush.msra.mxu0 0.0
        %1634 = vmatpush.msra.mxu0 0.0
        %1635 = vmatpush.msra.mxu0 0.0
        %1636 = vmatpush.msra.mxu0 0.0
        %1637 = vmatpush.msra.mxu0 0.0
        %1638 = vmatpush.msra.mxu0 0.0
        %1639 = vmatpush.msra.mxu0 0.0
        %1640 = vmatpush.msra.mxu0 0.0
        %1641 = vmatpush.msra.mxu0 0.0
        %1642 = vmatpush.msra.mxu0 0.0
        %1643 = vmatpush.msra.mxu0 0.0
        %1644 = vmatpush.msra.mxu0 0.0
        %1645 = vmatpush.msra.mxu0 0.0
        %1646 = vmatpush.msra.mxu0 0.0
        %1647 = vmatpush.msra.mxu0 0.0
        %1648 = vmatpush.msra.mxu0 %v1587
        %1649 = vmatmul.f32.gmra.mxu0 %v1581
        %v1650 = vpop.f32.mrf.mxu0
        %v1651 = vadd.f32 0.0, %v1650
        %1652 = vdwg.mxu0
        %1653 = vmatpush.msra.mxu0 0.0
        %1654 = vmatpush.msra.mxu0 0.0
        %1655 = vmatpush.msra.mxu0 0.0
        %1656 = vmatpush.msra.mxu0 0.0
        %1657 = vmatpush.msra.mxu0 0.0
        %1658 = vmatpush.msra.mxu0 0.0
        %1659 = vmatpush.msra.mxu0 0.0
        %1660 = vmatpush.msra.mxu0 0.0
        %1661 = vmatpush.msra.mxu0 0.0
        %1662 = vmatpush.msra.mxu0 0.0
        %1663 = vmatpush.msra.mxu0 0.0
        %1664 = vmatpush.msra.mxu0 0.0
        %1665 = vmatpush.msra.mxu0 0.0
        %1666 = vmatpush.msra.mxu0 0.0
        %1667 = vmatpush.msra.mxu0 0.0
        %1668 = vmatpush.msra.mxu0 %v1589
        %1669 = vmatmul.f32.gmra.mxu0 %v1581
        %v1670 = vpop.f32.mrf.mxu0
        %v1671 = vadd.f32 0.0, %v1670
        %1672 = vdwg.mxu0
        %1673 = vmatpush.msra.mxu0 0.0
        %1674 = vmatpush.msra.mxu0 0.0
        %1675 = vmatpush.msra.mxu0 0.0
        %1676 = vmatpush.msra.mxu0 0.0
        %1677 = vmatpush.msra.mxu0 0.0
        %1678 = vmatpush.msra.mxu0 0.0
        %1679 = vmatpush.msra.mxu0 0.0
        %1680 = vmatpush.msra.mxu0 0.0
        %1681 = vmatpush.msra.mxu0 0.0
        %1682 = vmatpush.msra.mxu0 0.0
        %1683 = vmatpush.msra.mxu0 0.0
        %1684 = vmatpush.msra.mxu0 0.0
        %1685 = vmatpush.msra.mxu0 0.0
        %1686 = vmatpush.msra.mxu0 0.0
        %1687 = vmatpush.msra.mxu0 0.0
        %1688 = vmatpush.msra.mxu0 %v1591
        %1689 = vmatmul.f32.gmra.mxu0 %v1581
        %v1690 = vpop.f32.mrf.mxu0
        %v1691 = vadd.f32 0.0, %v1690
        %1692 = vdwg.mxu0
        %v1693 = vadd.f32 %v1465, %v1611
        %v1694 = vadd.f32 %v1485, %v1631
        %v1695 = vadd.f32 %v1505, %v1651
        %v1696 = vadd.f32 %v1525, %v1671
        %v1697 = vadd.f32 %v1545, %v1691
        %v1698 = vld [vmem:[%s4] sm:$0xff]
        %v1699 = vld [vmem:[#allocation2] sm:$0xff]
        %v1700 = vld [vmem:[#allocation2 + $0x8] sm:$0xff]
        %v1701 = vld [vmem:[#allocation2 + $0x10] sm:$0xf]
        %1703 = vrot.lane.b32.xlu0 %v1698, 116
        %v1704 = vpop.permute.xlu0 %1703
        %1708 = vst [vmem:[#allocation1] ss:$2 sm:$0xff] %v1699
        %s1709 = scalar_lea.vmem [#allocation1], 16
        %1710 = vst [vmem:[%s1709] ss:$2 sm:$0xff] %v1700
        %s1711 = scalar_lea.vmem [#allocation1], 32
        %1712 = vst [vmem:[%s1711] ss:$2 sm:$0xff] %v1701
        %v1713 = vld.sshfl [vmem:[#allocation1] sm:$0xff pattern:$0x75316420]
        %v1714 = vld.sshfl [vmem:[#allocation1 + $0x8] sm:$0xff pattern:$0x75316420]
        %v1715 = vld.sshfl [vmem:[#allocation1 + $0x10] sm:$0xff pattern:$0x75316420]
        %v1716 = vld.sshfl [vmem:[#allocation1 + $0x18] sm:$0xff pattern:$0x75316420]
        %v1717 = vld.sshfl [vmem:[#allocation1 + $0x20] sm:$0xff pattern:$0x75316420]
        %1718 = vrot.lane.b32.xlu0 %v1713, 125
        %v1719 = vpop.permute.xlu0 %1718
        %1720 = vrot.lane.b32.xlu0 %v1714, 125
        %v1721 = vpop.permute.xlu0 %1720
        %1722 = vrot.lane.b32.xlu0 %v1715, 125
        %v1723 = vpop.permute.xlu0 %1722
        %1724 = vrot.lane.b32.xlu0 %v1716, 125
        %v1725 = vpop.permute.xlu0 %1724
        %1726 = vrot.lane.b32.xlu0 %v1717, 125
        %v1727 = vpop.permute.xlu0 %1726
        %v1728 = vsel %vm657, %v1719, %v1721
        %v1729 = vsel %vm657, %v1721, %v1723
        %v1730 = vsel %vm657, %v1723, %v1725
        %v1731 = vsel %vm657, %v1725, %v1727
        %v1732 = vsel %vm1312, %v1704, 0
        %v1734 = vsel %vm437, %v1728, 0
        %v1736 = vsel %vm437, %v1729, 0
        %v1738 = vsel %vm437, %v1730, 0
        %v1740 = vsel %vm437, %v1731, 0
        %v1742 = vsel %vm437, %v1727, 0
        %1744 = vmatpush.msra.mxu0 0.0
        %1745 = vmatpush.msra.mxu0 0.0
        %1746 = vmatpush.msra.mxu0 0.0
        %1747 = vmatpush.msra.mxu0 0.0
        %1748 = vmatpush.msra.mxu0 0.0
        %1749 = vmatpush.msra.mxu0 0.0
        %1750 = vmatpush.msra.mxu0 0.0
        %1751 = vmatpush.msra.mxu0 0.0
        %1752 = vmatpush.msra.mxu0 0.0
        %1753 = vmatpush.msra.mxu0 0.0
        %1754 = vmatpush.msra.mxu0 0.0
        %1755 = vmatpush.msra.mxu0 0.0
        %1756 = vmatpush.msra.mxu0 0.0
        %1757 = vmatpush.msra.mxu0 0.0
        %1758 = vmatpush.msra.mxu0 0.0
        %1759 = vmatpush.msra.mxu0 %v1734
        %1760 = vmatmul.f32.gmra.mxu0 %v1732
        %v1761 = vpop.f32.mrf.mxu0
        %v1762 = vadd.f32 0.0, %v1761
        %1763 = vdwg.mxu0
        %1764 = vmatpush.msra.mxu0 0.0
        %1765 = vmatpush.msra.mxu0 0.0
        %1766 = vmatpush.msra.mxu0 0.0
        %1767 = vmatpush.msra.mxu0 0.0
        %1768 = vmatpush.msra.mxu0 0.0
        %1769 = vmatpush.msra.mxu0 0.0
        %1770 = vmatpush.msra.mxu0 0.0
        %1771 = vmatpush.msra.mxu0 0.0
        %1772 = vmatpush.msra.mxu0 0.0
        %1773 = vmatpush.msra.mxu0 0.0
        %1774 = vmatpush.msra.mxu0 0.0
        %1775 = vmatpush.msra.mxu0 0.0
        %1776 = vmatpush.msra.mxu0 0.0
        %1777 = vmatpush.msra.mxu0 0.0
        %1778 = vmatpush.msra.mxu0 0.0
        %1779 = vmatpush.msra.mxu0 %v1736
        %1780 = vmatmul.f32.gmra.mxu0 %v1732
        %v1781 = vpop.f32.mrf.mxu0
        %v1782 = vadd.f32 0.0, %v1781
        %1783 = vdwg.mxu0
        %1784 = vmatpush.msra.mxu0 0.0
        %1785 = vmatpush.msra.mxu0 0.0
        %1786 = vmatpush.msra.mxu0 0.0
        %1787 = vmatpush.msra.mxu0 0.0
        %1788 = vmatpush.msra.mxu0 0.0
        %1789 = vmatpush.msra.mxu0 0.0
        %1790 = vmatpush.msra.mxu0 0.0
        %1791 = vmatpush.msra.mxu0 0.0
        %1792 = vmatpush.msra.mxu0 0.0
        %1793 = vmatpush.msra.mxu0 0.0
        %1794 = vmatpush.msra.mxu0 0.0
        %1795 = vmatpush.msra.mxu0 0.0
        %1796 = vmatpush.msra.mxu0 0.0
        %1797 = vmatpush.msra.mxu0 0.0
        %1798 = vmatpush.msra.mxu0 0.0
        %1799 = vmatpush.msra.mxu0 %v1738
        %1800 = vmatmul.f32.gmra.mxu0 %v1732
        %v1801 = vpop.f32.mrf.mxu0
        %v1802 = vadd.f32 0.0, %v1801
        %1803 = vdwg.mxu0
        %1804 = vmatpush.msra.mxu0 0.0
        %1805 = vmatpush.msra.mxu0 0.0
        %1806 = vmatpush.msra.mxu0 0.0
        %1807 = vmatpush.msra.mxu0 0.0
        %1808 = vmatpush.msra.mxu0 0.0
        %1809 = vmatpush.msra.mxu0 0.0
        %1810 = vmatpush.msra.mxu0 0.0
        %1811 = vmatpush.msra.mxu0 0.0
        %1812 = vmatpush.msra.mxu0 0.0
        %1813 = vmatpush.msra.mxu0 0.0
        %1814 = vmatpush.msra.mxu0 0.0
        %1815 = vmatpush.msra.mxu0 0.0
        %1816 = vmatpush.msra.mxu0 0.0
        %1817 = vmatpush.msra.mxu0 0.0
        %1818 = vmatpush.msra.mxu0 0.0
        %1819 = vmatpush.msra.mxu0 %v1740
        %1820 = vmatmul.f32.gmra.mxu0 %v1732
        %v1821 = vpop.f32.mrf.mxu0
        %v1822 = vadd.f32 0.0, %v1821
        %1823 = vdwg.mxu0
        %1824 = vmatpush.msra.mxu0 0.0
        %1825 = vmatpush.msra.mxu0 0.0
        %1826 = vmatpush.msra.mxu0 0.0
        %1827 = vmatpush.msra.mxu0 0.0
        %1828 = vmatpush.msra.mxu0 0.0
        %1829 = vmatpush.msra.mxu0 0.0
        %1830 = vmatpush.msra.mxu0 0.0
        %1831 = vmatpush.msra.mxu0 0.0
        %1832 = vmatpush.msra.mxu0 0.0
        %1833 = vmatpush.msra.mxu0 0.0
        %1834 = vmatpush.msra.mxu0 0.0
        %1835 = vmatpush.msra.mxu0 0.0
        %1836 = vmatpush.msra.mxu0 0.0
        %1837 = vmatpush.msra.mxu0 0.0
        %1838 = vmatpush.msra.mxu0 0.0
        %1839 = vmatpush.msra.mxu0 %v1742
        %1840 = vmatmul.f32.gmra.mxu0 %v1732
        %v1841 = vpop.f32.mrf.mxu0
        %v1842 = vadd.f32 0.0, %v1841
        %1843 = vdwg.mxu0
        %v1844 = vadd.f32 %v1693, %v1762
        %v1845 = vadd.f32 %v1694, %v1782
        %v1846 = vadd.f32 %v1695, %v1802
        %v1847 = vadd.f32 %v1696, %v1822
        %v1848 = vadd.f32 %v1697, %v1842
        %v1849 = vld [vmem:[%s4] sm:$0xff]
        %v1850 = vld [vmem:[#allocation2] sm:$0xff]
        %v1851 = vld [vmem:[#allocation2 + $0x8] sm:$0xff]
        %v1852 = vld [vmem:[#allocation2 + $0x10] sm:$0xf]
        %1854 = vrot.lane.b32.xlu0 %v1849, 112
        %v1855 = vpop.permute.xlu0 %1854
        %1859 = vst [vmem:[#allocation1] ss:$2 sm:$0xff] %v1850
        %s1860 = scalar_lea.vmem [#allocation1], 16
        %1861 = vst [vmem:[%s1860] ss:$2 sm:$0xff] %v1851
        %s1862 = scalar_lea.vmem [#allocation1], 32
        %1863 = vst [vmem:[%s1862] ss:$2 sm:$0xff] %v1852
        %v1864 = vld.sshfl [vmem:[#allocation1] sm:$0xff pattern:$0x75316420]
        %v1865 = vld.sshfl [vmem:[#allocation1 + $0x8] sm:$0xff pattern:$0x75316420]
        %v1866 = vld.sshfl [vmem:[#allocation1 + $0x10] sm:$0xff pattern:$0x75316420]
        %v1867 = vld.sshfl [vmem:[#allocation1 + $0x18] sm:$0xff pattern:$0x75316420]
        %v1868 = vld.sshfl [vmem:[#allocation1 + $0x20] sm:$0xff pattern:$0x75316420]
        %1869 = vrot.lane.b32.xlu0 %v1864, 124
        %v1870 = vpop.permute.xlu0 %1869
        %1871 = vrot.lane.b32.xlu0 %v1865, 124
        %v1872 = vpop.permute.xlu0 %1871
        %1873 = vrot.lane.b32.xlu0 %v1866, 124
        %v1874 = vpop.permute.xlu0 %1873
        %1875 = vrot.lane.b32.xlu0 %v1867, 124
        %v1876 = vpop.permute.xlu0 %1875
        %1877 = vrot.lane.b32.xlu0 %v1868, 124
        %v1878 = vpop.permute.xlu0 %1877
        %v1879 = vsel %vm696, %v1870, %v1872
        %v1880 = vsel %vm696, %v1872, %v1874
        %v1881 = vsel %vm696, %v1874, %v1876
        %v1882 = vsel %vm696, %v1876, %v1878
        %v1883 = vsel %vm1312, %v1855, 0
        %v1885 = vsel %vm437, %v1879, 0
        %v1887 = vsel %vm437, %v1880, 0
        %v1889 = vsel %vm437, %v1881, 0
        %v1891 = vsel %vm437, %v1882, 0
        %v1893 = vsel %vm437, %v1878, 0
        %1895 = vmatpush.msra.mxu0 0.0
        %1896 = vmatpush.msra.mxu0 0.0
        %1897 = vmatpush.msra.mxu0 0.0
        %1898 = vmatpush.msra.mxu0 0.0
        %1899 = vmatpush.msra.mxu0 0.0
        %1900 = vmatpush.msra.mxu0 0.0
        %1901 = vmatpush.msra.mxu0 0.0
        %1902 = vmatpush.msra.mxu0 0.0
        %1903 = vmatpush.msra.mxu0 0.0
        %1904 = vmatpush.msra.mxu0 0.0
        %1905 = vmatpush.msra.mxu0 0.0
        %1906 = vmatpush.msra.mxu0 0.0
        %1907 = vmatpush.msra.mxu0 0.0
        %1908 = vmatpush.msra.mxu0 0.0
        %1909 = vmatpush.msra.mxu0 0.0
        %1910 = vmatpush.msra.mxu0 %v1885
        %1911 = vmatmul.f32.gmra.mxu0 %v1883
        %v1912 = vpop.f32.mrf.mxu0
        %v1913 = vadd.f32 0.0, %v1912
        %1914 = vdwg.mxu0
        %1915 = vmatpush.msra.mxu0 0.0
        %1916 = vmatpush.msra.mxu0 0.0
        %1917 = vmatpush.msra.mxu0 0.0
        %1918 = vmatpush.msra.mxu0 0.0
        %1919 = vmatpush.msra.mxu0 0.0
        %1920 = vmatpush.msra.mxu0 0.0
        %1921 = vmatpush.msra.mxu0 0.0
        %1922 = vmatpush.msra.mxu0 0.0
        %1923 = vmatpush.msra.mxu0 0.0
        %1924 = vmatpush.msra.mxu0 0.0
        %1925 = vmatpush.msra.mxu0 0.0
        %1926 = vmatpush.msra.mxu0 0.0
        %1927 = vmatpush.msra.mxu0 0.0
        %1928 = vmatpush.msra.mxu0 0.0
        %1929 = vmatpush.msra.mxu0 0.0
        %1930 = vmatpush.msra.mxu0 %v1887
        %1931 = vmatmul.f32.gmra.mxu0 %v1883
        %v1932 = vpop.f32.mrf.mxu0
        %v1933 = vadd.f32 0.0, %v1932
        %1934 = vdwg.mxu0
        %1935 = vmatpush.msra.mxu0 0.0
        %1936 = vmatpush.msra.mxu0 0.0
        %1937 = vmatpush.msra.mxu0 0.0
        %1938 = vmatpush.msra.mxu0 0.0
        %1939 = vmatpush.msra.mxu0 0.0
        %1940 = vmatpush.msra.mxu0 0.0
        %1941 = vmatpush.msra.mxu0 0.0
        %1942 = vmatpush.msra.mxu0 0.0
        %1943 = vmatpush.msra.mxu0 0.0
        %1944 = vmatpush.msra.mxu0 0.0
        %1945 = vmatpush.msra.mxu0 0.0
        %1946 = vmatpush.msra.mxu0 0.0
        %1947 = vmatpush.msra.mxu0 0.0
        %1948 = vmatpush.msra.mxu0 0.0
        %1949 = vmatpush.msra.mxu0 0.0
        %1950 = vmatpush.msra.mxu0 %v1889
        %1951 = vmatmul.f32.gmra.mxu0 %v1883
        %v1952 = vpop.f32.mrf.mxu0
        %v1953 = vadd.f32 0.0, %v1952
        %1954 = vdwg.mxu0
        %1955 = vmatpush.msra.mxu0 0.0
        %1956 = vmatpush.msra.mxu0 0.0
        %1957 = vmatpush.msra.mxu0 0.0
        %1958 = vmatpush.msra.mxu0 0.0
        %1959 = vmatpush.msra.mxu0 0.0
        %1960 = vmatpush.msra.mxu0 0.0
        %1961 = vmatpush.msra.mxu0 0.0
        %1962 = vmatpush.msra.mxu0 0.0
        %1963 = vmatpush.msra.mxu0 0.0
        %1964 = vmatpush.msra.mxu0 0.0
        %1965 = vmatpush.msra.mxu0 0.0
        %1966 = vmatpush.msra.mxu0 0.0
        %1967 = vmatpush.msra.mxu0 0.0
        %1968 = vmatpush.msra.mxu0 0.0
        %1969 = vmatpush.msra.mxu0 0.0
        %1970 = vmatpush.msra.mxu0 %v1891
        %1971 = vmatmul.f32.gmra.mxu0 %v1883
        %v1972 = vpop.f32.mrf.mxu0
        %v1973 = vadd.f32 0.0, %v1972
        %1974 = vdwg.mxu0
        %1975 = vmatpush.msra.mxu0 0.0
        %1976 = vmatpush.msra.mxu0 0.0
        %1977 = vmatpush.msra.mxu0 0.0
        %1978 = vmatpush.msra.mxu0 0.0
        %1979 = vmatpush.msra.mxu0 0.0
        %1980 = vmatpush.msra.mxu0 0.0
        %1981 = vmatpush.msra.mxu0 0.0
        %1982 = vmatpush.msra.mxu0 0.0
        %1983 = vmatpush.msra.mxu0 0.0
        %1984 = vmatpush.msra.mxu0 0.0
        %1985 = vmatpush.msra.mxu0 0.0
        %1986 = vmatpush.msra.mxu0 0.0
        %1987 = vmatpush.msra.mxu0 0.0
        %1988 = vmatpush.msra.mxu0 0.0
        %1989 = vmatpush.msra.mxu0 0.0
        %1990 = vmatpush.msra.mxu0 %v1893
        %1991 = vmatmul.f32.gmra.mxu0 %v1883
        %v1992 = vpop.f32.mrf.mxu0
        %v1993 = vadd.f32 0.0, %v1992
        %1994 = vdwg.mxu0
        %v1995 = vadd.f32 %v1844, %v1913
        %v1996 = vadd.f32 %v1845, %v1933
        %v1997 = vadd.f32 %v1846, %v1953
        %v1998 = vadd.f32 %v1847, %v1973
        %v1999 = vadd.f32 %v1848, %v1993
        %v2000 = vld [vmem:[%s4] sm:$0xff]
        %v2001 = vld [vmem:[#allocation2] sm:$0xff]
        %v2002 = vld [vmem:[#allocation2 + $0x8] sm:$0xff]
        %v2003 = vld [vmem:[#allocation2 + $0x10] sm:$0xf]
        %2005 = vrot.lane.b32.xlu0 %v2000, 108
        %v2006 = vpop.permute.xlu0 %2005
        %2010 = vst [vmem:[#allocation1] ss:$2 sm:$0xff] %v2001
        %s2011 = scalar_lea.vmem [#allocation1], 16
        %2012 = vst [vmem:[%s2011] ss:$2 sm:$0xff] %v2002
        %s2013 = scalar_lea.vmem [#allocation1], 32
        %2014 = vst [vmem:[%s2013] ss:$2 sm:$0xff] %v2003
        %v2015 = vld.sshfl [vmem:[#allocation1] sm:$0xff pattern:$0x75316420]
        %v2016 = vld.sshfl [vmem:[#allocation1 + $0x8] sm:$0xff pattern:$0x75316420]
        %v2017 = vld.sshfl [vmem:[#allocation1 + $0x10] sm:$0xff pattern:$0x75316420]
        %v2018 = vld.sshfl [vmem:[#allocation1 + $0x18] sm:$0xff pattern:$0x75316420]
        %v2019 = vld.sshfl [vmem:[#allocation1 + $0x20] sm:$0xff pattern:$0x75316420]
        %2020 = vrot.lane.b32.xlu0 %v2015, 123
        %v2021 = vpop.permute.xlu0 %2020
        %2022 = vrot.lane.b32.xlu0 %v2016, 123
        %v2023 = vpop.permute.xlu0 %2022
        %2024 = vrot.lane.b32.xlu0 %v2017, 123
        %v2025 = vpop.permute.xlu0 %2024
        %2026 = vrot.lane.b32.xlu0 %v2018, 123
        %v2027 = vpop.permute.xlu0 %2026
        %2028 = vrot.lane.b32.xlu0 %v2019, 123
        %v2029 = vpop.permute.xlu0 %2028
        %v2030 = vsel %vm472, %v2021, %v2023
        %v2031 = vsel %vm472, %v2023, %v2025
        %v2032 = vsel %vm472, %v2025, %v2027
        %v2033 = vsel %vm472, %v2027, %v2029
        %v2034 = vsel %vm1312, %v2006, 0
        %v2036 = vsel %vm437, %v2030, 0
        %v2038 = vsel %vm437, %v2031, 0
        %v2040 = vsel %vm437, %v2032, 0
        %v2042 = vsel %vm437, %v2033, 0
        %v2044 = vsel %vm437, %v2029, 0
        %2046 = vmatpush.msra.mxu0 0.0
        %2047 = vmatpush.msra.mxu0 0.0
        %2048 = vmatpush.msra.mxu0 0.0
        %2049 = vmatpush.msra.mxu0 0.0
        %2050 = vmatpush.msra.mxu0 0.0
        %2051 = vmatpush.msra.mxu0 0.0
        %2052 = vmatpush.msra.mxu0 0.0
        %2053 = vmatpush.msra.mxu0 0.0
        %2054 = vmatpush.msra.mxu0 0.0
        %2055 = vmatpush.msra.mxu0 0.0
        %2056 = vmatpush.msra.mxu0 0.0
        %2057 = vmatpush.msra.mxu0 0.0
        %2058 = vmatpush.msra.mxu0 0.0
        %2059 = vmatpush.msra.mxu0 0.0
        %2060 = vmatpush.msra.mxu0 0.0
        %2061 = vmatpush.msra.mxu0 %v2036
        %2062 = vmatmul.f32.gmra.mxu0 %v2034
        %v2063 = vpop.f32.mrf.mxu0
        %v2064 = vadd.f32 0.0, %v2063
        %2065 = vdwg.mxu0
        %2066 = vmatpush.msra.mxu0 0.0
        %2067 = vmatpush.msra.mxu0 0.0
        %2068 = vmatpush.msra.mxu0 0.0
        %2069 = vmatpush.msra.mxu0 0.0
        %2070 = vmatpush.msra.mxu0 0.0
        %2071 = vmatpush.msra.mxu0 0.0
        %2072 = vmatpush.msra.mxu0 0.0
        %2073 = vmatpush.msra.mxu0 0.0
        %2074 = vmatpush.msra.mxu0 0.0
        %2075 = vmatpush.msra.mxu0 0.0
        %2076 = vmatpush.msra.mxu0 0.0
        %2077 = vmatpush.msra.mxu0 0.0
        %2078 = vmatpush.msra.mxu0 0.0
        %2079 = vmatpush.msra.mxu0 0.0
        %2080 = vmatpush.msra.mxu0 0.0
        %2081 = vmatpush.msra.mxu0 %v2038
        %2082 = vmatmul.f32.gmra.mxu0 %v2034
        %v2083 = vpop.f32.mrf.mxu0
        %v2084 = vadd.f32 0.0, %v2083
        %2085 = vdwg.mxu0
        %2086 = vmatpush.msra.mxu0 0.0
        %2087 = vmatpush.msra.mxu0 0.0
        %2088 = vmatpush.msra.mxu0 0.0
        %2089 = vmatpush.msra.mxu0 0.0
        %2090 = vmatpush.msra.mxu0 0.0
        %2091 = vmatpush.msra.mxu0 0.0
        %2092 = vmatpush.msra.mxu0 0.0
        %2093 = vmatpush.msra.mxu0 0.0
        %2094 = vmatpush.msra.mxu0 0.0
        %2095 = vmatpush.msra.mxu0 0.0
        %2096 = vmatpush.msra.mxu0 0.0
        %2097 = vmatpush.msra.mxu0 0.0
        %2098 = vmatpush.msra.mxu0 0.0
        %2099 = vmatpush.msra.mxu0 0.0
        %2100 = vmatpush.msra.mxu0 0.0
        %2101 = vmatpush.msra.mxu0 %v2040
        %2102 = vmatmul.f32.gmra.mxu0 %v2034
        %v2103 = vpop.f32.mrf.mxu0
        %v2104 = vadd.f32 0.0, %v2103
        %2105 = vdwg.mxu0
        %2106 = vmatpush.msra.mxu0 0.0
        %2107 = vmatpush.msra.mxu0 0.0
        %2108 = vmatpush.msra.mxu0 0.0
        %2109 = vmatpush.msra.mxu0 0.0
        %2110 = vmatpush.msra.mxu0 0.0
        %2111 = vmatpush.msra.mxu0 0.0
        %2112 = vmatpush.msra.mxu0 0.0
        %2113 = vmatpush.msra.mxu0 0.0
        %2114 = vmatpush.msra.mxu0 0.0
        %2115 = vmatpush.msra.mxu0 0.0
        %2116 = vmatpush.msra.mxu0 0.0
        %2117 = vmatpush.msra.mxu0 0.0
        %2118 = vmatpush.msra.mxu0 0.0
        %2119 = vmatpush.msra.mxu0 0.0
        %2120 = vmatpush.msra.mxu0 0.0
        %2121 = vmatpush.msra.mxu0 %v2042
        %2122 = vmatmul.f32.gmra.mxu0 %v2034
        %v2123 = vpop.f32.mrf.mxu0
        %v2124 = vadd.f32 0.0, %v2123
        %2125 = vdwg.mxu0
        %2126 = vmatpush.msra.mxu0 0.0
        %2127 = vmatpush.msra.mxu0 0.0
        %2128 = vmatpush.msra.mxu0 0.0
        %2129 = vmatpush.msra.mxu0 0.0
        %2130 = vmatpush.msra.mxu0 0.0
        %2131 = vmatpush.msra.mxu0 0.0
        %2132 = vmatpush.msra.mxu0 0.0
        %2133 = vmatpush.msra.mxu0 0.0
        %2134 = vmatpush.msra.mxu0 0.0
        %2135 = vmatpush.msra.mxu0 0.0
        %2136 = vmatpush.msra.mxu0 0.0
        %2137 = vmatpush.msra.mxu0 0.0
        %2138 = vmatpush.msra.mxu0 0.0
        %2139 = vmatpush.msra.mxu0 0.0
        %2140 = vmatpush.msra.mxu0 0.0
        %2141 = vmatpush.msra.mxu0 %v2044
        %2142 = vmatmul.f32.gmra.mxu0 %v2034
        %v2143 = vpop.f32.mrf.mxu0
        %v2144 = vadd.f32 0.0, %v2143
        %2145 = vdwg.mxu0
        %v2146 = vadd.f32 %v1995, %v2064
        %v2147 = vadd.f32 %v1996, %v2084
        %v2148 = vadd.f32 %v1997, %v2104
        %v2149 = vadd.f32 %v1998, %v2124
        %v2150 = vadd.f32 %v1999, %v2144
        %v2151 = vld [vmem:[%s4] sm:$0xff]
        %v2152 = vld [vmem:[#allocation2] sm:$0xff]
        %v2153 = vld [vmem:[#allocation2 + $0x8] sm:$0xff]
        %v2154 = vld [vmem:[#allocation2 + $0x10] sm:$0xf]
        %2156 = vrot.lane.b32.xlu0 %v2151, 104
        %v2157 = vpop.permute.xlu0 %2156
        %2161 = vst [vmem:[#allocation1] ss:$2 sm:$0xff] %v2152
        %s2162 = scalar_lea.vmem [#allocation1], 16
        %2163 = vst [vmem:[%s2162] ss:$2 sm:$0xff] %v2153
        %s2164 = scalar_lea.vmem [#allocation1], 32
        %2165 = vst [vmem:[%s2164] ss:$2 sm:$0xff] %v2154
        %v2166 = vld.sshfl [vmem:[#allocation1] sm:$0xff pattern:$0x75316420]
        %v2167 = vld.sshfl [vmem:[#allocation1 + $0x8] sm:$0xff pattern:$0x75316420]
        %v2168 = vld.sshfl [vmem:[#allocation1 + $0x10] sm:$0xff pattern:$0x75316420]
        %v2169 = vld.sshfl [vmem:[#allocation1 + $0x18] sm:$0xff pattern:$0x75316420]
        %v2170 = vld.sshfl [vmem:[#allocation1 + $0x20] sm:$0xff pattern:$0x75316420]
        %2171 = vrot.lane.b32.xlu0 %v2166, 122
        %v2172 = vpop.permute.xlu0 %2171
        %2173 = vrot.lane.b32.xlu0 %v2167, 122
        %v2174 = vpop.permute.xlu0 %2173
        %2175 = vrot.lane.b32.xlu0 %v2168, 122
        %v2176 = vpop.permute.xlu0 %2175
        %2177 = vrot.lane.b32.xlu0 %v2169, 122
        %v2178 = vpop.permute.xlu0 %2177
        %2179 = vrot.lane.b32.xlu0 %v2170, 122
        %v2180 = vpop.permute.xlu0 %2179
        %v2181 = vsel %vm773, %v2172, %v2174
        %v2182 = vsel %vm773, %v2174, %v2176
        %v2183 = vsel %vm773, %v2176, %v2178
        %v2184 = vsel %vm773, %v2178, %v2180
        %v2185 = vsel %vm1312, %v2157, 0
        %v2187 = vsel %vm437, %v2181, 0
        %v2189 = vsel %vm437, %v2182, 0
        %v2191 = vsel %vm437, %v2183, 0
        %v2193 = vsel %vm437, %v2184, 0
        %v2195 = vsel %vm437, %v2180, 0
        %2197 = vmatpush.msra.mxu0 0.0
        %2198 = vmatpush.msra.mxu0 0.0
        %2199 = vmatpush.msra.mxu0 0.0
        %2200 = vmatpush.msra.mxu0 0.0
        %2201 = vmatpush.msra.mxu0 0.0
        %2202 = vmatpush.msra.mxu0 0.0
        %2203 = vmatpush.msra.mxu0 0.0
        %2204 = vmatpush.msra.mxu0 0.0
        %2205 = vmatpush.msra.mxu0 0.0
        %2206 = vmatpush.msra.mxu0 0.0
        %2207 = vmatpush.msra.mxu0 0.0
        %2208 = vmatpush.msra.mxu0 0.0
        %2209 = vmatpush.msra.mxu0 0.0
        %2210 = vmatpush.msra.mxu0 0.0
        %2211 = vmatpush.msra.mxu0 0.0
        %2212 = vmatpush.msra.mxu0 %v2187
        %2213 = vmatmul.f32.gmra.mxu0 %v2185
        %v2214 = vpop.f32.mrf.mxu0
        %v2215 = vadd.f32 0.0, %v2214
        %2216 = vdwg.mxu0
        %2217 = vmatpush.msra.mxu0 0.0
        %2218 = vmatpush.msra.mxu0 0.0
        %2219 = vmatpush.msra.mxu0 0.0
        %2220 = vmatpush.msra.mxu0 0.0
        %2221 = vmatpush.msra.mxu0 0.0
        %2222 = vmatpush.msra.mxu0 0.0
        %2223 = vmatpush.msra.mxu0 0.0
        %2224 = vmatpush.msra.mxu0 0.0
        %2225 = vmatpush.msra.mxu0 0.0
        %2226 = vmatpush.msra.mxu0 0.0
        %2227 = vmatpush.msra.mxu0 0.0
        %2228 = vmatpush.msra.mxu0 0.0
        %2229 = vmatpush.msra.mxu0 0.0
        %2230 = vmatpush.msra.mxu0 0.0
        %2231 = vmatpush.msra.mxu0 0.0
        %2232 = vmatpush.msra.mxu0 %v2189
        %2233 = vmatmul.f32.gmra.mxu0 %v2185
        %v2234 = vpop.f32.mrf.mxu0
        %v2235 = vadd.f32 0.0, %v2234
        %2236 = vdwg.mxu0
        %2237 = vmatpush.msra.mxu0 0.0
        %2238 = vmatpush.msra.mxu0 0.0
        %2239 = vmatpush.msra.mxu0 0.0
        %2240 = vmatpush.msra.mxu0 0.0
        %2241 = vmatpush.msra.mxu0 0.0
        %2242 = vmatpush.msra.mxu0 0.0
        %2243 = vmatpush.msra.mxu0 0.0
        %2244 = vmatpush.msra.mxu0 0.0
        %2245 = vmatpush.msra.mxu0 0.0
        %2246 = vmatpush.msra.mxu0 0.0
        %2247 = vmatpush.msra.mxu0 0.0
        %2248 = vmatpush.msra.mxu0 0.0
        %2249 = vmatpush.msra.mxu0 0.0
        %2250 = vmatpush.msra.mxu0 0.0
        %2251 = vmatpush.msra.mxu0 0.0
        %2252 = vmatpush.msra.mxu0 %v2191
        %2253 = vmatmul.f32.gmra.mxu0 %v2185
        %v2254 = vpop.f32.mrf.mxu0
        %v2255 = vadd.f32 0.0, %v2254
        %2256 = vdwg.mxu0
        %2257 = vmatpush.msra.mxu0 0.0
        %2258 = vmatpush.msra.mxu0 0.0
        %2259 = vmatpush.msra.mxu0 0.0
        %2260 = vmatpush.msra.mxu0 0.0
        %2261 = vmatpush.msra.mxu0 0.0
        %2262 = vmatpush.msra.mxu0 0.0
        %2263 = vmatpush.msra.mxu0 0.0
        %2264 = vmatpush.msra.mxu0 0.0
        %2265 = vmatpush.msra.mxu0 0.0
        %2266 = vmatpush.msra.mxu0 0.0
        %2267 = vmatpush.msra.mxu0 0.0
        %2268 = vmatpush.msra.mxu0 0.0
        %2269 = vmatpush.msra.mxu0 0.0
        %2270 = vmatpush.msra.mxu0 0.0
        %2271 = vmatpush.msra.mxu0 0.0
        %2272 = vmatpush.msra.mxu0 %v2193
        %2273 = vmatmul.f32.gmra.mxu0 %v2185
        %v2274 = vpop.f32.mrf.mxu0
        %v2275 = vadd.f32 0.0, %v2274
        %2276 = vdwg.mxu0
        %2277 = vmatpush.msra.mxu0 0.0
        %2278 = vmatpush.msra.mxu0 0.0
        %2279 = vmatpush.msra.mxu0 0.0
        %2280 = vmatpush.msra.mxu0 0.0
        %2281 = vmatpush.msra.mxu0 0.0
        %2282 = vmatpush.msra.mxu0 0.0
        %2283 = vmatpush.msra.mxu0 0.0
        %2284 = vmatpush.msra.mxu0 0.0
        %2285 = vmatpush.msra.mxu0 0.0
        %2286 = vmatpush.msra.mxu0 0.0
        %2287 = vmatpush.msra.mxu0 0.0
        %2288 = vmatpush.msra.mxu0 0.0
        %2289 = vmatpush.msra.mxu0 0.0
        %2290 = vmatpush.msra.mxu0 0.0
        %2291 = vmatpush.msra.mxu0 0.0
        %2292 = vmatpush.msra.mxu0 %v2195
        %2293 = vmatmul.f32.gmra.mxu0 %v2185
        %v2294 = vpop.f32.mrf.mxu0
        %v2295 = vadd.f32 0.0, %v2294
        %2296 = vdwg.mxu0
        %v2297 = vadd.f32 %v2146, %v2215
        %v2298 = vadd.f32 %v2147, %v2235
        %v2299 = vadd.f32 %v2148, %v2255
        %v2300 = vadd.f32 %v2149, %v2275
        %v2301 = vadd.f32 %v2150, %v2295
        %v2302 = vld [vmem:[%s4] sm:$0xff]
        %v2303 = vld [vmem:[#allocation2] sm:$0xff]
        %v2304 = vld [vmem:[#allocation2 + $0x8] sm:$0xff]
        %v2305 = vld [vmem:[#allocation2 + $0x10] sm:$0xf]
        %2307 = vrot.lane.b32.xlu0 %v2302, 100
        %v2308 = vpop.permute.xlu0 %2307
        %2312 = vst [vmem:[#allocation1] ss:$2 sm:$0xff] %v2303
        %s2313 = scalar_lea.vmem [#allocation1], 16
        %2314 = vst [vmem:[%s2313] ss:$2 sm:$0xff] %v2304
        %s2315 = scalar_lea.vmem [#allocation1], 32
        %2316 = vst [vmem:[%s2315] ss:$2 sm:$0xff] %v2305
        %v2317 = vld.sshfl [vmem:[#allocation1] sm:$0xff pattern:$0x75316420]
        %v2318 = vld.sshfl [vmem:[#allocation1 + $0x8] sm:$0xff pattern:$0x75316420]
        %v2319 = vld.sshfl [vmem:[#allocation1 + $0x10] sm:$0xff pattern:$0x75316420]
        %v2320 = vld.sshfl [vmem:[#allocation1 + $0x18] sm:$0xff pattern:$0x75316420]
        %v2321 = vld.sshfl [vmem:[#allocation1 + $0x20] sm:$0xff pattern:$0x75316420]
        %2322 = vrot.lane.b32.xlu0 %v2317, 121
        %v2323 = vpop.permute.xlu0 %2322
        %2324 = vrot.lane.b32.xlu0 %v2318, 121
        %v2325 = vpop.permute.xlu0 %2324
        %2326 = vrot.lane.b32.xlu0 %v2319, 121
        %v2327 = vpop.permute.xlu0 %2326
        %2328 = vrot.lane.b32.xlu0 %v2320, 121
        %v2329 = vpop.permute.xlu0 %2328
        %2330 = vrot.lane.b32.xlu0 %v2321, 121
        %v2331 = vpop.permute.xlu0 %2330
        %v2332 = vsel %vm812, %v2323, %v2325
        %v2333 = vsel %vm812, %v2325, %v2327
        %v2334 = vsel %vm812, %v2327, %v2329
        %v2335 = vsel %vm812, %v2329, %v2331
        %v2336 = vsel %vm1312, %v2308, 0
        %v2338 = vsel %vm437, %v2332, 0
        %v2340 = vsel %vm437, %v2333, 0
        %v2342 = vsel %vm437, %v2334, 0
        %v2344 = vsel %vm437, %v2335, 0
        %v2346 = vsel %vm437, %v2331, 0
        %2348 = vmatpush.msra.mxu0 0.0
        %2349 = vmatpush.msra.mxu0 0.0
        %2350 = vmatpush.msra.mxu0 0.0
        %2351 = vmatpush.msra.mxu0 0.0
        %2352 = vmatpush.msra.mxu0 0.0
        %2353 = vmatpush.msra.mxu0 0.0
        %2354 = vmatpush.msra.mxu0 0.0
        %2355 = vmatpush.msra.mxu0 0.0
        %2356 = vmatpush.msra.mxu0 0.0
        %2357 = vmatpush.msra.mxu0 0.0
        %2358 = vmatpush.msra.mxu0 0.0
        %2359 = vmatpush.msra.mxu0 0.0
        %2360 = vmatpush.msra.mxu0 0.0
        %2361 = vmatpush.msra.mxu0 0.0
        %2362 = vmatpush.msra.mxu0 0.0
        %2363 = vmatpush.msra.mxu0 %v2338
        %2364 = vmatmul.f32.gmra.mxu0 %v2336
        %v2365 = vpop.f32.mrf.mxu0
        %v2366 = vadd.f32 0.0, %v2365
        %2367 = vdwg.mxu0
        %2368 = vmatpush.msra.mxu0 0.0
        %2369 = vmatpush.msra.mxu0 0.0
        %2370 = vmatpush.msra.mxu0 0.0
        %2371 = vmatpush.msra.mxu0 0.0
        %2372 = vmatpush.msra.mxu0 0.0
        %2373 = vmatpush.msra.mxu0 0.0
        %2374 = vmatpush.msra.mxu0 0.0
        %2375 = vmatpush.msra.mxu0 0.0
        %2376 = vmatpush.msra.mxu0 0.0
        %2377 = vmatpush.msra.mxu0 0.0
        %2378 = vmatpush.msra.mxu0 0.0
        %2379 = vmatpush.msra.mxu0 0.0
        %2380 = vmatpush.msra.mxu0 0.0
        %2381 = vmatpush.msra.mxu0 0.0
        %2382 = vmatpush.msra.mxu0 0.0
        %2383 = vmatpush.msra.mxu0 %v2340
        %2384 = vmatmul.f32.gmra.mxu0 %v2336
        %v2385 = vpop.f32.mrf.mxu0
        %v2386 = vadd.f32 0.0, %v2385
        %2387 = vdwg.mxu0
        %2388 = vmatpush.msra.mxu0 0.0
        %2389 = vmatpush.msra.mxu0 0.0
        %2390 = vmatpush.msra.mxu0 0.0
        %2391 = vmatpush.msra.mxu0 0.0
        %2392 = vmatpush.msra.mxu0 0.0
        %2393 = vmatpush.msra.mxu0 0.0
        %2394 = vmatpush.msra.mxu0 0.0
        %2395 = vmatpush.msra.mxu0 0.0
        %2396 = vmatpush.msra.mxu0 0.0
        %2397 = vmatpush.msra.mxu0 0.0
        %2398 = vmatpush.msra.mxu0 0.0
        %2399 = vmatpush.msra.mxu0 0.0
        %2400 = vmatpush.msra.mxu0 0.0
        %2401 = vmatpush.msra.mxu0 0.0
        %2402 = vmatpush.msra.mxu0 0.0
        %2403 = vmatpush.msra.mxu0 %v2342
        %2404 = vmatmul.f32.gmra.mxu0 %v2336
        %v2405 = vpop.f32.mrf.mxu0
        %v2406 = vadd.f32 0.0, %v2405
        %2407 = vdwg.mxu0
        %2408 = vmatpush.msra.mxu0 0.0
        %2409 = vmatpush.msra.mxu0 0.0
        %2410 = vmatpush.msra.mxu0 0.0
        %2411 = vmatpush.msra.mxu0 0.0
        %2412 = vmatpush.msra.mxu0 0.0
        %2413 = vmatpush.msra.mxu0 0.0
        %2414 = vmatpush.msra.mxu0 0.0
        %2415 = vmatpush.msra.mxu0 0.0
        %2416 = vmatpush.msra.mxu0 0.0
        %2417 = vmatpush.msra.mxu0 0.0
        %2418 = vmatpush.msra.mxu0 0.0
        %2419 = vmatpush.msra.mxu0 0.0
        %2420 = vmatpush.msra.mxu0 0.0
        %2421 = vmatpush.msra.mxu0 0.0
        %2422 = vmatpush.msra.mxu0 0.0
        %2423 = vmatpush.msra.mxu0 %v2344
        %2424 = vmatmul.f32.gmra.mxu0 %v2336
        %v2425 = vpop.f32.mrf.mxu0
        %v2426 = vadd.f32 0.0, %v2425
        %2427 = vdwg.mxu0
        %2428 = vmatpush.msra.mxu0 0.0
        %2429 = vmatpush.msra.mxu0 0.0
        %2430 = vmatpush.msra.mxu0 0.0
        %2431 = vmatpush.msra.mxu0 0.0
        %2432 = vmatpush.msra.mxu0 0.0
        %2433 = vmatpush.msra.mxu0 0.0
        %2434 = vmatpush.msra.mxu0 0.0
        %2435 = vmatpush.msra.mxu0 0.0
        %2436 = vmatpush.msra.mxu0 0.0
        %2437 = vmatpush.msra.mxu0 0.0
        %2438 = vmatpush.msra.mxu0 0.0
        %2439 = vmatpush.msra.mxu0 0.0
        %2440 = vmatpush.msra.mxu0 0.0
        %2441 = vmatpush.msra.mxu0 0.0
        %2442 = vmatpush.msra.mxu0 0.0
        %2443 = vmatpush.msra.mxu0 %v2346
        %2444 = vmatmul.f32.gmra.mxu0 %v2336
        %v2445 = vpop.f32.mrf.mxu0
        %v2446 = vadd.f32 0.0, %v2445
        %2447 = vdwg.mxu0
        %v2448 = vadd.f32 %v2297, %v2366
        %v2449 = vadd.f32 %v2298, %v2386
        %v2450 = vadd.f32 %v2299, %v2406
        %v2451 = vadd.f32 %v2300, %v2426
        %v2452 = vadd.f32 %v2301, %v2446
        %v2453 = vld [vmem:[%s4] sm:$0xff]
        %v2454 = vld [vmem:[#allocation2] sm:$0xff]
        %v2455 = vld [vmem:[#allocation2 + $0x8] sm:$0xff]
        %v2456 = vld [vmem:[#allocation2 + $0x10] sm:$0xf]
        %2458 = vrot.lane.b32.xlu0 %v2453, 96
        %v2459 = vpop.permute.xlu0 %2458
        %2463 = vst [vmem:[#allocation1] ss:$2 sm:$0xff] %v2454
        %s2464 = scalar_lea.vmem [#allocation1], 16
        %2465 = vst [vmem:[%s2464] ss:$2 sm:$0xff] %v2455
        %s2466 = scalar_lea.vmem [#allocation1], 32
        %2467 = vst [vmem:[%s2466] ss:$2 sm:$0xff] %v2456
        %v2468 = vld.sshfl [vmem:[#allocation1] sm:$0xff pattern:$0x75316420]
        %v2469 = vld.sshfl [vmem:[#allocation1 + $0x8] sm:$0xff pattern:$0x75316420]
        %v2470 = vld.sshfl [vmem:[#allocation1 + $0x10] sm:$0xff pattern:$0x75316420]
        %v2471 = vld.sshfl [vmem:[#allocation1 + $0x18] sm:$0xff pattern:$0x75316420]
        %v2472 = vld.sshfl [vmem:[#allocation1 + $0x20] sm:$0xff pattern:$0x75316420]
        %2473 = vrot.lane.b32.xlu0 %v2468, 120
        %v2474 = vpop.permute.xlu0 %2473
        %2475 = vrot.lane.b32.xlu0 %v2469, 120
        %v2476 = vpop.permute.xlu0 %2475
        %2477 = vrot.lane.b32.xlu0 %v2470, 120
        %v2478 = vpop.permute.xlu0 %2477
        %2479 = vrot.lane.b32.xlu0 %v2471, 120
        %v2480 = vpop.permute.xlu0 %2479
        %2481 = vrot.lane.b32.xlu0 %v2472, 120
        %v2482 = vpop.permute.xlu0 %2481
        %v2483 = vsel %vm851, %v2474, %v2476
        %v2484 = vsel %vm851, %v2476, %v2478
        %v2485 = vsel %vm851, %v2478, %v2480
        %v2486 = vsel %vm851, %v2480, %v2482
        %v2487 = vsel %vm1312, %v2459, 0
        %v2489 = vsel %vm437, %v2483, 0
        %v2491 = vsel %vm437, %v2484, 0
        %v2493 = vsel %vm437, %v2485, 0
        %v2495 = vsel %vm437, %v2486, 0
        %v2497 = vsel %vm437, %v2482, 0
        %2499 = vmatpush.msra.mxu0 0.0
        %2500 = vmatpush.msra.mxu0 0.0
        %2501 = vmatpush.msra.mxu0 0.0
        %2502 = vmatpush.msra.mxu0 0.0
        %2503 = vmatpush.msra.mxu0 0.0
        %2504 = vmatpush.msra.mxu0 0.0
        %2505 = vmatpush.msra.mxu0 0.0
        %2506 = vmatpush.msra.mxu0 0.0
        %2507 = vmatpush.msra.mxu0 0.0
        %2508 = vmatpush.msra.mxu0 0.0
        %2509 = vmatpush.msra.mxu0 0.0
        %2510 = vmatpush.msra.mxu0 0.0
        %2511 = vmatpush.msra.mxu0 0.0
        %2512 = vmatpush.msra.mxu0 0.0
        %2513 = vmatpush.msra.mxu0 0.0
        %2514 = vmatpush.msra.mxu0 %v2489
        %2515 = vmatmul.f32.gmra.mxu0 %v2487
        %v2516 = vpop.f32.mrf.mxu0
        %v2517 = vadd.f32 0.0, %v2516
        %2518 = vdwg.mxu0
        %2519 = vmatpush.msra.mxu0 0.0
        %2520 = vmatpush.msra.mxu0 0.0
        %2521 = vmatpush.msra.mxu0 0.0
        %2522 = vmatpush.msra.mxu0 0.0
        %2523 = vmatpush.msra.mxu0 0.0
        %2524 = vmatpush.msra.mxu0 0.0
        %2525 = vmatpush.msra.mxu0 0.0
        %2526 = vmatpush.msra.mxu0 0.0
        %2527 = vmatpush.msra.mxu0 0.0
        %2528 = vmatpush.msra.mxu0 0.0
        %2529 = vmatpush.msra.mxu0 0.0
        %2530 = vmatpush.msra.mxu0 0.0
        %2531 = vmatpush.msra.mxu0 0.0
        %2532 = vmatpush.msra.mxu0 0.0
        %2533 = vmatpush.msra.mxu0 0.0
        %2534 = vmatpush.msra.mxu0 %v2491
        %2535 = vmatmul.f32.gmra.mxu0 %v2487
        %v2536 = vpop.f32.mrf.mxu0
        %v2537 = vadd.f32 0.0, %v2536
        %2538 = vdwg.mxu0
        %2539 = vmatpush.msra.mxu0 0.0
        %2540 = vmatpush.msra.mxu0 0.0
        %2541 = vmatpush.msra.mxu0 0.0
        %2542 = vmatpush.msra.mxu0 0.0
        %2543 = vmatpush.msra.mxu0 0.0
        %2544 = vmatpush.msra.mxu0 0.0
        %2545 = vmatpush.msra.mxu0 0.0
        %2546 = vmatpush.msra.mxu0 0.0
        %2547 = vmatpush.msra.mxu0 0.0
        %2548 = vmatpush.msra.mxu0 0.0
        %2549 = vmatpush.msra.mxu0 0.0
        %2550 = vmatpush.msra.mxu0 0.0
        %2551 = vmatpush.msra.mxu0 0.0
        %2552 = vmatpush.msra.mxu0 0.0
        %2553 = vmatpush.msra.mxu0 0.0
        %2554 = vmatpush.msra.mxu0 %v2493
        %2555 = vmatmul.f32.gmra.mxu0 %v2487
        %v2556 = vpop.f32.mrf.mxu0
        %v2557 = vadd.f32 0.0, %v2556
        %2558 = vdwg.mxu0
        %2559 = vmatpush.msra.mxu0 0.0
        %2560 = vmatpush.msra.mxu0 0.0
        %2561 = vmatpush.msra.mxu0 0.0
        %2562 = vmatpush.msra.mxu0 0.0
        %2563 = vmatpush.msra.mxu0 0.0
        %2564 = vmatpush.msra.mxu0 0.0
        %2565 = vmatpush.msra.mxu0 0.0
        %2566 = vmatpush.msra.mxu0 0.0
        %2567 = vmatpush.msra.mxu0 0.0
        %2568 = vmatpush.msra.mxu0 0.0
        %2569 = vmatpush.msra.mxu0 0.0
        %2570 = vmatpush.msra.mxu0 0.0
        %2571 = vmatpush.msra.mxu0 0.0
        %2572 = vmatpush.msra.mxu0 0.0
        %2573 = vmatpush.msra.mxu0 0.0
        %2574 = vmatpush.msra.mxu0 %v2495
        %2575 = vmatmul.f32.gmra.mxu0 %v2487
        %v2576 = vpop.f32.mrf.mxu0
        %v2577 = vadd.f32 0.0, %v2576
        %2578 = vdwg.mxu0
        %2579 = vmatpush.msra.mxu0 0.0
        %2580 = vmatpush.msra.mxu0 0.0
        %2581 = vmatpush.msra.mxu0 0.0
        %2582 = vmatpush.msra.mxu0 0.0
        %2583 = vmatpush.msra.mxu0 0.0
        %2584 = vmatpush.msra.mxu0 0.0
        %2585 = vmatpush.msra.mxu0 0.0
        %2586 = vmatpush.msra.mxu0 0.0
        %2587 = vmatpush.msra.mxu0 0.0
        %2588 = vmatpush.msra.mxu0 0.0
        %2589 = vmatpush.msra.mxu0 0.0
        %2590 = vmatpush.msra.mxu0 0.0
        %2591 = vmatpush.msra.mxu0 0.0
        %2592 = vmatpush.msra.mxu0 0.0
        %2593 = vmatpush.msra.mxu0 0.0
        %2594 = vmatpush.msra.mxu0 %v2497
        %2595 = vmatmul.f32.gmra.mxu0 %v2487
        %v2596 = vpop.f32.mrf.mxu0
        %v2597 = vadd.f32 0.0, %v2596
        %2598 = vdwg.mxu0
        %v2599 = vadd.f32 %v2448, %v2517
        %v2600 = vadd.f32 %v2449, %v2537
        %v2601 = vadd.f32 %v2450, %v2557
        %v2602 = vadd.f32 %v2451, %v2577
        %v2603 = vadd.f32 %v2452, %v2597
        %v2604 = vld [vmem:[%s4] sm:$0xff]
        %v2605 = vld [vmem:[#allocation2] sm:$0xff]
        %v2606 = vld [vmem:[#allocation2 + $0x8] sm:$0xff]
        %v2607 = vld [vmem:[#allocation2 + $0x10] sm:$0xff]
        %2609 = vrot.lane.b32.xlu0 %v2604, 92
        %v2610 = vpop.permute.xlu0 %2609
        %2614 = vst [vmem:[#allocation1] ss:$2 sm:$0xff] %v2605
        %s2615 = scalar_lea.vmem [#allocation1], 16
        %2616 = vst [vmem:[%s2615] ss:$2 sm:$0xff] %v2606
        %s2617 = scalar_lea.vmem [#allocation1], 32
        %2618 = vst [vmem:[%s2617] ss:$2 sm:$0xff] %v2607
        %v2619 = vld.sshfl [vmem:[#allocation1] sm:$0xff pattern:$0x75316420]
        %v2620 = vld.sshfl [vmem:[#allocation1 + $0x8] sm:$0xff pattern:$0x75316420]
        %v2621 = vld.sshfl [vmem:[#allocation1 + $0x10] sm:$0xff pattern:$0x75316420]
        %v2622 = vld.sshfl [vmem:[#allocation1 + $0x18] sm:$0xff pattern:$0x75316420]
        %v2623 = vld.sshfl [vmem:[#allocation1 + $0x20] sm:$0xff pattern:$0x75316420]
        %v2624 = vld.sshfl [vmem:[#allocation1 + $0x28] sm:$0xff pattern:$0x75316420]
        %2625 = vrot.lane.b32.xlu0 %v2619, 119
        %v2626 = vpop.permute.xlu0 %2625
        %2627 = vrot.lane.b32.xlu0 %v2620, 119
        %v2628 = vpop.permute.xlu0 %2627
        %2629 = vrot.lane.b32.xlu0 %v2621, 119
        %v2630 = vpop.permute.xlu0 %2629
        %2631 = vrot.lane.b32.xlu0 %v2622, 119
        %v2632 = vpop.permute.xlu0 %2631
        %2633 = vrot.lane.b32.xlu0 %v2623, 119
        %v2634 = vpop.permute.xlu0 %2633
        %2635 = vrot.lane.b32.xlu0 %v2624, 119
        %v2636 = vpop.permute.xlu0 %2635
        %v2637 = vsel %vm908, %v2626, %v2628
        %v2638 = vsel %vm908, %v2628, %v2630
        %v2639 = vsel %vm908, %v2630, %v2632
        %v2640 = vsel %vm908, %v2632, %v2634
        %v2641 = vsel %vm908, %v2634, %v2636
        %v2642 = vsel %vm1312, %v2610, 0
        %v2644 = vsel %vm437, %v2637, 0
        %v2646 = vsel %vm437, %v2638, 0
        %v2648 = vsel %vm437, %v2639, 0
        %v2650 = vsel %vm437, %v2640, 0
        %v2652 = vsel %vm437, %v2641, 0
        %2654 = vmatpush.msra.mxu0 0.0
        %2655 = vmatpush.msra.mxu0 0.0
        %2656 = vmatpush.msra.mxu0 0.0
        %2657 = vmatpush.msra.mxu0 0.0
        %2658 = vmatpush.msra.mxu0 0.0
        %2659 = vmatpush.msra.mxu0 0.0
        %2660 = vmatpush.msra.mxu0 0.0
        %2661 = vmatpush.msra.mxu0 0.0
        %2662 = vmatpush.msra.mxu0 0.0
        %2663 = vmatpush.msra.mxu0 0.0
        %2664 = vmatpush.msra.mxu0 0.0
        %2665 = vmatpush.msra.mxu0 0.0
        %2666 = vmatpush.msra.mxu0 0.0
        %2667 = vmatpush.msra.mxu0 0.0
        %2668 = vmatpush.msra.mxu0 0.0
        %2669 = vmatpush.msra.mxu0 %v2644
        %2670 = vmatmul.f32.gmra.mxu0 %v2642
        %v2671 = vpop.f32.mrf.mxu0
        %v2672 = vadd.f32 0.0, %v2671
        %2673 = vdwg.mxu0
        %2674 = vmatpush.msra.mxu0 0.0
        %2675 = vmatpush.msra.mxu0 0.0
        %2676 = vmatpush.msra.mxu0 0.0
        %2677 = vmatpush.msra.mxu0 0.0
        %2678 = vmatpush.msra.mxu0 0.0
        %2679 = vmatpush.msra.mxu0 0.0
        %2680 = vmatpush.msra.mxu0 0.0
        %2681 = vmatpush.msra.mxu0 0.0
        %2682 = vmatpush.msra.mxu0 0.0
        %2683 = vmatpush.msra.mxu0 0.0
        %2684 = vmatpush.msra.mxu0 0.0
        %2685 = vmatpush.msra.mxu0 0.0
        %2686 = vmatpush.msra.mxu0 0.0
        %2687 = vmatpush.msra.mxu0 0.0
        %2688 = vmatpush.msra.mxu0 0.0
        %2689 = vmatpush.msra.mxu0 %v2646
        %2690 = vmatmul.f32.gmra.mxu0 %v2642
        %v2691 = vpop.f32.mrf.mxu0
        %v2692 = vadd.f32 0.0, %v2691
        %2693 = vdwg.mxu0
        %2694 = vmatpush.msra.mxu0 0.0
        %2695 = vmatpush.msra.mxu0 0.0
        %2696 = vmatpush.msra.mxu0 0.0
        %2697 = vmatpush.msra.mxu0 0.0
        %2698 = vmatpush.msra.mxu0 0.0
        %2699 = vmatpush.msra.mxu0 0.0
        %2700 = vmatpush.msra.mxu0 0.0
        %2701 = vmatpush.msra.mxu0 0.0
        %2702 = vmatpush.msra.mxu0 0.0
        %2703 = vmatpush.msra.mxu0 0.0
        %2704 = vmatpush.msra.mxu0 0.0
        %2705 = vmatpush.msra.mxu0 0.0
        %2706 = vmatpush.msra.mxu0 0.0
        %2707 = vmatpush.msra.mxu0 0.0
        %2708 = vmatpush.msra.mxu0 0.0
        %2709 = vmatpush.msra.mxu0 %v2648
        %2710 = vmatmul.f32.gmra.mxu0 %v2642
        %v2711 = vpop.f32.mrf.mxu0
        %v2712 = vadd.f32 0.0, %v2711
        %2713 = vdwg.mxu0
        %2714 = vmatpush.msra.mxu0 0.0
        %2715 = vmatpush.msra.mxu0 0.0
        %2716 = vmatpush.msra.mxu0 0.0
        %2717 = vmatpush.msra.mxu0 0.0
        %2718 = vmatpush.msra.mxu0 0.0
        %2719 = vmatpush.msra.mxu0 0.0
        %2720 = vmatpush.msra.mxu0 0.0
        %2721 = vmatpush.msra.mxu0 0.0
        %2722 = vmatpush.msra.mxu0 0.0
        %2723 = vmatpush.msra.mxu0 0.0
        %2724 = vmatpush.msra.mxu0 0.0
        %2725 = vmatpush.msra.mxu0 0.0
        %2726 = vmatpush.msra.mxu0 0.0
        %2727 = vmatpush.msra.mxu0 0.0
        %2728 = vmatpush.msra.mxu0 0.0
        %2729 = vmatpush.msra.mxu0 %v2650
        %2730 = vmatmul.f32.gmra.mxu0 %v2642
        %v2731 = vpop.f32.mrf.mxu0
        %v2732 = vadd.f32 0.0, %v2731
        %2733 = vdwg.mxu0
        %2734 = vmatpush.msra.mxu0 0.0
        %2735 = vmatpush.msra.mxu0 0.0
        %2736 = vmatpush.msra.mxu0 0.0
        %2737 = vmatpush.msra.mxu0 0.0
        %2738 = vmatpush.msra.mxu0 0.0
        %2739 = vmatpush.msra.mxu0 0.0
        %2740 = vmatpush.msra.mxu0 0.0
        %2741 = vmatpush.msra.mxu0 0.0
        %2742 = vmatpush.msra.mxu0 0.0
        %2743 = vmatpush.msra.mxu0 0.0
        %2744 = vmatpush.msra.mxu0 0.0
        %2745 = vmatpush.msra.mxu0 0.0
        %2746 = vmatpush.msra.mxu0 0.0
        %2747 = vmatpush.msra.mxu0 0.0
        %2748 = vmatpush.msra.mxu0 0.0
        %2749 = vmatpush.msra.mxu0 %v2652
        %2750 = vmatmul.f32.gmra.mxu0 %v2642
        %v2751 = vpop.f32.mrf.mxu0
        %v2752 = vadd.f32 0.0, %v2751
        %2753 = vdwg.mxu0
        %v2754 = vadd.f32 %v2599, %v2672
        %v2755 = vadd.f32 %v2600, %v2692
        %v2756 = vadd.f32 %v2601, %v2712
        %v2757 = vadd.f32 %v2602, %v2732
        %v2758 = vadd.f32 %v2603, %v2752
        %v2759 = vld [vmem:[%s4] sm:$0xff]
        %v2760 = vld [vmem:[#allocation2] sm:$0xff]
        %v2761 = vld [vmem:[#allocation2 + $0x8] sm:$0xff]
        %v2762 = vld [vmem:[#allocation2 + $0x10] sm:$0xff]
        %2764 = vrot.lane.b32.xlu0 %v2759, 88
        %v2765 = vpop.permute.xlu0 %2764
        %2769 = vst [vmem:[#allocation1] ss:$2 sm:$0xff] %v2760
        %s2770 = scalar_lea.vmem [#allocation1], 16
        %2771 = vst [vmem:[%s2770] ss:$2 sm:$0xff] %v2761
        %s2772 = scalar_lea.vmem [#allocation1], 32
        %2773 = vst [vmem:[%s2772] ss:$2 sm:$0xff] %v2762
        %v2774 = vld.sshfl [vmem:[#allocation1] sm:$0xff pattern:$0x75316420]
        %v2775 = vld.sshfl [vmem:[#allocation1 + $0x8] sm:$0xff pattern:$0x75316420]
        %v2776 = vld.sshfl [vmem:[#allocation1 + $0x10] sm:$0xff pattern:$0x75316420]
        %v2777 = vld.sshfl [vmem:[#allocation1 + $0x18] sm:$0xff pattern:$0x75316420]
        %v2778 = vld.sshfl [vmem:[#allocation1 + $0x20] sm:$0xff pattern:$0x75316420]
        %v2779 = vld.sshfl [vmem:[#allocation1 + $0x28] sm:$0xff pattern:$0x75316420]
        %2780 = vrot.lane.b32.xlu0 %v2774, 118
        %v2781 = vpop.permute.xlu0 %2780
        %2782 = vrot.lane.b32.xlu0 %v2775, 118
        %v2783 = vpop.permute.xlu0 %2782
        %2784 = vrot.lane.b32.xlu0 %v2776, 118
        %v2785 = vpop.permute.xlu0 %2784
        %2786 = vrot.lane.b32.xlu0 %v2777, 118
        %v2787 = vpop.permute.xlu0 %2786
        %2788 = vrot.lane.b32.xlu0 %v2778, 118
        %v2789 = vpop.permute.xlu0 %2788
        %2790 = vrot.lane.b32.xlu0 %v2779, 118
        %v2791 = vpop.permute.xlu0 %2790
        %v2792 = vsel %vm952, %v2781, %v2783
        %v2793 = vsel %vm952, %v2783, %v2785
        %v2794 = vsel %vm952, %v2785, %v2787
        %v2795 = vsel %vm952, %v2787, %v2789
        %v2796 = vsel %vm952, %v2789, %v2791
        %v2797 = vsel %vm1312, %v2765, 0
        %v2799 = vsel %vm437, %v2792, 0
        %v2801 = vsel %vm437, %v2793, 0
        %v2803 = vsel %vm437, %v2794, 0
        %v2805 = vsel %vm437, %v2795, 0
        %v2807 = vsel %vm437, %v2796, 0
        %2809 = vmatpush.msra.mxu0 0.0
        %2810 = vmatpush.msra.mxu0 0.0
        %2811 = vmatpush.msra.mxu0 0.0
        %2812 = vmatpush.msra.mxu0 0.0
        %2813 = vmatpush.msra.mxu0 0.0
        %2814 = vmatpush.msra.mxu0 0.0
        %2815 = vmatpush.msra.mxu0 0.0
        %2816 = vmatpush.msra.mxu0 0.0
        %2817 = vmatpush.msra.mxu0 0.0
        %2818 = vmatpush.msra.mxu0 0.0
        %2819 = vmatpush.msra.mxu0 0.0
        %2820 = vmatpush.msra.mxu0 0.0
        %2821 = vmatpush.msra.mxu0 0.0
        %2822 = vmatpush.msra.mxu0 0.0
        %2823 = vmatpush.msra.mxu0 0.0
        %2824 = vmatpush.msra.mxu0 %v2799
        %2825 = vmatmul.f32.gmra.mxu0 %v2797
        %v2826 = vpop.f32.mrf.mxu0
        %v2827 = vadd.f32 0.0, %v2826
        %2828 = vdwg.mxu0
        %2829 = vmatpush.msra.mxu0 0.0
        %2830 = vmatpush.msra.mxu0 0.0
        %2831 = vmatpush.msra.mxu0 0.0
        %2832 = vmatpush.msra.mxu0 0.0
        %2833 = vmatpush.msra.mxu0 0.0
        %2834 = vmatpush.msra.mxu0 0.0
        %2835 = vmatpush.msra.mxu0 0.0
        %2836 = vmatpush.msra.mxu0 0.0
        %2837 = vmatpush.msra.mxu0 0.0
        %2838 = vmatpush.msra.mxu0 0.0
        %2839 = vmatpush.msra.mxu0 0.0
        %2840 = vmatpush.msra.mxu0 0.0
        %2841 = vmatpush.msra.mxu0 0.0
        %2842 = vmatpush.msra.mxu0 0.0
        %2843 = vmatpush.msra.mxu0 0.0
        %2844 = vmatpush.msra.mxu0 %v2801
        %2845 = vmatmul.f32.gmra.mxu0 %v2797
        %v2846 = vpop.f32.mrf.mxu0
        %v2847 = vadd.f32 0.0, %v2846
        %2848 = vdwg.mxu0
        %2849 = vmatpush.msra.mxu0 0.0
        %2850 = vmatpush.msra.mxu0 0.0
        %2851 = vmatpush.msra.mxu0 0.0
        %2852 = vmatpush.msra.mxu0 0.0
        %2853 = vmatpush.msra.mxu0 0.0
        %2854 = vmatpush.msra.mxu0 0.0
        %2855 = vmatpush.msra.mxu0 0.0
        %2856 = vmatpush.msra.mxu0 0.0
        %2857 = vmatpush.msra.mxu0 0.0
        %2858 = vmatpush.msra.mxu0 0.0
        %2859 = vmatpush.msra.mxu0 0.0
        %2860 = vmatpush.msra.mxu0 0.0
        %2861 = vmatpush.msra.mxu0 0.0
        %2862 = vmatpush.msra.mxu0 0.0
        %2863 = vmatpush.msra.mxu0 0.0
        %2864 = vmatpush.msra.mxu0 %v2803
        %2865 = vmatmul.f32.gmra.mxu0 %v2797
        %v2866 = vpop.f32.mrf.mxu0
        %v2867 = vadd.f32 0.0, %v2866
        %2868 = vdwg.mxu0
        %2869 = vmatpush.msra.mxu0 0.0
        %2870 = vmatpush.msra.mxu0 0.0
        %2871 = vmatpush.msra.mxu0 0.0
        %2872 = vmatpush.msra.mxu0 0.0
        %2873 = vmatpush.msra.mxu0 0.0
        %2874 = vmatpush.msra.mxu0 0.0
        %2875 = vmatpush.msra.mxu0 0.0
        %2876 = vmatpush.msra.mxu0 0.0
        %2877 = vmatpush.msra.mxu0 0.0
        %2878 = vmatpush.msra.mxu0 0.0
        %2879 = vmatpush.msra.mxu0 0.0
        %2880 = vmatpush.msra.mxu0 0.0
        %2881 = vmatpush.msra.mxu0 0.0
        %2882 = vmatpush.msra.mxu0 0.0
        %2883 = vmatpush.msra.mxu0 0.0
        %2884 = vmatpush.msra.mxu0 %v2805
        %2885 = vmatmul.f32.gmra.mxu0 %v2797
        %v2886 = vpop.f32.mrf.mxu0
        %v2887 = vadd.f32 0.0, %v2886
        %2888 = vdwg.mxu0
        %2889 = vmatpush.msra.mxu0 0.0
        %2890 = vmatpush.msra.mxu0 0.0
        %2891 = vmatpush.msra.mxu0 0.0
        %2892 = vmatpush.msra.mxu0 0.0
        %2893 = vmatpush.msra.mxu0 0.0
        %2894 = vmatpush.msra.mxu0 0.0
        %2895 = vmatpush.msra.mxu0 0.0
        %2896 = vmatpush.msra.mxu0 0.0
        %2897 = vmatpush.msra.mxu0 0.0
        %2898 = vmatpush.msra.mxu0 0.0
        %2899 = vmatpush.msra.mxu0 0.0
        %2900 = vmatpush.msra.mxu0 0.0
        %2901 = vmatpush.msra.mxu0 0.0
        %2902 = vmatpush.msra.mxu0 0.0
        %2903 = vmatpush.msra.mxu0 0.0
        %2904 = vmatpush.msra.mxu0 %v2807
        %2905 = vmatmul.f32.gmra.mxu0 %v2797
        %v2906 = vpop.f32.mrf.mxu0
        %v2907 = vadd.f32 0.0, %v2906
        %2908 = vdwg.mxu0
        %v2909 = vadd.f32 %v2754, %v2827
        %v2910 = vadd.f32 %v2755, %v2847
        %v2911 = vadd.f32 %v2756, %v2867
        %v2912 = vadd.f32 %v2757, %v2887
        %v2913 = vadd.f32 %v2758, %v2907
        %v2914 = vld [vmem:[%s4] sm:$0xff]
        %v2915 = vld [vmem:[#allocation2] sm:$0xff]
        %v2916 = vld [vmem:[#allocation2 + $0x8] sm:$0xff]
        %v2917 = vld [vmem:[#allocation2 + $0x10] sm:$0xff]
        %2919 = vrot.lane.b32.xlu0 %v2914, 84
        %v2920 = vpop.permute.xlu0 %2919
        %2924 = vst [vmem:[#allocation1] ss:$2 sm:$0xff] %v2915
        %s2925 = scalar_lea.vmem [#allocation1], 16
        %2926 = vst [vmem:[%s2925] ss:$2 sm:$0xff] %v2916
        %s2927 = scalar_lea.vmem [#allocation1], 32
        %2928 = vst [vmem:[%s2927] ss:$2 sm:$0xff] %v2917
        %v2929 = vld.sshfl [vmem:[#allocation1] sm:$0xff pattern:$0x75316420]
        %v2930 = vld.sshfl [vmem:[#allocation1 + $0x8] sm:$0xff pattern:$0x75316420]
        %v2931 = vld.sshfl [vmem:[#allocation1 + $0x10] sm:$0xff pattern:$0x75316420]
        %v2932 = vld.sshfl [vmem:[#allocation1 + $0x18] sm:$0xff pattern:$0x75316420]
        %v2933 = vld.sshfl [vmem:[#allocation1 + $0x20] sm:$0xff pattern:$0x75316420]
        %v2934 = vld.sshfl [vmem:[#allocation1 + $0x28] sm:$0xff pattern:$0x75316420]
        %2935 = vrot.lane.b32.xlu0 %v2929, 117
        %v2936 = vpop.permute.xlu0 %2935
        %2937 = vrot.lane.b32.xlu0 %v2930, 117
        %v2938 = vpop.permute.xlu0 %2937
        %2939 = vrot.lane.b32.xlu0 %v2931, 117
        %v2940 = vpop.permute.xlu0 %2939
        %2941 = vrot.lane.b32.xlu0 %v2932, 117
        %v2942 = vpop.permute.xlu0 %2941
        %2943 = vrot.lane.b32.xlu0 %v2933, 117
        %v2944 = vpop.permute.xlu0 %2943
        %2945 = vrot.lane.b32.xlu0 %v2934, 117
        %v2946 = vpop.permute.xlu0 %2945
        %v2947 = vsel %vm996, %v2936, %v2938
        %v2948 = vsel %vm996, %v2938, %v2940
        %v2949 = vsel %vm996, %v2940, %v2942
        %v2950 = vsel %vm996, %v2942, %v2944
        %v2951 = vsel %vm996, %v2944, %v2946
        %v2952 = vsel %vm1312, %v2920, 0
        %v2954 = vsel %vm437, %v2947, 0
        %v2956 = vsel %vm437, %v2948, 0
        %v2958 = vsel %vm437, %v2949, 0
        %v2960 = vsel %vm437, %v2950, 0
        %v2962 = vsel %vm437, %v2951, 0
        %2964 = vmatpush.msra.mxu0 0.0
        %2965 = vmatpush.msra.mxu0 0.0
        %2966 = vmatpush.msra.mxu0 0.0
        %2967 = vmatpush.msra.mxu0 0.0
        %2968 = vmatpush.msra.mxu0 0.0
        %2969 = vmatpush.msra.mxu0 0.0
        %2970 = vmatpush.msra.mxu0 0.0
        %2971 = vmatpush.msra.mxu0 0.0
        %2972 = vmatpush.msra.mxu0 0.0
        %2973 = vmatpush.msra.mxu0 0.0
        %2974 = vmatpush.msra.mxu0 0.0
        %2975 = vmatpush.msra.mxu0 0.0
        %2976 = vmatpush.msra.mxu0 0.0
        %2977 = vmatpush.msra.mxu0 0.0
        %2978 = vmatpush.msra.mxu0 0.0
        %2979 = vmatpush.msra.mxu0 %v2954
        %2980 = vmatmul.f32.gmra.mxu0 %v2952
        %v2981 = vpop.f32.mrf.mxu0
        %v2982 = vadd.f32 0.0, %v2981
        %2983 = vdwg.mxu0
        %2984 = vmatpush.msra.mxu0 0.0
        %2985 = vmatpush.msra.mxu0 0.0
        %2986 = vmatpush.msra.mxu0 0.0
        %2987 = vmatpush.msra.mxu0 0.0
        %2988 = vmatpush.msra.mxu0 0.0
        %2989 = vmatpush.msra.mxu0 0.0
        %2990 = vmatpush.msra.mxu0 0.0
        %2991 = vmatpush.msra.mxu0 0.0
        %2992 = vmatpush.msra.mxu0 0.0
        %2993 = vmatpush.msra.mxu0 0.0
        %2994 = vmatpush.msra.mxu0 0.0
        %2995 = vmatpush.msra.mxu0 0.0
        %2996 = vmatpush.msra.mxu0 0.0
        %2997 = vmatpush.msra.mxu0 0.0
        %2998 = vmatpush.msra.mxu0 0.0
        %2999 = vmatpush.msra.mxu0 %v2956
        %3000 = vmatmul.f32.gmra.mxu0 %v2952
        %v3001 = vpop.f32.mrf.mxu0
        %v3002 = vadd.f32 0.0, %v3001
        %3003 = vdwg.mxu0
        %3004 = vmatpush.msra.mxu0 0.0
        %3005 = vmatpush.msra.mxu0 0.0
        %3006 = vmatpush.msra.mxu0 0.0
        %3007 = vmatpush.msra.mxu0 0.0
        %3008 = vmatpush.msra.mxu0 0.0
        %3009 = vmatpush.msra.mxu0 0.0
        %3010 = vmatpush.msra.mxu0 0.0
        %3011 = vmatpush.msra.mxu0 0.0
        %3012 = vmatpush.msra.mxu0 0.0
        %3013 = vmatpush.msra.mxu0 0.0
        %3014 = vmatpush.msra.mxu0 0.0
        %3015 = vmatpush.msra.mxu0 0.0
        %3016 = vmatpush.msra.mxu0 0.0
        %3017 = vmatpush.msra.mxu0 0.0
        %3018 = vmatpush.msra.mxu0 0.0
        %3019 = vmatpush.msra.mxu0 %v2958
        %3020 = vmatmul.f32.gmra.mxu0 %v2952
        %v3021 = vpop.f32.mrf.mxu0
        %v3022 = vadd.f32 0.0, %v3021
        %3023 = vdwg.mxu0
        %3024 = vmatpush.msra.mxu0 0.0
        %3025 = vmatpush.msra.mxu0 0.0
        %3026 = vmatpush.msra.mxu0 0.0
        %3027 = vmatpush.msra.mxu0 0.0
        %3028 = vmatpush.msra.mxu0 0.0
        %3029 = vmatpush.msra.mxu0 0.0
        %3030 = vmatpush.msra.mxu0 0.0
        %3031 = vmatpush.msra.mxu0 0.0
        %3032 = vmatpush.msra.mxu0 0.0
        %3033 = vmatpush.msra.mxu0 0.0
        %3034 = vmatpush.msra.mxu0 0.0
        %3035 = vmatpush.msra.mxu0 0.0
        %3036 = vmatpush.msra.mxu0 0.0
        %3037 = vmatpush.msra.mxu0 0.0
        %3038 = vmatpush.msra.mxu0 0.0
        %3039 = vmatpush.msra.mxu0 %v2960
        %3040 = vmatmul.f32.gmra.mxu0 %v2952
        %v3041 = vpop.f32.mrf.mxu0
        %v3042 = vadd.f32 0.0, %v3041
        %3043 = vdwg.mxu0
        %3044 = vmatpush.msra.mxu0 0.0
        %3045 = vmatpush.msra.mxu0 0.0
        %3046 = vmatpush.msra.mxu0 0.0
        %3047 = vmatpush.msra.mxu0 0.0
        %3048 = vmatpush.msra.mxu0 0.0
        %3049 = vmatpush.msra.mxu0 0.0
        %3050 = vmatpush.msra.mxu0 0.0
        %3051 = vmatpush.msra.mxu0 0.0
        %3052 = vmatpush.msra.mxu0 0.0
        %3053 = vmatpush.msra.mxu0 0.0
        %3054 = vmatpush.msra.mxu0 0.0
        %3055 = vmatpush.msra.mxu0 0.0
        %3056 = vmatpush.msra.mxu0 0.0
        %3057 = vmatpush.msra.mxu0 0.0
        %3058 = vmatpush.msra.mxu0 0.0
        %3059 = vmatpush.msra.mxu0 %v2962
        %3060 = vmatmul.f32.gmra.mxu0 %v2952
        %v3061 = vpop.f32.mrf.mxu0
        %v3062 = vadd.f32 0.0, %v3061
        %3063 = vdwg.mxu0
        %v3064 = vadd.f32 %v2909, %v2982
        %v3065 = vadd.f32 %v2910, %v3002
        %v3066 = vadd.f32 %v2911, %v3022
        %v3067 = vadd.f32 %v2912, %v3042
        %v3068 = vadd.f32 %v2913, %v3062
        %v3069 = vld [vmem:[%s4] sm:$0xff]
        %v3070 = vld [vmem:[#allocation2] sm:$0xff]
        %v3071 = vld [vmem:[#allocation2 + $0x8] sm:$0xff]
        %v3072 = vld [vmem:[#allocation2 + $0x10] sm:$0xff]
        %3074 = vrot.lane.b32.xlu0 %v3069, 80
        %v3075 = vpop.permute.xlu0 %3074
        %3079 = vst [vmem:[#allocation1] ss:$2 sm:$0xff] %v3070
        %s3080 = scalar_lea.vmem [#allocation1], 16
        %3081 = vst [vmem:[%s3080] ss:$2 sm:$0xff] %v3071
        %s3082 = scalar_lea.vmem [#allocation1], 32
        %3083 = vst [vmem:[%s3082] ss:$2 sm:$0xff] %v3072
        %v3084 = vld.sshfl [vmem:[#allocation1] sm:$0xff pattern:$0x75316420]
        %v3085 = vld.sshfl [vmem:[#allocation1 + $0x8] sm:$0xff pattern:$0x75316420]
        %v3086 = vld.sshfl [vmem:[#allocation1 + $0x10] sm:$0xff pattern:$0x75316420]
        %v3087 = vld.sshfl [vmem:[#allocation1 + $0x18] sm:$0xff pattern:$0x75316420]
        %v3088 = vld.sshfl [vmem:[#allocation1 + $0x20] sm:$0xff pattern:$0x75316420]
        %v3089 = vld.sshfl [vmem:[#allocation1 + $0x28] sm:$0xff pattern:$0x75316420]
        %3090 = vrot.lane.b32.xlu0 %v3084, 116
        %v3091 = vpop.permute.xlu0 %3090
        %3092 = vrot.lane.b32.xlu0 %v3085, 116
        %v3093 = vpop.permute.xlu0 %3092
        %3094 = vrot.lane.b32.xlu0 %v3086, 116
        %v3095 = vpop.permute.xlu0 %3094
        %3096 = vrot.lane.b32.xlu0 %v3087, 116
        %v3097 = vpop.permute.xlu0 %3096
        %3098 = vrot.lane.b32.xlu0 %v3088, 116
        %v3099 = vpop.permute.xlu0 %3098
        %3100 = vrot.lane.b32.xlu0 %v3089, 116
        %v3101 = vpop.permute.xlu0 %3100
        %v3102 = vsel %vm1040, %v3091, %v3093
        %v3103 = vsel %vm1040, %v3093, %v3095
        %v3104 = vsel %vm1040, %v3095, %v3097
        %v3105 = vsel %vm1040, %v3097, %v3099
        %v3106 = vsel %vm1040, %v3099, %v3101
        %v3107 = vsel %vm1312, %v3075, 0
        %v3109 = vsel %vm437, %v3102, 0
        %v3111 = vsel %vm437, %v3103, 0
        %v3113 = vsel %vm437, %v3104, 0
        %v3115 = vsel %vm437, %v3105, 0
        %v3117 = vsel %vm437, %v3106, 0
        %3119 = vmatpush.msra.mxu0 0.0
        %3120 = vmatpush.msra.mxu0 0.0
        %3121 = vmatpush.msra.mxu0 0.0
        %3122 = vmatpush.msra.mxu0 0.0
        %3123 = vmatpush.msra.mxu0 0.0
        %3124 = vmatpush.msra.mxu0 0.0
        %3125 = vmatpush.msra.mxu0 0.0
        %3126 = vmatpush.msra.mxu0 0.0
        %3127 = vmatpush.msra.mxu0 0.0
        %3128 = vmatpush.msra.mxu0 0.0
        %3129 = vmatpush.msra.mxu0 0.0
        %3130 = vmatpush.msra.mxu0 0.0
        %3131 = vmatpush.msra.mxu0 0.0
        %3132 = vmatpush.msra.mxu0 0.0
        %3133 = vmatpush.msra.mxu0 0.0
        %3134 = vmatpush.msra.mxu0 %v3109
        %3135 = vmatmul.f32.gmra.mxu0 %v3107
        %v3136 = vpop.f32.mrf.mxu0
        %v3137 = vadd.f32 0.0, %v3136
        %3138 = vdwg.mxu0
        %3139 = vmatpush.msra.mxu0 0.0
        %3140 = vmatpush.msra.mxu0 0.0
        %3141 = vmatpush.msra.mxu0 0.0
        %3142 = vmatpush.msra.mxu0 0.0
        %3143 = vmatpush.msra.mxu0 0.0
        %3144 = vmatpush.msra.mxu0 0.0
        %3145 = vmatpush.msra.mxu0 0.0
        %3146 = vmatpush.msra.mxu0 0.0
        %3147 = vmatpush.msra.mxu0 0.0
        %3148 = vmatpush.msra.mxu0 0.0
        %3149 = vmatpush.msra.mxu0 0.0
        %3150 = vmatpush.msra.mxu0 0.0
        %3151 = vmatpush.msra.mxu0 0.0
        %3152 = vmatpush.msra.mxu0 0.0
        %3153 = vmatpush.msra.mxu0 0.0
        %3154 = vmatpush.msra.mxu0 %v3111
        %3155 = vmatmul.f32.gmra.mxu0 %v3107
        %v3156 = vpop.f32.mrf.mxu0
        %v3157 = vadd.f32 0.0, %v3156
        %3158 = vdwg.mxu0
        %3159 = vmatpush.msra.mxu0 0.0
        %3160 = vmatpush.msra.mxu0 0.0
        %3161 = vmatpush.msra.mxu0 0.0
        %3162 = vmatpush.msra.mxu0 0.0
        %3163 = vmatpush.msra.mxu0 0.0
        %3164 = vmatpush.msra.mxu0 0.0
        %3165 = vmatpush.msra.mxu0 0.0
        %3166 = vmatpush.msra.mxu0 0.0
        %3167 = vmatpush.msra.mxu0 0.0
        %3168 = vmatpush.msra.mxu0 0.0
        %3169 = vmatpush.msra.mxu0 0.0
        %3170 = vmatpush.msra.mxu0 0.0
        %3171 = vmatpush.msra.mxu0 0.0
        %3172 = vmatpush.msra.mxu0 0.0
        %3173 = vmatpush.msra.mxu0 0.0
        %3174 = vmatpush.msra.mxu0 %v3113
        %3175 = vmatmul.f32.gmra.mxu0 %v3107
        %v3176 = vpop.f32.mrf.mxu0
        %v3177 = vadd.f32 0.0, %v3176
        %3178 = vdwg.mxu0
        %3179 = vmatpush.msra.mxu0 0.0
        %3180 = vmatpush.msra.mxu0 0.0
        %3181 = vmatpush.msra.mxu0 0.0
        %3182 = vmatpush.msra.mxu0 0.0
        %3183 = vmatpush.msra.mxu0 0.0
        %3184 = vmatpush.msra.mxu0 0.0
        %3185 = vmatpush.msra.mxu0 0.0
        %3186 = vmatpush.msra.mxu0 0.0
        %3187 = vmatpush.msra.mxu0 0.0
        %3188 = vmatpush.msra.mxu0 0.0
        %3189 = vmatpush.msra.mxu0 0.0
        %3190 = vmatpush.msra.mxu0 0.0
        %3191 = vmatpush.msra.mxu0 0.0
        %3192 = vmatpush.msra.mxu0 0.0
        %3193 = vmatpush.msra.mxu0 0.0
        %3194 = vmatpush.msra.mxu0 %v3115
        %3195 = vmatmul.f32.gmra.mxu0 %v3107
        %v3196 = vpop.f32.mrf.mxu0
        %v3197 = vadd.f32 0.0, %v3196
        %3198 = vdwg.mxu0
        %3199 = vmatpush.msra.mxu0 0.0
        %3200 = vmatpush.msra.mxu0 0.0
        %3201 = vmatpush.msra.mxu0 0.0
        %3202 = vmatpush.msra.mxu0 0.0
        %3203 = vmatpush.msra.mxu0 0.0
        %3204 = vmatpush.msra.mxu0 0.0
        %3205 = vmatpush.msra.mxu0 0.0
        %3206 = vmatpush.msra.mxu0 0.0
        %3207 = vmatpush.msra.mxu0 0.0
        %3208 = vmatpush.msra.mxu0 0.0
        %3209 = vmatpush.msra.mxu0 0.0
        %3210 = vmatpush.msra.mxu0 0.0
        %3211 = vmatpush.msra.mxu0 0.0
        %3212 = vmatpush.msra.mxu0 0.0
        %3213 = vmatpush.msra.mxu0 0.0
        %3214 = vmatpush.msra.mxu0 %v3117
        %3215 = vmatmul.f32.gmra.mxu0 %v3107
        %v3216 = vpop.f32.mrf.mxu0
        %v3217 = vadd.f32 0.0, %v3216
        %3218 = vdwg.mxu0
        %v3219 = vadd.f32 %v3064, %v3137
        %v3220 = vadd.f32 %v3065, %v3157
        %v3221 = vadd.f32 %v3066, %v3177
        %v3222 = vadd.f32 %v3067, %v3197
        %v3223 = vadd.f32 %v3068, %v3217
        %v3224 = vld [vmem:[%s4] sm:$0xff]
        %v3225 = vld [vmem:[#allocation2] sm:$0xff]
        %v3226 = vld [vmem:[#allocation2 + $0x8] sm:$0xff]
        %v3227 = vld [vmem:[#allocation2 + $0x10] sm:$0xff]
        %3229 = vrot.lane.b32.xlu0 %v3224, 76
        %v3230 = vpop.permute.xlu0 %3229
        %3234 = vst [vmem:[#allocation1] ss:$2 sm:$0xff] %v3225
        %s3235 = scalar_lea.vmem [#allocation1], 16
        %3236 = vst [vmem:[%s3235] ss:$2 sm:$0xff] %v3226
        %s3237 = scalar_lea.vmem [#allocation1], 32
        %3238 = vst [vmem:[%s3237] ss:$2 sm:$0xff] %v3227
        %v3239 = vld.sshfl [vmem:[#allocation1] sm:$0xff pattern:$0x75316420]
        %v3240 = vld.sshfl [vmem:[#allocation1 + $0x8] sm:$0xff pattern:$0x75316420]
        %v3241 = vld.sshfl [vmem:[#allocation1 + $0x10] sm:$0xff pattern:$0x75316420]
        %v3242 = vld.sshfl [vmem:[#allocation1 + $0x18] sm:$0xff pattern:$0x75316420]
        %v3243 = vld.sshfl [vmem:[#allocation1 + $0x20] sm:$0xff pattern:$0x75316420]
        %v3244 = vld.sshfl [vmem:[#allocation1 + $0x28] sm:$0xff pattern:$0x75316420]
        %3245 = vrot.lane.b32.xlu0 %v3239, 115
        %v3246 = vpop.permute.xlu0 %3245
        %3247 = vrot.lane.b32.xlu0 %v3240, 115
        %v3248 = vpop.permute.xlu0 %3247
        %3249 = vrot.lane.b32.xlu0 %v3241, 115
        %v3250 = vpop.permute.xlu0 %3249
        %3251 = vrot.lane.b32.xlu0 %v3242, 115
        %v3252 = vpop.permute.xlu0 %3251
        %3253 = vrot.lane.b32.xlu0 %v3243, 115
        %v3254 = vpop.permute.xlu0 %3253
        %3255 = vrot.lane.b32.xlu0 %v3244, 115
        %v3256 = vpop.permute.xlu0 %3255
        %v3257 = vsel %vm1084, %v3246, %v3248
        %v3258 = vsel %vm1084, %v3248, %v3250
        %v3259 = vsel %vm1084, %v3250, %v3252
        %v3260 = vsel %vm1084, %v3252, %v3254
        %v3261 = vsel %vm1084, %v3254, %v3256
        %v3262 = vsel %vm1312, %v3230, 0
        %v3264 = vsel %vm437, %v3257, 0
        %v3266 = vsel %vm437, %v3258, 0
        %v3268 = vsel %vm437, %v3259, 0
        %v3270 = vsel %vm437, %v3260, 0
        %v3272 = vsel %vm437, %v3261, 0
        %3274 = vmatpush.msra.mxu0 0.0
        %3275 = vmatpush.msra.mxu0 0.0
        %3276 = vmatpush.msra.mxu0 0.0
        %3277 = vmatpush.msra.mxu0 0.0
        %3278 = vmatpush.msra.mxu0 0.0
        %3279 = vmatpush.msra.mxu0 0.0
        %3280 = vmatpush.msra.mxu0 0.0
        %3281 = vmatpush.msra.mxu0 0.0
        %3282 = vmatpush.msra.mxu0 0.0
        %3283 = vmatpush.msra.mxu0 0.0
        %3284 = vmatpush.msra.mxu0 0.0
        %3285 = vmatpush.msra.mxu0 0.0
        %3286 = vmatpush.msra.mxu0 0.0
        %3287 = vmatpush.msra.mxu0 0.0
        %3288 = vmatpush.msra.mxu0 0.0
        %3289 = vmatpush.msra.mxu0 %v3264
        %3290 = vmatmul.f32.gmra.mxu0 %v3262
        %v3291 = vpop.f32.mrf.mxu0
        %v3292 = vadd.f32 0.0, %v3291
        %3293 = vdwg.mxu0
        %3294 = vmatpush.msra.mxu0 0.0
        %3295 = vmatpush.msra.mxu0 0.0
        %3296 = vmatpush.msra.mxu0 0.0
        %3297 = vmatpush.msra.mxu0 0.0
        %3298 = vmatpush.msra.mxu0 0.0
        %3299 = vmatpush.msra.mxu0 0.0
        %3300 = vmatpush.msra.mxu0 0.0
        %3301 = vmatpush.msra.mxu0 0.0
        %3302 = vmatpush.msra.mxu0 0.0
        %3303 = vmatpush.msra.mxu0 0.0
        %3304 = vmatpush.msra.mxu0 0.0
        %3305 = vmatpush.msra.mxu0 0.0
        %3306 = vmatpush.msra.mxu0 0.0
        %3307 = vmatpush.msra.mxu0 0.0
        %3308 = vmatpush.msra.mxu0 0.0
        %3309 = vmatpush.msra.mxu0 %v3266
        %3310 = vmatmul.f32.gmra.mxu0 %v3262
        %v3311 = vpop.f32.mrf.mxu0
        %v3312 = vadd.f32 0.0, %v3311
        %3313 = vdwg.mxu0
        %3314 = vmatpush.msra.mxu0 0.0
        %3315 = vmatpush.msra.mxu0 0.0
        %3316 = vmatpush.msra.mxu0 0.0
        %3317 = vmatpush.msra.mxu0 0.0
        %3318 = vmatpush.msra.mxu0 0.0
        %3319 = vmatpush.msra.mxu0 0.0
        %3320 = vmatpush.msra.mxu0 0.0
        %3321 = vmatpush.msra.mxu0 0.0
        %3322 = vmatpush.msra.mxu0 0.0
        %3323 = vmatpush.msra.mxu0 0.0
        %3324 = vmatpush.msra.mxu0 0.0
        %3325 = vmatpush.msra.mxu0 0.0
        %3326 = vmatpush.msra.mxu0 0.0
        %3327 = vmatpush.msra.mxu0 0.0
        %3328 = vmatpush.msra.mxu0 0.0
        %3329 = vmatpush.msra.mxu0 %v3268
        %3330 = vmatmul.f32.gmra.mxu0 %v3262
        %v3331 = vpop.f32.mrf.mxu0
        %v3332 = vadd.f32 0.0, %v3331
        %3333 = vdwg.mxu0
        %3334 = vmatpush.msra.mxu0 0.0
        %3335 = vmatpush.msra.mxu0 0.0
        %3336 = vmatpush.msra.mxu0 0.0
        %3337 = vmatpush.msra.mxu0 0.0
        %3338 = vmatpush.msra.mxu0 0.0
        %3339 = vmatpush.msra.mxu0 0.0
        %3340 = vmatpush.msra.mxu0 0.0
        %3341 = vmatpush.msra.mxu0 0.0
        %3342 = vmatpush.msra.mxu0 0.0
        %3343 = vmatpush.msra.mxu0 0.0
        %3344 = vmatpush.msra.mxu0 0.0
        %3345 = vmatpush.msra.mxu0 0.0
        %3346 = vmatpush.msra.mxu0 0.0
        %3347 = vmatpush.msra.mxu0 0.0
        %3348 = vmatpush.msra.mxu0 0.0
        %3349 = vmatpush.msra.mxu0 %v3270
        %3350 = vmatmul.f32.gmra.mxu0 %v3262
        %v3351 = vpop.f32.mrf.mxu0
        %v3352 = vadd.f32 0.0, %v3351
        %3353 = vdwg.mxu0
        %3354 = vmatpush.msra.mxu0 0.0
        %3355 = vmatpush.msra.mxu0 0.0
        %3356 = vmatpush.msra.mxu0 0.0
        %3357 = vmatpush.msra.mxu0 0.0
        %3358 = vmatpush.msra.mxu0 0.0
        %3359 = vmatpush.msra.mxu0 0.0
        %3360 = vmatpush.msra.mxu0 0.0
        %3361 = vmatpush.msra.mxu0 0.0
        %3362 = vmatpush.msra.mxu0 0.0
        %3363 = vmatpush.msra.mxu0 0.0
        %3364 = vmatpush.msra.mxu0 0.0
        %3365 = vmatpush.msra.mxu0 0.0
        %3366 = vmatpush.msra.mxu0 0.0
        %3367 = vmatpush.msra.mxu0 0.0
        %3368 = vmatpush.msra.mxu0 0.0
        %3369 = vmatpush.msra.mxu0 %v3272
        %3370 = vmatmul.f32.gmra.mxu0 %v3262
        %v3371 = vpop.f32.mrf.mxu0
        %v3372 = vadd.f32 0.0, %v3371
        %3373 = vdwg.mxu0
        %v3374 = vadd.f32 %v3219, %v3292
        %v3375 = vadd.f32 %v3220, %v3312
        %v3376 = vadd.f32 %v3221, %v3332
        %v3377 = vadd.f32 %v3222, %v3352
        %v3378 = vadd.f32 %v3223, %v3372
        %v3379 = vld [vmem:[%s4] sm:$0xff]
        %v3380 = vld [vmem:[#allocation2] sm:$0xff]
        %v3381 = vld [vmem:[#allocation2 + $0x8] sm:$0xff]
        %v3382 = vld [vmem:[#allocation2 + $0x10] sm:$0xff]
        %3384 = vrot.lane.b32.xlu0 %v3379, 72
        %v3385 = vpop.permute.xlu0 %3384
        %3389 = vst [vmem:[#allocation1] ss:$2 sm:$0xff] %v3380
        %s3390 = scalar_lea.vmem [#allocation1], 16
        %3391 = vst [vmem:[%s3390] ss:$2 sm:$0xff] %v3381
        %s3392 = scalar_lea.vmem [#allocation1], 32
        %3393 = vst [vmem:[%s3392] ss:$2 sm:$0xff] %v3382
        %v3394 = vld.sshfl [vmem:[#allocation1] sm:$0xff pattern:$0x75316420]
        %v3395 = vld.sshfl [vmem:[#allocation1 + $0x8] sm:$0xff pattern:$0x75316420]
        %v3396 = vld.sshfl [vmem:[#allocation1 + $0x10] sm:$0xff pattern:$0x75316420]
        %v3397 = vld.sshfl [vmem:[#allocation1 + $0x18] sm:$0xff pattern:$0x75316420]
        %v3398 = vld.sshfl [vmem:[#allocation1 + $0x20] sm:$0xff pattern:$0x75316420]
        %v3399 = vld.sshfl [vmem:[#allocation1 + $0x28] sm:$0xff pattern:$0x75316420]
        %3400 = vrot.lane.b32.xlu0 %v3394, 114
        %v3401 = vpop.permute.xlu0 %3400
        %3402 = vrot.lane.b32.xlu0 %v3395, 114
        %v3403 = vpop.permute.xlu0 %3402
        %3404 = vrot.lane.b32.xlu0 %v3396, 114
        %v3405 = vpop.permute.xlu0 %3404
        %3406 = vrot.lane.b32.xlu0 %v3397, 114
        %v3407 = vpop.permute.xlu0 %3406
        %3408 = vrot.lane.b32.xlu0 %v3398, 114
        %v3409 = vpop.permute.xlu0 %3408
        %3410 = vrot.lane.b32.xlu0 %v3399, 114
        %v3411 = vpop.permute.xlu0 %3410
        %v3412 = vsel %vm1128, %v3401, %v3403
        %v3413 = vsel %vm1128, %v3403, %v3405
        %v3414 = vsel %vm1128, %v3405, %v3407
        %v3415 = vsel %vm1128, %v3407, %v3409
        %v3416 = vsel %vm1128, %v3409, %v3411
        %v3417 = vsel %vm1312, %v3385, 0
        %v3419 = vsel %vm437, %v3412, 0
        %v3421 = vsel %vm437, %v3413, 0
        %v3423 = vsel %vm437, %v3414, 0
        %v3425 = vsel %vm437, %v3415, 0
        %v3427 = vsel %vm437, %v3416, 0
        %3429 = vmatpush.msra.mxu0 0.0
        %3430 = vmatpush.msra.mxu0 0.0
        %3431 = vmatpush.msra.mxu0 0.0
        %3432 = vmatpush.msra.mxu0 0.0
        %3433 = vmatpush.msra.mxu0 0.0
        %3434 = vmatpush.msra.mxu0 0.0
        %3435 = vmatpush.msra.mxu0 0.0
        %3436 = vmatpush.msra.mxu0 0.0
        %3437 = vmatpush.msra.mxu0 0.0
        %3438 = vmatpush.msra.mxu0 0.0
        %3439 = vmatpush.msra.mxu0 0.0
        %3440 = vmatpush.msra.mxu0 0.0
        %3441 = vmatpush.msra.mxu0 0.0
        %3442 = vmatpush.msra.mxu0 0.0
        %3443 = vmatpush.msra.mxu0 0.0
        %3444 = vmatpush.msra.mxu0 %v3419
        %3445 = vmatmul.f32.gmra.mxu0 %v3417
        %v3446 = vpop.f32.mrf.mxu0
        %v3447 = vadd.f32 0.0, %v3446
        %3448 = vdwg.mxu0
        %3449 = vmatpush.msra.mxu0 0.0
        %3450 = vmatpush.msra.mxu0 0.0
        %3451 = vmatpush.msra.mxu0 0.0
        %3452 = vmatpush.msra.mxu0 0.0
        %3453 = vmatpush.msra.mxu0 0.0
        %3454 = vmatpush.msra.mxu0 0.0
        %3455 = vmatpush.msra.mxu0 0.0
        %3456 = vmatpush.msra.mxu0 0.0
        %3457 = vmatpush.msra.mxu0 0.0
        %3458 = vmatpush.msra.mxu0 0.0
        %3459 = vmatpush.msra.mxu0 0.0
        %3460 = vmatpush.msra.mxu0 0.0
        %3461 = vmatpush.msra.mxu0 0.0
        %3462 = vmatpush.msra.mxu0 0.0
        %3463 = vmatpush.msra.mxu0 0.0
        %3464 = vmatpush.msra.mxu0 %v3421
        %3465 = vmatmul.f32.gmra.mxu0 %v3417
        %v3466 = vpop.f32.mrf.mxu0
        %v3467 = vadd.f32 0.0, %v3466
        %3468 = vdwg.mxu0
        %3469 = vmatpush.msra.mxu0 0.0
        %3470 = vmatpush.msra.mxu0 0.0
        %3471 = vmatpush.msra.mxu0 0.0
        %3472 = vmatpush.msra.mxu0 0.0
        %3473 = vmatpush.msra.mxu0 0.0
        %3474 = vmatpush.msra.mxu0 0.0
        %3475 = vmatpush.msra.mxu0 0.0
        %3476 = vmatpush.msra.mxu0 0.0
        %3477 = vmatpush.msra.mxu0 0.0
        %3478 = vmatpush.msra.mxu0 0.0
        %3479 = vmatpush.msra.mxu0 0.0
        %3480 = vmatpush.msra.mxu0 0.0
        %3481 = vmatpush.msra.mxu0 0.0
        %3482 = vmatpush.msra.mxu0 0.0
        %3483 = vmatpush.msra.mxu0 0.0
        %3484 = vmatpush.msra.mxu0 %v3423
        %3485 = vmatmul.f32.gmra.mxu0 %v3417
        %v3486 = vpop.f32.mrf.mxu0
        %v3487 = vadd.f32 0.0, %v3486
        %3488 = vdwg.mxu0
        %3489 = vmatpush.msra.mxu0 0.0
        %3490 = vmatpush.msra.mxu0 0.0
        %3491 = vmatpush.msra.mxu0 0.0
        %3492 = vmatpush.msra.mxu0 0.0
        %3493 = vmatpush.msra.mxu0 0.0
        %3494 = vmatpush.msra.mxu0 0.0
        %3495 = vmatpush.msra.mxu0 0.0
        %3496 = vmatpush.msra.mxu0 0.0
        %3497 = vmatpush.msra.mxu0 0.0
        %3498 = vmatpush.msra.mxu0 0.0
        %3499 = vmatpush.msra.mxu0 0.0
        %3500 = vmatpush.msra.mxu0 0.0
        %3501 = vmatpush.msra.mxu0 0.0
        %3502 = vmatpush.msra.mxu0 0.0
        %3503 = vmatpush.msra.mxu0 0.0
        %3504 = vmatpush.msra.mxu0 %v3425
        %3505 = vmatmul.f32.gmra.mxu0 %v3417
        %v3506 = vpop.f32.mrf.mxu0
        %v3507 = vadd.f32 0.0, %v3506
        %3508 = vdwg.mxu0
        %3509 = vmatpush.msra.mxu0 0.0
        %3510 = vmatpush.msra.mxu0 0.0
        %3511 = vmatpush.msra.mxu0 0.0
        %3512 = vmatpush.msra.mxu0 0.0
        %3513 = vmatpush.msra.mxu0 0.0
        %3514 = vmatpush.msra.mxu0 0.0
        %3515 = vmatpush.msra.mxu0 0.0
        %3516 = vmatpush.msra.mxu0 0.0
        %3517 = vmatpush.msra.mxu0 0.0
        %3518 = vmatpush.msra.mxu0 0.0
        %3519 = vmatpush.msra.mxu0 0.0
        %3520 = vmatpush.msra.mxu0 0.0
        %3521 = vmatpush.msra.mxu0 0.0
        %3522 = vmatpush.msra.mxu0 0.0
        %3523 = vmatpush.msra.mxu0 0.0
        %3524 = vmatpush.msra.mxu0 %v3427
        %3525 = vmatmul.f32.gmra.mxu0 %v3417
        %v3526 = vpop.f32.mrf.mxu0
        %v3527 = vadd.f32 0.0, %v3526
        %3528 = vdwg.mxu0
        %v3529 = vadd.f32 %v3374, %v3447
        %v3530 = vadd.f32 %v3375, %v3467
        %v3531 = vadd.f32 %v3376, %v3487
        %v3532 = vadd.f32 %v3377, %v3507
        %v3533 = vadd.f32 %v3378, %v3527
        %v3534 = vld [vmem:[%s4] sm:$0xff]
        %v3535 = vld [vmem:[#allocation2] sm:$0xff]
        %v3536 = vld [vmem:[#allocation2 + $0x8] sm:$0xff]
        %v3537 = vld [vmem:[#allocation2 + $0x10] sm:$0xff]
        %3539 = vrot.lane.b32.xlu0 %v3534, 68
        %v3540 = vpop.permute.xlu0 %3539
        %3544 = vst [vmem:[#allocation1] ss:$2 sm:$0xff] %v3535
        %s3545 = scalar_lea.vmem [#allocation1], 16
        %3546 = vst [vmem:[%s3545] ss:$2 sm:$0xff] %v3536
        %s3547 = scalar_lea.vmem [#allocation1], 32
        %3548 = vst [vmem:[%s3547] ss:$2 sm:$0xff] %v3537
        %v3549 = vld.sshfl [vmem:[#allocation1] sm:$0xff pattern:$0x75316420]
        %v3550 = vld.sshfl [vmem:[#allocation1 + $0x8] sm:$0xff pattern:$0x75316420]
        %v3551 = vld.sshfl [vmem:[#allocation1 + $0x10] sm:$0xff pattern:$0x75316420]
        %v3552 = vld.sshfl [vmem:[#allocation1 + $0x18] sm:$0xff pattern:$0x75316420]
        %v3553 = vld.sshfl [vmem:[#allocation1 + $0x20] sm:$0xff pattern:$0x75316420]
        %v3554 = vld.sshfl [vmem:[#allocation1 + $0x28] sm:$0xff pattern:$0x75316420]
        %3555 = vrot.lane.b32.xlu0 %v3549, 113
        %v3556 = vpop.permute.xlu0 %3555
        %3557 = vrot.lane.b32.xlu0 %v3550, 113
        %v3558 = vpop.permute.xlu0 %3557
        %3559 = vrot.lane.b32.xlu0 %v3551, 113
        %v3560 = vpop.permute.xlu0 %3559
        %3561 = vrot.lane.b32.xlu0 %v3552, 113
        %v3562 = vpop.permute.xlu0 %3561
        %3563 = vrot.lane.b32.xlu0 %v3553, 113
        %v3564 = vpop.permute.xlu0 %3563
        %3565 = vrot.lane.b32.xlu0 %v3554, 113
        %v3566 = vpop.permute.xlu0 %3565
        %v3567 = vsel %vm1172, %v3556, %v3558
        %v3568 = vsel %vm1172, %v3558, %v3560
        %v3569 = vsel %vm1172, %v3560, %v3562
        %v3570 = vsel %vm1172, %v3562, %v3564
        %v3571 = vsel %vm1172, %v3564, %v3566
        %v3572 = vsel %vm1312, %v3540, 0
        %v3574 = vsel %vm437, %v3567, 0
        %v3576 = vsel %vm437, %v3568, 0
        %v3578 = vsel %vm437, %v3569, 0
        %v3580 = vsel %vm437, %v3570, 0
        %v3582 = vsel %vm437, %v3571, 0
        %3584 = vmatpush.msra.mxu0 0.0
        %3585 = vmatpush.msra.mxu0 0.0
        %3586 = vmatpush.msra.mxu0 0.0
        %3587 = vmatpush.msra.mxu0 0.0
        %3588 = vmatpush.msra.mxu0 0.0
        %3589 = vmatpush.msra.mxu0 0.0
        %3590 = vmatpush.msra.mxu0 0.0
        %3591 = vmatpush.msra.mxu0 0.0
        %3592 = vmatpush.msra.mxu0 0.0
        %3593 = vmatpush.msra.mxu0 0.0
        %3594 = vmatpush.msra.mxu0 0.0
        %3595 = vmatpush.msra.mxu0 0.0
        %3596 = vmatpush.msra.mxu0 0.0
        %3597 = vmatpush.msra.mxu0 0.0
        %3598 = vmatpush.msra.mxu0 0.0
        %3599 = vmatpush.msra.mxu0 %v3574
        %3600 = vmatmul.f32.gmra.mxu0 %v3572
        %v3601 = vpop.f32.mrf.mxu0
        %v3602 = vadd.f32 0.0, %v3601
        %3603 = vdwg.mxu0
        %3604 = vmatpush.msra.mxu0 0.0
        %3605 = vmatpush.msra.mxu0 0.0
        %3606 = vmatpush.msra.mxu0 0.0
        %3607 = vmatpush.msra.mxu0 0.0
        %3608 = vmatpush.msra.mxu0 0.0
        %3609 = vmatpush.msra.mxu0 0.0
        %3610 = vmatpush.msra.mxu0 0.0
        %3611 = vmatpush.msra.mxu0 0.0
        %3612 = vmatpush.msra.mxu0 0.0
        %3613 = vmatpush.msra.mxu0 0.0
        %3614 = vmatpush.msra.mxu0 0.0
        %3615 = vmatpush.msra.mxu0 0.0
        %3616 = vmatpush.msra.mxu0 0.0
        %3617 = vmatpush.msra.mxu0 0.0
        %3618 = vmatpush.msra.mxu0 0.0
        %3619 = vmatpush.msra.mxu0 %v3576
        %3620 = vmatmul.f32.gmra.mxu0 %v3572
        %v3621 = vpop.f32.mrf.mxu0
        %v3622 = vadd.f32 0.0, %v3621
        %3623 = vdwg.mxu0
        %3624 = vmatpush.msra.mxu0 0.0
        %3625 = vmatpush.msra.mxu0 0.0
        %3626 = vmatpush.msra.mxu0 0.0
        %3627 = vmatpush.msra.mxu0 0.0
        %3628 = vmatpush.msra.mxu0 0.0
        %3629 = vmatpush.msra.mxu0 0.0
        %3630 = vmatpush.msra.mxu0 0.0
        %3631 = vmatpush.msra.mxu0 0.0
        %3632 = vmatpush.msra.mxu0 0.0
        %3633 = vmatpush.msra.mxu0 0.0
        %3634 = vmatpush.msra.mxu0 0.0
        %3635 = vmatpush.msra.mxu0 0.0
        %3636 = vmatpush.msra.mxu0 0.0
        %3637 = vmatpush.msra.mxu0 0.0
        %3638 = vmatpush.msra.mxu0 0.0
        %3639 = vmatpush.msra.mxu0 %v3578
        %3640 = vmatmul.f32.gmra.mxu0 %v3572
        %v3641 = vpop.f32.mrf.mxu0
        %v3642 = vadd.f32 0.0, %v3641
        %3643 = vdwg.mxu0
        %3644 = vmatpush.msra.mxu0 0.0
        %3645 = vmatpush.msra.mxu0 0.0
        %3646 = vmatpush.msra.mxu0 0.0
        %3647 = vmatpush.msra.mxu0 0.0
        %3648 = vmatpush.msra.mxu0 0.0
        %3649 = vmatpush.msra.mxu0 0.0
        %3650 = vmatpush.msra.mxu0 0.0
        %3651 = vmatpush.msra.mxu0 0.0
        %3652 = vmatpush.msra.mxu0 0.0
        %3653 = vmatpush.msra.mxu0 0.0
        %3654 = vmatpush.msra.mxu0 0.0
        %3655 = vmatpush.msra.mxu0 0.0
        %3656 = vmatpush.msra.mxu0 0.0
        %3657 = vmatpush.msra.mxu0 0.0
        %3658 = vmatpush.msra.mxu0 0.0
        %3659 = vmatpush.msra.mxu0 %v3580
        %3660 = vmatmul.f32.gmra.mxu0 %v3572
        %v3661 = vpop.f32.mrf.mxu0
        %v3662 = vadd.f32 0.0, %v3661
        %3663 = vdwg.mxu0
        %3664 = vmatpush.msra.mxu0 0.0
        %3665 = vmatpush.msra.mxu0 0.0
        %3666 = vmatpush.msra.mxu0 0.0
        %3667 = vmatpush.msra.mxu0 0.0
        %3668 = vmatpush.msra.mxu0 0.0
        %3669 = vmatpush.msra.mxu0 0.0
        %3670 = vmatpush.msra.mxu0 0.0
        %3671 = vmatpush.msra.mxu0 0.0
        %3672 = vmatpush.msra.mxu0 0.0
        %3673 = vmatpush.msra.mxu0 0.0
        %3674 = vmatpush.msra.mxu0 0.0
        %3675 = vmatpush.msra.mxu0 0.0
        %3676 = vmatpush.msra.mxu0 0.0
        %3677 = vmatpush.msra.mxu0 0.0
        %3678 = vmatpush.msra.mxu0 0.0
        %3679 = vmatpush.msra.mxu0 %v3582
        %3680 = vmatmul.f32.gmra.mxu0 %v3572
        %v3681 = vpop.f32.mrf.mxu0
        %v3682 = vadd.f32 0.0, %v3681
        %3683 = vdwg.mxu0
        %v3684 = vadd.f32 %v3529, %v3602
        %v3685 = vadd.f32 %v3530, %v3622
        %v3686 = vadd.f32 %v3531, %v3642
        %v3687 = vadd.f32 %v3532, %v3662
        %v3688 = vadd.f32 %v3533, %v3682
        %3691 = vrot.lane.b32.xlu0 %v3684, 49
        %v3692 = vpop.permute.xlu0 %3691
        %3693 = vrot.lane.b32.xlu0 %v3685, 49
        %v3694 = vpop.permute.xlu0 %3693
        %vm3695 = vcmask 400384
        %v3696 = vsel %vm3695, %v3692, %v3694
        %3697 = vrot.lane.b32.xlu0 %v3685, 98
        %v3698 = vpop.permute.xlu0 %3697
        %3700 = vrot.lane.b32.xlu0 %v3685, 19
        %v3701 = vpop.permute.xlu0 %3700
        %3702 = vrot.lane.b32.xlu0 %v3686, 19
        %v3703 = vpop.permute.xlu0 %3702
        %vm3704 = vcmask 154624
        %v3705 = vsel %vm3704, %v3701, %v3703
        %3707 = vrot.lane.b32.xlu0 %v3686, 68
        %v3708 = vpop.permute.xlu0 %3707
        %3709 = vrot.lane.b32.xlu0 %v3687, 68
        %v3710 = vpop.permute.xlu0 %3709
        %vm3711 = vcmask 556032
        %v3712 = vsel %vm3711, %v3708, %v3710
        %3713 = vrot.lane.b32.xlu0 %v3687, 117
        %v3714 = vpop.permute.xlu0 %3713
        %3716 = vrot.lane.b32.xlu0 %v3687, 38
        %v3717 = vpop.permute.xlu0 %3716
        %3718 = vrot.lane.b32.xlu0 %v3688, 38
        %v3719 = vpop.permute.xlu0 %3718
        %vm3720 = vcmask 310272
        %v3721 = vsel %vm3720, %v3717, %v3719
        %3722 = vrot.lane.b32.xlu0 %v3688, 87
        %v3723 = vpop.permute.xlu0 %3722
        %v3724 = vld [vmem:[%s5] sm:$0xff]
        %v3725 = vld [vmem:[%s5 + $0x8] sm:$0xff]
        %v3726 = vld [vmem:[%s5 + $0x10] sm:$0xff]
        %v3727 = vld [vmem:[%s5 + $0x18] sm:$0xff]
        %v3728 = vld [vmem:[%s6] sm:$0xff]
        %v3729 = vld [vmem:[%s6 + $0x8] sm:$0xff]
        %v3730 = vld [vmem:[%s6 + $0x10] sm:$0xff]
        %v3731 = vld [vmem:[%s6 + $0x18] sm:$0xff]
        %3733 = vset.pattern.permute.xlu0 0
        %3734 = vperm.xlu0 %3733, %v3728
        %v3735 = vpop.permute.xlu0 %3734
        %3738 = vset.pattern.permute.xlu0 0
        %3739 = vperm.xlu0 %3738, %v3729
        %v3740 = vpop.permute.xlu0 %3739
        %3743 = vset.pattern.permute.xlu0 0
        %3744 = vperm.xlu0 %3743, %v3730
        %v3745 = vpop.permute.xlu0 %3744
        %3748 = vset.pattern.permute.xlu0 0
        %3749 = vperm.xlu0 %3748, %v3731
        %v3750 = vpop.permute.xlu0 %3749
        %3752 = vrot.lane.b32.xlu0 %v3684, 121
        %v3753 = vpop.permute.xlu0 %3752
        %3754 = vrot.lane.b32.xlu0 %v3696, 121
        %v3755 = vpop.permute.xlu0 %3754
        %3756 = vrot.lane.b32.xlu0 %v3698, 121
        %v3757 = vpop.permute.xlu0 %3756
        %3758 = vrot.lane.b32.xlu0 %v3705, 121
        %v3759 = vpop.permute.xlu0 %3758
        %3760 = vrot.lane.b32.xlu0 %v3712, 121
        %v3761 = vpop.permute.xlu0 %3760
        %3762 = vrot.lane.b32.xlu0 %v3714, 121
        %v3763 = vpop.permute.xlu0 %3762
        %3764 = vrot.lane.b32.xlu0 %v3721, 121
        %v3765 = vpop.permute.xlu0 %3764
        %3766 = vrot.lane.b32.xlu0 %v3723, 121
        %v3767 = vpop.permute.xlu0 %3766
        %vm3776 = vcmask 523264
        %v3778 = vsel %vm3776, %v3724, 0
        %v3781 = vsel %vm3776, %v3725, 0
        %v3784 = vsel %vm3776, %v3726, 0
        %v3787 = vsel %vm3776, %v3727, 0
        %3789 = vmatpush.msra.mxu0 0.0
        %3790 = vmatpush.msra.mxu0 0.0
        %3791 = vmatpush.msra.mxu0 0.0
        %3792 = vmatpush.msra.mxu0 0.0
        %3793 = vmatpush.msra.mxu0 0.0
        %3794 = vmatpush.msra.mxu0 0.0
        %3795 = vmatpush.msra.mxu0 0.0
        %3796 = vmatpush.msra.mxu0 0.0
        %3797 = vmatpush.msra.mxu0 %v3767
        %3798 = vmatpush.msra.mxu0 %v3765
        %3799 = vmatpush.msra.mxu0 %v3763
        %3800 = vmatpush.msra.mxu0 %v3761
        %3801 = vmatpush.msra.mxu0 %v3759
        %3802 = vmatpush.msra.mxu0 %v3757
        %3803 = vmatpush.msra.mxu0 %v3755
        %3804 = vmatpush.msra.mxu0 %v3753
        %3805 = vmatmul.f32.gmra.mxu0 %v3778
        %v3806 = vpop.f32.mrf.mxu0
        %v3807 = vadd.f32 %v3735, %v3806
        %3808 = vmatmul.f32.gmra.mxu0 %v3781
        %v3809 = vpop.f32.mrf.mxu0
        %v3810 = vadd.f32 %v3740, %v3809
        %3811 = vmatmul.f32.gmra.mxu0 %v3784
        %v3812 = vpop.f32.mrf.mxu0
        %v3813 = vadd.f32 %v3745, %v3812
        %3814 = vmatmul.f32.gmra.mxu0 %v3787
        %v3815 = vpop.f32.mrf.mxu0
        %v3816 = vadd.f32 %v3750, %v3815
        %3817 = vdwg.mxu0
        %vm3818 = vcmp.gt.f32.partialorder %v3807, 0.0
        %vm3819 = vcmp.gt.f32.partialorder %v3810, 0.0
        %vm3820 = vcmp.gt.f32.partialorder %v3813, 0.0
        %vm3821 = vcmp.gt.f32.partialorder %v3816, 0.0
        %v3822 = vmin.f32 %v3807, 0.0
        %v3823 = vmin.f32 %v3810, 0.0
        %v3824 = vmin.f32 %v3813, 0.0
        %v3825 = vmin.f32 %v3816, 0.0
        %v3826 = vmul.f32 %v3822, 1.442695
        %v3827 = vpow.pop %v3826
        %v3828 = vmul.f32 %v3823, 1.442695
        %v3829 = vpow.pop %v3828
        %v3830 = vmul.f32 %v3824, 1.442695
        %v3831 = vpow.pop %v3830
        %v3832 = vmul.f32 %v3825, 1.442695
        %v3833 = vpow.pop %v3832
        %v3834 = vsub.f32 %v3827, 1.0
        %v3835 = vsub.f32 %v3829, 1.0
        %v3836 = vsub.f32 %v3831, 1.0
        %v3837 = vsub.f32 %v3833, 1.0
        %v3838 = vsel %vm3818, %v3807, %v3834
        %v3839 = vsel %vm3819, %v3810, %v3835
        %v3840 = vsel %vm3820, %v3813, %v3836
        %v3841 = vsel %vm3821, %v3816, %v3837
        %v3842 = vld [vmem:[%s7] sm:$0xff]
        %v3843 = vld [vmem:[%s7 + $0x8] sm:$0xff]
        %v3844 = vld [vmem:[%s7 + $0x10] sm:$0xff]
        %v3845 = vld [vmem:[%s7 + $0x18] sm:$0xff]
        %v3846 = vld [vmem:[%s7 + $0x20] sm:$0xff]
        %v3847 = vld [vmem:[%s7 + $0x28] sm:$0xff]
        %v3848 = vld [vmem:[%s7 + $0x30] sm:$0xff]
        %v3849 = vld [vmem:[%s7 + $0x38] sm:$0xff]
        %v3851 = vsel %vm3776, %v3838, 0
        %v3854 = vsel %vm3776, %v3839, 0
        %v3857 = vsel %vm3776, %v3840, 0
        %v3860 = vsel %vm3776, %v3841, 0
        %3862 = vmatpush.msra.mxu0 0.0
        %3863 = vmatpush.msra.mxu0 0.0
        %3864 = vmatpush.msra.mxu0 0.0
        %3865 = vmatpush.msra.mxu0 0.0
        %3866 = vmatpush.msra.mxu0 0.0
        %3867 = vmatpush.msra.mxu0 0.0
        %3868 = vmatpush.msra.mxu0 0.0
        %3869 = vmatpush.msra.mxu0 0.0
        %3870 = vmatpush.msra.mxu0 %v3849
        %3871 = vmatpush.msra.mxu0 %v3848
        %3872 = vmatpush.msra.mxu0 %v3847
        %3873 = vmatpush.msra.mxu0 %v3846
        %3874 = vmatpush.msra.mxu0 %v3845
        %3875 = vmatpush.msra.mxu0 %v3844
        %3876 = vmatpush.msra.mxu0 %v3843
        %3877 = vmatpush.msra.mxu0 %v3842
        %3878 = vmatmul.f32.gmra.mxu0 %v3851
        %v3879 = vpop.f32.mrf.mxu0
        %v3880 = vadd.f32 0.0, %v3879
        %3881 = vmatmul.f32.gmra.mxu0 %v3854
        %v3882 = vpop.f32.mrf.mxu0
        %v3883 = vadd.f32 0.0, %v3882
        %3884 = vmatmul.f32.gmra.mxu0 %v3857
        %v3885 = vpop.f32.mrf.mxu0
        %v3886 = vadd.f32 0.0, %v3885
        %3887 = vmatmul.f32.gmra.mxu0 %v3860
        %v3888 = vpop.f32.mrf.mxu0
        %v3889 = vadd.f32 0.0, %v3888
        %3890 = vdwg.mxu0
        %vm3891 = vcmask 359424
        %3892 = vst.msk [vmem:[#allocation3] sm:$0xff] %vm3891, 0.0
        %3893 = vst.msk [vmem:[#allocation3 + $0x8] sm:$0xff] %vm3891, 0.0
        %3895 = vrot.lane.b32.xlu0 %v3880, 14
        %v3896 = vpop.permute.xlu0 %3895
        %vm3898 = vcmask 237680
        %3899 = vst.msk [vmem:[#allocation3] sm:$0x1] %vm3898, %v3896
        %vm3900 = vcmask 239730
        %3901 = vst.msk [vmem:[#allocation3 - $0x1] sm:$0x4] %vm3900, %v3896
        %vm3902 = vcmask 241780
        %3903 = vst.msk [vmem:[#allocation3 - $0x2] sm:$0x10] %vm3902, %v3896
        %vm3904 = vcmask 243830
        %3905 = vst.msk [vmem:[#allocation3 - $0x3] sm:$0x40] %vm3904, %v3896
        %3907 = vrot.lane.b32.xlu0 %v3883, 14
        %v3908 = vpop.permute.xlu0 %3907
        %3910 = vst.msk [vmem:[#allocation3 + $0x4] sm:$0x1] %vm3898, %v3908
        %3911 = vst.msk [vmem:[#allocation3 + $0x3] sm:$0x4] %vm3900, %v3908
        %3912 = vst.msk [vmem:[#allocation3 + $0x2] sm:$0x10] %vm3902, %v3908
        %3913 = vst.msk [vmem:[#allocation3 + $0x1] sm:$0x40] %vm3904, %v3908
        %3915 = vrot.lane.b32.xlu0 %v3886, 14
        %v3916 = vpop.permute.xlu0 %3915
        %3918 = vst.msk [vmem:[#allocation3 + $0x8] sm:$0x1] %vm3898, %v3916
        %3919 = vst.msk [vmem:[#allocation3 + $0x7] sm:$0x4] %vm3900, %v3916
        %3920 = vst.msk [vmem:[#allocation3 + $0x6] sm:$0x10] %vm3902, %v3916
        %3921 = vst.msk [vmem:[#allocation3 + $0x5] sm:$0x40] %vm3904, %v3916
        %3923 = vrot.lane.b32.xlu0 %v3889, 14
        %v3924 = vpop.permute.xlu0 %3923
        %3926 = vst.msk [vmem:[#allocation3 + $0xc] sm:$0x1] %vm3898, %v3924
        %3927 = vst.msk [vmem:[#allocation3 + $0xb] sm:$0x4] %vm3900, %v3924
        %3928 = vst.msk [vmem:[#allocation3 + $0xa] sm:$0x10] %vm3902, %v3924
        %3929 = vst.msk [vmem:[#allocation3 + $0x9] sm:$0x40] %vm3904, %v3924
        %v3930 = vld [vmem:[%s8] sm:$0xff]
        %v3931 = vld [vmem:[#allocation3] sm:$0xff]
        %v3932 = vld [vmem:[#allocation3 + $0x8] sm:$0xff]
        %3934 = vrot.lane.b32.xlu0 %v3930, 112
        %v3935 = vpop.permute.xlu0 %3934
        %3938 = vrot.lane.b32.xlu0 %v3931, 126
        %v3939 = vpop.permute.xlu0 %3938
        %3940 = vrot.lane.b32.xlu0 %v3932, 126
        %v3941 = vpop.permute.xlu0 %3940
        %vm3944 = vcmask 130048
        %v3945 = vsel %vm3944, %v3935, 0
        %3947 = vmatpush.msra.mxu0 0.0
        %3948 = vmatpush.msra.mxu0 0.0
        %3949 = vmatpush.msra.mxu0 0.0
        %3950 = vmatpush.msra.mxu0 0.0
        %3951 = vmatpush.msra.mxu0 0.0
        %3952 = vmatpush.msra.mxu0 0.0
        %3953 = vmatpush.msra.mxu0 0.0
        %3954 = vmatpush.msra.mxu0 0.0
        %3955 = vmatpush.msra.mxu0 0.0
        %3956 = vmatpush.msra.mxu0 0.0
        %3957 = vmatpush.msra.mxu0 0.0
        %3958 = vmatpush.msra.mxu0 0.0
        %3959 = vmatpush.msra.mxu0 0.0
        %3960 = vmatpush.msra.mxu0 0.0
        %3961 = vmatpush.msra.mxu0 %v3941
        %3962 = vmatpush.msra.mxu0 %v3939
        %3963 = vmatmul.f32.gmra.mxu0 %v3945
        %v3964 = vpop.f32.mrf.mxu0
        %v3965 = vadd.f32 0.0, %v3964
        %3966 = vdwg.mxu0
        %v3967 = vsel %vm3944, %v3930, 0
        %3969 = vmatpush.msra.mxu0 0.0
        %3970 = vmatpush.msra.mxu0 0.0
        %3971 = vmatpush.msra.mxu0 0.0
        %3972 = vmatpush.msra.mxu0 0.0
        %3973 = vmatpush.msra.mxu0 0.0
        %3974 = vmatpush.msra.mxu0 0.0
        %3975 = vmatpush.msra.mxu0 0.0
        %3976 = vmatpush.msra.mxu0 0.0
        %3977 = vmatpush.msra.mxu0 0.0
        %3978 = vmatpush.msra.mxu0 0.0
        %3979 = vmatpush.msra.mxu0 0.0
        %3980 = vmatpush.msra.mxu0 0.0
        %3981 = vmatpush.msra.mxu0 0.0
        %3982 = vmatpush.msra.mxu0 0.0
        %3983 = vmatpush.msra.mxu0 %v3932
        %3984 = vmatpush.msra.mxu0 %v3931
        %3985 = vmatmul.f32.gmra.mxu0 %v3967
        %v3986 = vpop.f32.mrf.mxu0
        %v3987 = vadd.f32 %v3965, %v3986
        %3988 = vdwg.mxu0
        %3989 = vrot.lane.b32.xlu0 %v3930, 96
        %v3990 = vpop.permute.xlu0 %3989
        %3991 = vrot.lane.b32.xlu0 %v3931, 124
        %v3992 = vpop.permute.xlu0 %3991
        %3993 = vrot.lane.b32.xlu0 %v3932, 124
        %v3994 = vpop.permute.xlu0 %3993
        %v3997 = vsel %vm3944, %v3990, 0
        %3999 = vmatpush.msra.mxu0 0.0
        %4000 = vmatpush.msra.mxu0 0.0
        %4001 = vmatpush.msra.mxu0 0.0
        %4002 = vmatpush.msra.mxu0 0.0
        %4003 = vmatpush.msra.mxu0 0.0
        %4004 = vmatpush.msra.mxu0 0.0
        %4005 = vmatpush.msra.mxu0 0.0
        %4006 = vmatpush.msra.mxu0 0.0
        %4007 = vmatpush.msra.mxu0 0.0
        %4008 = vmatpush.msra.mxu0 0.0
        %4009 = vmatpush.msra.mxu0 0.0
        %4010 = vmatpush.msra.mxu0 0.0
        %4011 = vmatpush.msra.mxu0 0.0
        %4012 = vmatpush.msra.mxu0 0.0
        %4013 = vmatpush.msra.mxu0 %v3994
        %4014 = vmatpush.msra.mxu0 %v3992
        %4015 = vmatmul.f32.gmra.mxu0 %v3997
        %v4016 = vpop.f32.mrf.mxu0
        %v4017 = vadd.f32 0.0, %v4016
        %4018 = vdwg.mxu0
        %v4019 = vadd.f32 %v3987, %v4017
        %4020 = vrot.lane.b32.xlu0 %v3930, 80
        %v4021 = vpop.permute.xlu0 %4020
        %4022 = vrot.lane.b32.xlu0 %v3931, 122
        %v4023 = vpop.permute.xlu0 %4022
        %4024 = vrot.lane.b32.xlu0 %v3932, 122
        %v4025 = vpop.permute.xlu0 %4024
        %v4028 = vsel %vm3944, %v4021, 0
        %4030 = vmatpush.msra.mxu0 0.0
        %4031 = vmatpush.msra.mxu0 0.0
        %4032 = vmatpush.msra.mxu0 0.0
        %4033 = vmatpush.msra.mxu0 0.0
        %4034 = vmatpush.msra.mxu0 0.0
        %4035 = vmatpush.msra.mxu0 0.0
        %4036 = vmatpush.msra.mxu0 0.0
        %4037 = vmatpush.msra.mxu0 0.0
        %4038 = vmatpush.msra.mxu0 0.0
        %4039 = vmatpush.msra.mxu0 0.0
        %4040 = vmatpush.msra.mxu0 0.0
        %4041 = vmatpush.msra.mxu0 0.0
        %4042 = vmatpush.msra.mxu0 0.0
        %4043 = vmatpush.msra.mxu0 0.0
        %4044 = vmatpush.msra.mxu0 %v4025
        %4045 = vmatpush.msra.mxu0 %v4023
        %4046 = vmatmul.f32.gmra.mxu0 %v4028
        %v4047 = vpop.f32.mrf.mxu0
        %v4048 = vadd.f32 0.0, %v4047
        %4049 = vdwg.mxu0
        %v4050 = vadd.f32 %v4019, %v4048
        %4051 = vrot.lane.b32.xlu0 %v3930, 64
        %v4052 = vpop.permute.xlu0 %4051
        %4053 = vrot.lane.b32.xlu0 %v3931, 120
        %v4054 = vpop.permute.xlu0 %4053
        %4055 = vrot.lane.b32.xlu0 %v3932, 120
        %v4056 = vpop.permute.xlu0 %4055
        %v4059 = vsel %vm3944, %v4052, 0
        %4061 = vmatpush.msra.mxu0 0.0
        %4062 = vmatpush.msra.mxu0 0.0
        %4063 = vmatpush.msra.mxu0 0.0
        %4064 = vmatpush.msra.mxu0 0.0
        %4065 = vmatpush.msra.mxu0 0.0
        %4066 = vmatpush.msra.mxu0 0.0
        %4067 = vmatpush.msra.mxu0 0.0
        %4068 = vmatpush.msra.mxu0 0.0
        %4069 = vmatpush.msra.mxu0 0.0
        %4070 = vmatpush.msra.mxu0 0.0
        %4071 = vmatpush.msra.mxu0 0.0
        %4072 = vmatpush.msra.mxu0 0.0
        %4073 = vmatpush.msra.mxu0 0.0
        %4074 = vmatpush.msra.mxu0 0.0
        %4075 = vmatpush.msra.mxu0 %v4056
        %4076 = vmatpush.msra.mxu0 %v4054
        %4077 = vmatmul.f32.gmra.mxu0 %v4059
        %v4078 = vpop.f32.mrf.mxu0
        %v4079 = vadd.f32 0.0, %v4078
        %4080 = vdwg.mxu0
        %v4081 = vadd.f32 %v4050, %v4079
        %4082 = vrot.lane.b32.xlu0 %v3930, 48
        %v4083 = vpop.permute.xlu0 %4082
        %4084 = vrot.lane.b32.xlu0 %v3931, 118
        %v4085 = vpop.permute.xlu0 %4084
        %4086 = vrot.lane.b32.xlu0 %v3932, 118
        %v4087 = vpop.permute.xlu0 %4086
        %v4090 = vsel %vm3944, %v4083, 0
        %4092 = vmatpush.msra.mxu0 0.0
        %4093 = vmatpush.msra.mxu0 0.0
        %4094 = vmatpush.msra.mxu0 0.0
        %4095 = vmatpush.msra.mxu0 0.0
        %4096 = vmatpush.msra.mxu0 0.0
        %4097 = vmatpush.msra.mxu0 0.0
        %4098 = vmatpush.msra.mxu0 0.0
        %4099 = vmatpush.msra.mxu0 0.0
        %4100 = vmatpush.msra.mxu0 0.0
        %4101 = vmatpush.msra.mxu0 0.0
        %4102 = vmatpush.msra.mxu0 0.0
        %4103 = vmatpush.msra.mxu0 0.0
        %4104 = vmatpush.msra.mxu0 0.0
        %4105 = vmatpush.msra.mxu0 0.0
        %4106 = vmatpush.msra.mxu0 %v4087
        %4107 = vmatpush.msra.mxu0 %v4085
        %4108 = vmatmul.f32.gmra.mxu0 %v4090
        %v4109 = vpop.f32.mrf.mxu0
        %v4110 = vadd.f32 0.0, %v4109
        %4111 = vdwg.mxu0
        %v4112 = vadd.f32 %v4081, %v4110
        %4113 = vrot.lane.b32.xlu0 %v3930, 32
        %v4114 = vpop.permute.xlu0 %4113
        %4115 = vrot.lane.b32.xlu0 %v3931, 116
        %v4116 = vpop.permute.xlu0 %4115
        %4117 = vrot.lane.b32.xlu0 %v3932, 116
        %v4118 = vpop.permute.xlu0 %4117
        %v4121 = vsel %vm3944, %v4114, 0
        %4123 = vmatpush.msra.mxu0 0.0
        %4124 = vmatpush.msra.mxu0 0.0
        %4125 = vmatpush.msra.mxu0 0.0
        %4126 = vmatpush.msra.mxu0 0.0
        %4127 = vmatpush.msra.mxu0 0.0
        %4128 = vmatpush.msra.mxu0 0.0
        %4129 = vmatpush.msra.mxu0 0.0
        %4130 = vmatpush.msra.mxu0 0.0
        %4131 = vmatpush.msra.mxu0 0.0
        %4132 = vmatpush.msra.mxu0 0.0
        %4133 = vmatpush.msra.mxu0 0.0
        %4134 = vmatpush.msra.mxu0 0.0
        %4135 = vmatpush.msra.mxu0 0.0
        %4136 = vmatpush.msra.mxu0 0.0
        %4137 = vmatpush.msra.mxu0 %v4118
        %4138 = vmatpush.msra.mxu0 %v4116
        %4139 = vmatmul.f32.gmra.mxu0 %v4121
        %v4140 = vpop.f32.mrf.mxu0
        %v4141 = vadd.f32 0.0, %v4140
        %4142 = vdwg.mxu0
        %v4143 = vadd.f32 %v4112, %v4141
        %4144 = vrot.lane.b32.xlu0 %v3930, 16
        %v4145 = vpop.permute.xlu0 %4144
        %4146 = vrot.lane.b32.xlu0 %v3931, 114
        %v4147 = vpop.permute.xlu0 %4146
        %4148 = vrot.lane.b32.xlu0 %v3932, 114
        %v4149 = vpop.permute.xlu0 %4148
        %v4152 = vsel %vm3944, %v4145, 0
        %4154 = vmatpush.msra.mxu0 0.0
        %4155 = vmatpush.msra.mxu0 0.0
        %4156 = vmatpush.msra.mxu0 0.0
        %4157 = vmatpush.msra.mxu0 0.0
        %4158 = vmatpush.msra.mxu0 0.0
        %4159 = vmatpush.msra.mxu0 0.0
        %4160 = vmatpush.msra.mxu0 0.0
        %4161 = vmatpush.msra.mxu0 0.0
        %4162 = vmatpush.msra.mxu0 0.0
        %4163 = vmatpush.msra.mxu0 0.0
        %4164 = vmatpush.msra.mxu0 0.0
        %4165 = vmatpush.msra.mxu0 0.0
        %4166 = vmatpush.msra.mxu0 0.0
        %4167 = vmatpush.msra.mxu0 0.0
        %4168 = vmatpush.msra.mxu0 %v4149
        %4169 = vmatpush.msra.mxu0 %v4147
        %4170 = vmatmul.f32.gmra.mxu0 %v4152
        %v4171 = vpop.f32.mrf.mxu0
        %v4172 = vadd.f32 0.0, %v4171
        %4173 = vdwg.mxu0
        %v4174 = vadd.f32 %v4143, %v4172
        %v4175 = vld [vmem:[%s9] sm:$0xff]
        %4177 = vset.pattern.permute.xlu0 0
        %4178 = vperm.xlu0 %4177, %v4175
        %v4179 = vpop.permute.xlu0 %4178
        %v4181 = vadd.f32 %v4174, %v4179
        %vm4182 = vcmask 588800
        %4183 = vst.msk [vmem:[#allocation4] sm:$0xff] %vm4182, 0.0
        %4185 = vrot.lane.b32.xlu0 %v4181, 21
        %v4186 = vpop.permute.xlu0 %4185
        %vm4188 = vcmask 359648
        %4189 = vst.msk [vmem:[#allocation4] sm:$0xff] %vm4188, %v4186
        %v4190 = vld [vmem:[%s10] sm:$0xf]
        %v4191 = vld [vmem:[#allocation4] sm:$0xff]
        %4193 = vrot.lane.b32.xlu0 %v4190, 120
        %v4194 = vpop.permute.xlu0 %4193
        %4196 = vrot.lane.b32.xlu0 %v4191, 124
        %v4197 = vpop.permute.xlu0 %4196
        %vm4199 = vcmask 64512
        %v4200 = vsel %vm4199, %v4194, 0
        %4202 = vmatpush.msra.mxu0 0.0
        %4203 = vmatpush.msra.mxu0 0.0
        %4204 = vmatpush.msra.mxu0 0.0
        %4205 = vmatpush.msra.mxu0 0.0
        %4206 = vmatpush.msra.mxu0 0.0
        %4207 = vmatpush.msra.mxu0 0.0
        %4208 = vmatpush.msra.mxu0 0.0
        %4209 = vmatpush.msra.mxu0 0.0
        %4210 = vmatpush.msra.mxu0 0.0
        %4211 = vmatpush.msra.mxu0 0.0
        %4212 = vmatpush.msra.mxu0 0.0
        %4213 = vmatpush.msra.mxu0 0.0
        %4214 = vmatpush.msra.mxu0 0.0
        %4215 = vmatpush.msra.mxu0 0.0
        %4216 = vmatpush.msra.mxu0 0.0
        %4217 = vmatpush.msra.mxu0 %v4197
        %4218 = vmatmul.f32.gmra.mxu0 %v4200
        %v4219 = vpop.f32.mrf.mxu0
        %v4220 = vadd.f32 0.0, %v4219
        %4221 = vdwg.mxu0
        %v4222 = vsel %vm4199, %v4190, 0
        %4224 = vmatpush.msra.mxu0 0.0
        %4225 = vmatpush.msra.mxu0 0.0
        %4226 = vmatpush.msra.mxu0 0.0
        %4227 = vmatpush.msra.mxu0 0.0
        %4228 = vmatpush.msra.mxu0 0.0
        %4229 = vmatpush.msra.mxu0 0.0
        %4230 = vmatpush.msra.mxu0 0.0
        %4231 = vmatpush.msra.mxu0 0.0
        %4232 = vmatpush.msra.mxu0 0.0
        %4233 = vmatpush.msra.mxu0 0.0
        %4234 = vmatpush.msra.mxu0 0.0
        %4235 = vmatpush.msra.mxu0 0.0
        %4236 = vmatpush.msra.mxu0 0.0
        %4237 = vmatpush.msra.mxu0 0.0
        %4238 = vmatpush.msra.mxu0 0.0
        %4239 = vmatpush.msra.mxu0 %v4191
        %4240 = vmatmul.f32.gmra.mxu0 %v4222
        %v4241 = vpop.f32.mrf.mxu0
        %v4242 = vadd.f32 %v4220, %v4241
        %4243 = vdwg.mxu0
        %4244 = vrot.lane.b32.xlu0 %v4190, 112
        %v4245 = vpop.permute.xlu0 %4244
        %4246 = vrot.lane.b32.xlu0 %v4191, 120
        %v4247 = vpop.permute.xlu0 %4246
        %v4249 = vsel %vm4199, %v4245, 0
        %4251 = vmatpush.msra.mxu0 0.0
        %4252 = vmatpush.msra.mxu0 0.0
        %4253 = vmatpush.msra.mxu0 0.0
        %4254 = vmatpush.msra.mxu0 0.0
        %4255 = vmatpush.msra.mxu0 0.0
        %4256 = vmatpush.msra.mxu0 0.0
        %4257 = vmatpush.msra.mxu0 0.0
        %4258 = vmatpush.msra.mxu0 0.0
        %4259 = vmatpush.msra.mxu0 0.0
        %4260 = vmatpush.msra.mxu0 0.0
        %4261 = vmatpush.msra.mxu0 0.0
        %4262 = vmatpush.msra.mxu0 0.0
        %4263 = vmatpush.msra.mxu0 0.0
        %4264 = vmatpush.msra.mxu0 0.0
        %4265 = vmatpush.msra.mxu0 0.0
        %4266 = vmatpush.msra.mxu0 %v4247
        %4267 = vmatmul.f32.gmra.mxu0 %v4249
        %v4268 = vpop.f32.mrf.mxu0
        %v4269 = vadd.f32 0.0, %v4268
        %4270 = vdwg.mxu0
        %v4271 = vadd.f32 %v4242, %v4269
        %4272 = vrot.lane.b32.xlu0 %v4190, 104
        %v4273 = vpop.permute.xlu0 %4272
        %4274 = vrot.lane.b32.xlu0 %v4191, 116
        %v4275 = vpop.permute.xlu0 %4274
        %v4277 = vsel %vm4199, %v4273, 0
        %4279 = vmatpush.msra.mxu0 0.0
        %4280 = vmatpush.msra.mxu0 0.0
        %4281 = vmatpush.msra.mxu0 0.0
        %4282 = vmatpush.msra.mxu0 0.0
        %4283 = vmatpush.msra.mxu0 0.0
        %4284 = vmatpush.msra.mxu0 0.0
        %4285 = vmatpush.msra.mxu0 0.0
        %4286 = vmatpush.msra.mxu0 0.0
        %4287 = vmatpush.msra.mxu0 0.0
        %4288 = vmatpush.msra.mxu0 0.0
        %4289 = vmatpush.msra.mxu0 0.0
        %4290 = vmatpush.msra.mxu0 0.0
        %4291 = vmatpush.msra.mxu0 0.0
        %4292 = vmatpush.msra.mxu0 0.0
        %4293 = vmatpush.msra.mxu0 0.0
        %4294 = vmatpush.msra.mxu0 %v4275
        %4295 = vmatmul.f32.gmra.mxu0 %v4277
        %v4296 = vpop.f32.mrf.mxu0
        %v4297 = vadd.f32 0.0, %v4296
        %4298 = vdwg.mxu0
        %v4299 = vadd.f32 %v4271, %v4297
        %4300 = vrot.lane.b32.xlu0 %v4190, 96
        %v4301 = vpop.permute.xlu0 %4300
        %4302 = vrot.lane.b32.xlu0 %v4191, 112
        %v4303 = vpop.permute.xlu0 %4302
        %v4305 = vsel %vm4199, %v4301, 0
        %4307 = vmatpush.msra.mxu0 0.0
        %4308 = vmatpush.msra.mxu0 0.0
        %4309 = vmatpush.msra.mxu0 0.0
        %4310 = vmatpush.msra.mxu0 0.0
        %4311 = vmatpush.msra.mxu0 0.0
        %4312 = vmatpush.msra.mxu0 0.0
        %4313 = vmatpush.msra.mxu0 0.0
        %4314 = vmatpush.msra.mxu0 0.0
        %4315 = vmatpush.msra.mxu0 0.0
        %4316 = vmatpush.msra.mxu0 0.0
        %4317 = vmatpush.msra.mxu0 0.0
        %4318 = vmatpush.msra.mxu0 0.0
        %4319 = vmatpush.msra.mxu0 0.0
        %4320 = vmatpush.msra.mxu0 0.0
        %4321 = vmatpush.msra.mxu0 0.0
        %4322 = vmatpush.msra.mxu0 %v4303
        %4323 = vmatmul.f32.gmra.mxu0 %v4305
        %v4324 = vpop.f32.mrf.mxu0
        %v4325 = vadd.f32 0.0, %v4324
        %4326 = vdwg.mxu0
        %v4327 = vadd.f32 %v4299, %v4325
        %4328 = vrot.lane.b32.xlu0 %v4190, 88
        %v4329 = vpop.permute.xlu0 %4328
        %4330 = vrot.lane.b32.xlu0 %v4191, 108
        %v4331 = vpop.permute.xlu0 %4330
        %v4333 = vsel %vm4199, %v4329, 0
        %4335 = vmatpush.msra.mxu0 0.0
        %4336 = vmatpush.msra.mxu0 0.0
        %4337 = vmatpush.msra.mxu0 0.0
        %4338 = vmatpush.msra.mxu0 0.0
        %4339 = vmatpush.msra.mxu0 0.0
        %4340 = vmatpush.msra.mxu0 0.0
        %4341 = vmatpush.msra.mxu0 0.0
        %4342 = vmatpush.msra.mxu0 0.0
        %4343 = vmatpush.msra.mxu0 0.0
        %4344 = vmatpush.msra.mxu0 0.0
        %4345 = vmatpush.msra.mxu0 0.0
        %4346 = vmatpush.msra.mxu0 0.0
        %4347 = vmatpush.msra.mxu0 0.0
        %4348 = vmatpush.msra.mxu0 0.0
        %4349 = vmatpush.msra.mxu0 0.0
        %4350 = vmatpush.msra.mxu0 %v4331
        %4351 = vmatmul.f32.gmra.mxu0 %v4333
        %v4352 = vpop.f32.mrf.mxu0
        %v4353 = vadd.f32 0.0, %v4352
        %4354 = vdwg.mxu0
        %v4355 = vadd.f32 %v4327, %v4353
        %4356 = vrot.lane.b32.xlu0 %v4190, 80
        %v4357 = vpop.permute.xlu0 %4356
        %4358 = vrot.lane.b32.xlu0 %v4191, 104
        %v4359 = vpop.permute.xlu0 %4358
        %v4361 = vsel %vm4199, %v4357, 0
        %4363 = vmatpush.msra.mxu0 0.0
        %4364 = vmatpush.msra.mxu0 0.0
        %4365 = vmatpush.msra.mxu0 0.0
        %4366 = vmatpush.msra.mxu0 0.0
        %4367 = vmatpush.msra.mxu0 0.0
        %4368 = vmatpush.msra.mxu0 0.0
        %4369 = vmatpush.msra.mxu0 0.0
        %4370 = vmatpush.msra.mxu0 0.0
        %4371 = vmatpush.msra.mxu0 0.0
        %4372 = vmatpush.msra.mxu0 0.0
        %4373 = vmatpush.msra.mxu0 0.0
        %4374 = vmatpush.msra.mxu0 0.0
        %4375 = vmatpush.msra.mxu0 0.0
        %4376 = vmatpush.msra.mxu0 0.0
        %4377 = vmatpush.msra.mxu0 0.0
        %4378 = vmatpush.msra.mxu0 %v4359
        %4379 = vmatmul.f32.gmra.mxu0 %v4361
        %v4380 = vpop.f32.mrf.mxu0
        %v4381 = vadd.f32 0.0, %v4380
        %4382 = vdwg.mxu0
        %v4383 = vadd.f32 %v4355, %v4381
        %4384 = vrot.lane.b32.xlu0 %v4190, 72
        %v4385 = vpop.permute.xlu0 %4384
        %4386 = vrot.lane.b32.xlu0 %v4191, 100
        %v4387 = vpop.permute.xlu0 %4386
        %v4389 = vsel %vm4199, %v4385, 0
        %4391 = vmatpush.msra.mxu0 0.0
        %4392 = vmatpush.msra.mxu0 0.0
        %4393 = vmatpush.msra.mxu0 0.0
        %4394 = vmatpush.msra.mxu0 0.0
        %4395 = vmatpush.msra.mxu0 0.0
        %4396 = vmatpush.msra.mxu0 0.0
        %4397 = vmatpush.msra.mxu0 0.0
        %4398 = vmatpush.msra.mxu0 0.0
        %4399 = vmatpush.msra.mxu0 0.0
        %4400 = vmatpush.msra.mxu0 0.0
        %4401 = vmatpush.msra.mxu0 0.0
        %4402 = vmatpush.msra.mxu0 0.0
        %4403 = vmatpush.msra.mxu0 0.0
        %4404 = vmatpush.msra.mxu0 0.0
        %4405 = vmatpush.msra.mxu0 0.0
        %4406 = vmatpush.msra.mxu0 %v4387
        %4407 = vmatmul.f32.gmra.mxu0 %v4389
        %v4408 = vpop.f32.mrf.mxu0
        %v4409 = vadd.f32 0.0, %v4408
        %4410 = vdwg.mxu0
        %v4411 = vadd.f32 %v4383, %v4409
        %v4412 = vld [vmem:[%s11] sm:$0xf]
        %4414 = vset.pattern.permute.xlu0 0
        %4415 = vperm.xlu0 %4414, %v4412
        %v4416 = vpop.permute.xlu0 %4415
        %v4418 = vadd.f32 %v4411, %v4416
        %vm4419 = vcmp.gt.f32.partialorder %v4418, 0.0
        %v4420 = vmin.f32 %v4418, 0.0
        %v4421 = vmul.f32 %v4420, 1.442695
        %v4422 = vpow.pop %v4421
        %v4423 = vsub.f32 %v4422, 1.0
        %v4424 = vsel %vm4419, %v4418, %v4423
        %4426 = vrot.lane.b32.xlu0 %v4424, 114
        %v4427 = vpop.permute.xlu0 %4426
        %v4429 = vrot.slane %v4424, 1
        %4430 = vrot.lane.b32.xlu0 %v4429, 2
        %v4431 = vpop.permute.xlu0 %4430
        %v4433 = vrot.slane %v4424, 2
        %4434 = vrot.lane.b32.xlu0 %v4433, 18
        %v4435 = vpop.permute.xlu0 %4434
        %v4437 = vrot.slane %v4424, 3
        %4438 = vrot.lane.b32.xlu0 %v4437, 34
        %v4439 = vpop.permute.xlu0 %4438
        %v4441 = vsel %vm3944, %v4427, %v4431
        %vm4442 = vcmask 261120
        %v4443 = vsel %vm4442, %v4441, %v4435
        %vm4444 = vcmask 392192
        %v4445 = vsel %vm4444, %v4443, %v4439
        %v4446 = vld [vmem:[%s12] sm:$0xff]
        %v4447 = vld [vmem:[%s12 + $0x8] sm:$0xff]
        %v4448 = vld [vmem:[%s12 + $0x10] sm:$0xff]
        %v4449 = vld [vmem:[%s12 + $0x18] sm:$0xff]
        %v4450 = vld [vmem:[%s12 + $0x20] sm:$0xff]
        %v4451 = vld [vmem:[%s12 + $0x28] sm:$0xff]
        %v4452 = vld [vmem:[%s12 + $0x30] sm:$0xff]
        %v4453 = vld [vmem:[%s12 + $0x38] sm:$0xff]
        %v4455 = vsel %vm3776, %v4445, 0
        %4457 = vmatpush.msra.mxu0 0.0
        %4458 = vmatpush.msra.mxu0 0.0
        %4459 = vmatpush.msra.mxu0 0.0
        %4460 = vmatpush.msra.mxu0 0.0
        %4461 = vmatpush.msra.mxu0 0.0
        %4462 = vmatpush.msra.mxu0 0.0
        %4463 = vmatpush.msra.mxu0 0.0
        %4464 = vmatpush.msra.mxu0 0.0
        %4465 = vmatpush.msra.mxu0 %v4453
        %4466 = vmatpush.msra.mxu0 %v4452
        %4467 = vmatpush.msra.mxu0 %v4451
        %4468 = vmatpush.msra.mxu0 %v4450
        %4469 = vmatpush.msra.mxu0 %v4449
        %4470 = vmatpush.msra.mxu0 %v4448
        %4471 = vmatpush.msra.mxu0 %v4447
        %4472 = vmatpush.msra.mxu0 %v4446
        %4473 = vmatmul.f32.gmra.mxu0 %v4455
        %v4474 = vpop.f32.mrf.mxu0
        %v4475 = vadd.f32 0.0, %v4474
        %4476 = vdwg.mxu0
        %vm4477 = vcmask 8192
        %4478 = vst.msk [vmem:[%s430] sm:$0x1] %vm4477, %v4475
        %s4479 = sand.u32 %s313, 1
        %s4480 = scalar_lea.sflag [#allocation6], %s4479
        %s4481 = sand.u32 %s313, 1
        %s4482 = scalar_lea.vmem [#allocation5], %s4481
        // Predicated region
        $region73: #{tpu_custom_call.1} parent=71 // pred_check
          %p4483 = pneg %p323
        $region74: #{tpu_custom_call.1} parent=71 // pred_check_branch
          %4485 = sbr.rel (%p4483) target = $region76
        $region75: #{tpu_custom_call.1} parent=71 // pred_region
          %4487 = vsyncadd %s4480, 0
          %s4488 = scalar_lea.hbm %s13, %s27
          %s4490 = sshll.u32 %s4482, 4
          %s4491 = int_to_ptr.vmem [resolvable:$true] %s4490
          %s4492 = sshll.u32 %s4488, 4
          %s4493 = int_to_ptr.hbm [resolvable:$true] %s4492
          %4495 = dma.vmem_to_hbm [thread:$0]  %s4491, 16, %s4493, %s4480
        $region76: #{tpu_custom_call.1} parent=71 // pred_fallthru
          _
      $region72: #{tpu_custom_call.1} parent=5 // pred_fallthru
        _
      %p4496 = scmp.le.s32.totalorder 2, %s22
      // Predicated region
      $region77: #{tpu_custom_call.1} parent=5 // pred_check
        %p4497 = pneg %p4496
      $region78: #{tpu_custom_call.1} parent=5 // pred_check_branch
        %4499 = sbr.rel (%p4497) target = $region80
      $region79: #{tpu_custom_call.1} parent=5 // pred_region
        %s4500 = ssub.s32 %s22, 2
        // Predicated region
        $region81: #{tpu_custom_call.1} parent=79 // pred_check
          %p4501 = pneg %p329
        $region82: #{tpu_custom_call.1} parent=79 // pred_check_branch
          %4503 = sbr.rel (%p4501) target = $region84
        $region83: #{tpu_custom_call.1} parent=79 // pred_region
          %s4504 = sand.u32 %s314, 1
          %s4505 = scalar_lea.sflag [#allocation6], %s4504
          %s4506 = sand.u32 %s314, 1
          %s4507 = scalar_lea.vmem [#allocation5], %s4506
          %4509 = dma.done %s4505, 16
        $region84: #{tpu_custom_call.1} parent=79 // pred_fallthru
          _
      $region80: #{tpu_custom_call.1} parent=5 // pred_fallthru
        _
    $region6: #{tpu_custom_call.1} parent=1 // loop_footer
      %s26 = sadd.s32 1, %s22
    $region7: #{tpu_custom_call.1} parent=1 // loop_footer_branch
      %21 = sbr.rel target = $region3
    $region8: #{tpu_custom_call.1} parent=1 // loop_exit
      _
    %4510 = vsyncpa [#allocation6], 1
    %s4511 = scalar_lea.sflag [#allocation6], 1
    %4512 = vsyncpa %s4511, 1

</llo_original>
